<compile_context>
chip_gen: v7x
topology: tpu7x:2x2x1
jax: 0.10.0
libtpu: 0.0.40
codegen_flags: <defaults>
</compile_context>

<pallas_src>
import functools

import numpy as np

import jax
import jax.numpy as jnp
from jax import lax
from jax.experimental import pallas as pl
from jax.experimental.pallas import tpu as pltpu

NUMBER_F = 32   # `number_f` in the PyTorch module
IN_PAD = 8      # input channels padded 3 -> 8 so im2col tap blocks are aligned


# -----------------------------------------------------------------------------
# Fused forward kernel: one packed batch slab per grid step.
# -----------------------------------------------------------------------------
def _enhancer_kernel(x_ref, masks_ref,
                     wldsp_ref, bldsp_ref,
                     w4a_ref, w4b_ref, b4_ref,
                     w5a_ref, w5b_ref, b5_ref,
                     w78a_ref, w78b_ref, b78_ref,
                     enh_ref, r_ref, n_ref, ld_ref, sp_ref,
                     tap_sp, tap_x3, tap_x4, tap_x5,
                     *, W, N, out_c):
    f32 = jnp.float32
    bf16 = jnp.bfloat16

    masks = masks_ref[...]                                   # (9, N) f32, 0/1
    shifts = [(dy - 1) * W + (dx - 1) for dy in range(3) for dx in range(3)]

    def tap_of(act, t):
        """Shifted+masked tap t of a channel-major (Cin, N) activation (f32)."""
        s = shifts[t]
        if s == 0:
            return act                       # centre tap: every pixel valid
        return pltpu.roll(act, (-s) % N, axis=1) * masks[t:t + 1, :]

    def fill_taps(act, tap_ref):
        """Write the 9 taps of act into a (9*Cin, N) bf16 im2col scratch."""
        cin = act.shape[0]
        for t in range(9):
            tap_ref[pl.ds(t * cin, cin), :] = tap_of(act, t).astype(tap_ref.dtype)

    def mm(w_ref_, taps):
        return jnp.dot(w_ref_[...], taps, preferred_element_type=f32)

    x = x_ref[...].astype(f32)                               # (8, N), rows 3..7 zero

    # --- ldnet / spnet stand-in: fused Cout=64 conv (+ReLU), one im2col dot ---
    taps_x = jnp.concatenate([tap_of(x, t) for t in range(9)], axis=0)  # (72, N)
    ldsp = jnp.maximum(mm(wldsp_ref, taps_x.astype(bf16)) + bldsp_ref[...], 0.0)
    x_ld = ldsp[:NUMBER_F, :]
    x_sp = ldsp[NUMBER_F:, :]
    x3 = x_sp + x_ld

    # --- e_conv4(cat[x_sp, x3]) as split-K: two dots against weight halves ---
    fill_taps(x_sp, tap_sp)
    fill_taps(x3, tap_x3)
    x4 = mm(w4a_ref, tap_sp[...]) + mm(w4b_ref, tap_x3[...])
    x4 = jnp.maximum(x4 + b4_ref[...], 0.0)

    # --- e_conv5(cat[x3, x4]) -- x3 taps reused -------------------------------
    fill_taps(x4, tap_x4)
    x5 = mm(w5a_ref, tap_x3[...]) + mm(w5b_ref, tap_x4[...])
    x5 = jnp.maximum(x5 + b5_ref[...], 0.0)

    # --- e_conv7 | e_conv8 fused (Cout = 8 + 8), cat[x4, x5] -- x4 taps reused -
    fill_taps(x5, tap_x5)
    rn = mm(w78a_ref, tap_x4[...]) + mm(w78b_ref, tap_x5[...])
    rn = jnp.tanh(rn + b78_ref[...])
    x_r = rn[:8, :]
    x_n = rn[8:, :]

    # --- 8-stage curve enhancement in closed affine form (all f32) -----------
    a = jnp.ones((1, N), f32)
    b = jnp.zeros((1, N), f32)
    for i in range(8):
        rp = x_r[i:i + 1, :] + 1.0
        a = a * rp
        b = (b - x_n[i:i + 1, :]) * rp
    enh = x[:out_c, :] * a + b

    enh_ref[...] = enh.astype(enh_ref.dtype)
    r_ref[...] = (x_r + 1.0).astype(r_ref.dtype)
    n_ref[...] = x_n.astype(n_ref.dtype)
    ld_ref[...] = x_ld.astype(ld_ref.dtype)
    sp_ref[...] = x_sp.astype(sp_ref.dtype)


# -----------------------------------------------------------------------------
# Parameters (synthetic weights, no checkpoint).  Conv weights stored as
# (3, 3, Cout, Cin) (torch (Cout,Cin,3,3) transposed (2,3,0,1)); biases (Cout,1).
# -----------------------------------------------------------------------------
def init_params(key, in_ch):
    def conv_params(k, cin, cout):
        kw, kb = jax.random.split(k)
        std = 1.0 / jnp.sqrt(9.0 * cin)
        w = jax.random.normal(kw, (3, 3, cout, cin), jnp.float32) * std
        b = jax.random.normal(kb, (cout, 1), jnp.float32) * 0.01
        return w, b

    keys = jax.random.split(key, 4)
    p = {}
    p["ldsp_w"], p["ldsp_b"] = conv_params(keys[0], in_ch, 2 * NUMBER_F)  # ld|sp
    p["c4_w"], p["c4_b"] = conv_params(keys[1], 2 * NUMBER_F, NUMBER_F)   # e_conv4
    p["c5_w"], p["c5_b"] = conv_params(keys[2], 2 * NUMBER_F, NUMBER_F)   # e_conv5
    p["c78_w"], p["c78_b"] = conv_params(keys[3], 2 * NUMBER_F, 16)       # e_conv7|8
    return p


def _im2col_weight(w):
    """(3,3,Cout,Cin) torch-layout -> lane-dense (Cout, 9*Cin) bf16 im2col."""
    kh, kw, cout, cin = w.shape
    wf = jnp.transpose(w, (2, 0, 1, 3)).reshape(cout, kh * kw * cin)
    return wf.astype(jnp.bfloat16)


def _make_masks(H, W, imgs_per_step):
    """(9, imgs_per_step*H*W) f32 edge masks (zero-padding emulation)."""
    HW = H * W
    pos = jnp.arange(imgs_per_step * HW, dtype=jnp.int32) % HW
    px = pos % W
    py = pos // W
    rows = []
    for dy in range(3):
        for dx in range(3):
            ok = ((px + (dx - 1) >= 0) & (px + (dx - 1) < W) &
                  (py + (dy - 1) >= 0) & (py + (dy - 1) < H))
            rows.append(ok)
    return jnp.stack(rows, axis=0).astype(jnp.float32)


# -----------------------------------------------------------------------------
# Forward pass (mirrors enhancer.forward).  NCHW in, NCHW out.
# -----------------------------------------------------------------------------
@jax.jit
def enhancer_forward(params, x_nchw):
    B, C, H, W = x_nchw.shape
    HW = H * W
    f32 = jnp.float32

    # Fold the batch into the lane axis; keep a 2-step grid so both v7x
    # TensorCores get work.  On v5e/v6e (single TC) the grid is a serial loop
    # either way, and 2 fat steps keep per-step overhead negligible.
    num_steps = 2 if (B % 2 == 0 and B >= 2) else 1
    ips = B // num_steps                        # images packed per grid step
    N = ips * HW

    x = x_nchw.astype(f32).reshape(num_steps, ips, C, HW)
    x = jnp.transpose(x, (0, 2, 1, 3)).reshape(num_steps, C, N)
    x = jnp.pad(x, ((0, 0), (0, IN_PAD - C), (0, 0)))     # channels 3 -> 8

    masks = _make_masks(H, W, ips)                         # (9, N) f32

    # Lane-dense im2col weights (bf16 MXU operands); split-K halves for the
    # channel-concat convs; biases stay (Cout, 1) f32.
    w_ldsp = jnp.pad(params["ldsp_w"], ((0, 0), (0, 0), (0, 0), (0, IN_PAD - C)))
    w_ldsp = _im2col_weight(w_ldsp)                                  # (64, 72)
    w4a = _im2col_weight(params["c4_w"][..., :NUMBER_F])             # (32, 288)
    w4b = _im2col_weight(params["c4_w"][..., NUMBER_F:])
    w5a = _im2col_weight(params["c5_w"][..., :NUMBER_F])
    w5b = _im2col_weight(params["c5_w"][..., NUMBER_F:])
    w78a = _im2col_weight(params["c78_w"][..., :NUMBER_F])           # (16, 288)
    w78b = _im2col_weight(params["c78_w"][..., NUMBER_F:])

    def full(arr):
        zeros = (0,) * arr.ndim
        return pl.BlockSpec(arr.shape, lambda g: zeros)

    def batched(c):
        return pl.BlockSpec((None, c, N), lambda g: (g, 0, 0))

    kernel = functools.partial(_enhancer_kernel, W=W, N=N, out_c=C)
    out_shape = (
        jax.ShapeDtypeStruct((num_steps, C, N), f32),          # enhance_image
        jax.ShapeDtypeStruct((num_steps, 8, N), f32),          # r
        jax.ShapeDtypeStruct((num_steps, 8, N), f32),          # n
        jax.ShapeDtypeStruct((num_steps, NUMBER_F, N), f32),   # x_ld
        jax.ShapeDtypeStruct((num_steps, NUMBER_F, N), f32),   # x_sp
    )

    enh, r, n, x_ld, x_sp = pl.pallas_call(
        kernel,
        out_shape=out_shape,
        grid=(num_steps,),
        in_specs=[
            batched(IN_PAD), full(masks),
            full(w_ldsp), full(params["ldsp_b"]),
            full(w4a), full(w4b), full(params["c4_b"]),
            full(w5a), full(w5b), full(params["c5_b"]),
            full(w78a), full(w78b), full(params["c78_b"]),
        ],
        out_specs=(batched(C), batched(8), batched(8),
                   batched(NUMBER_F), batched(NUMBER_F)),
        scratch_shapes=[
            pltpu.VMEM((9 * NUMBER_F, N), jnp.bfloat16),   # taps of x_sp
            pltpu.VMEM((9 * NUMBER_F, N), jnp.bfloat16),   # taps of x3 (reused x2)
            pltpu.VMEM((9 * NUMBER_F, N), jnp.bfloat16),   # taps of x4 (reused x2)
            pltpu.VMEM((9 * NUMBER_F, N), jnp.bfloat16),   # taps of x5
        ],
        compiler_params=pltpu.CompilerParams(
            # Shares the 2 steps across v7x's two TensorCores; no effect on
            # v5e/v6e (single TC) beyond documenting step independence.
            dimension_semantics=("parallel",),
        ),
    )(x, masks, w_ldsp, params["ldsp_b"],
      w4a, w4b, params["c4_b"], w5a, w5b, params["c5_b"],
      w78a, w78b, params["c78_b"])

    def unpack(t):
        c = t.shape[1]
        t = t.reshape(num_steps, c, ips, HW)
        return jnp.transpose(t, (0, 2, 1, 3)).reshape(B, c, H, W)

    return unpack(enh), unpack(r), unpack(n), unpack(x_ld), unpack(x_sp)


# -----------------------------------------------------------------------------
# Pure-XLA reference of the same graph (validation only).  Matmul operands are
# quantized to bf16 exactly like the kernel (f32 accumulation), so the only
# divergence is accumulation order -> a tight tolerance still catches any
# tap/roll/mask or weight-layout regression (which would be O(0.1-1)).
# -----------------------------------------------------------------------------
def _reference_forward(params, x):
    bf16 = jnp.bfloat16
    f32 = jnp.float32

    def conv(a, w, b):
        wt = jnp.transpose(w, (2, 3, 0, 1)).astype(bf16)   # (ky,kx,O,I) -> OIHW
        y = lax.conv_general_dilated(
            a.astype(bf16), wt, window_strides=(1, 1), padding=((1, 1), (1, 1)),
            dimension_numbers=("NCHW", "OIHW", "NCHW"),
            preferred_element_type=f32)
        return y + b.reshape(1, -1, 1, 1)

    ldsp = jax.nn.relu(conv(x, params["ldsp_w"], params["ldsp_b"]))
    x_ld, x_sp = ldsp[:, :NUMBER_F], ldsp[:, NUMBER_F:]
    x3 = x_sp + x_ld
    x4 = jax.nn.relu(conv(jnp.concatenate([x_sp, x3], 1),
                          params["c4_w"], params["c4_b"]))
    x5 = jax.nn.relu(conv(jnp.concatenate([x3, x4], 1),
                          params["c5_w"], params["c5_b"]))
    rn = jnp.tanh(conv(jnp.concatenate([x4, x5], 1),
                       params["c78_w"], params["c78_b"]))
    x_r, x_n = rn[:, :8], rn[:, 8:]
    xe = x.astype(f32)
    for i in range(8):
        xe = (xe - x_n[:, i:i + 1]) * (x_r[:, i:i + 1] + 1.0)
    return xe, x_r + 1.0, x_n, x_ld, x_sp


if __name__ == "__main__":
    B, C, H, W = 2, 3, 16, 16
    key = jax.random.PRNGKey(0)
    k_x, k_p = jax.random.split(key)
    x = jax.random.uniform(k_x, (B, C, H, W), jnp.float32)   # NCHW input image
    params = init_params(k_p, C)

    outs = jax.block_until_ready(enhancer_forward(params, x))
    enhance_image, r, n, x_ld, x_sp = outs
    assert enhance_image.shape == (B, C, H, W)
    assert r.shape == (B, 8, H, W)
    assert n.shape == (B, 8, H, W)
    assert x_ld.shape == (B, NUMBER_F, H, W)
    assert x_sp.shape == (B, NUMBER_F, H, W)

    refs = jax.block_until_ready(_reference_forward(params, x))
    for got, want in zip(outs, refs):
        np.testing.assert_allclose(np.asarray(got), np.asarray(want),
                                   rtol=5e-3, atol=5e-3)

    print("KERNEL_OK")
</pallas_src>

<mosaic_0001>
module attributes {stable_mosaic.version = 11 : i64} {
  func.func @_enhancer_kernel(%arg0: i32, %arg1: memref<1x8x256xf32, #tpu.memory_space<vmem>>, %arg2: memref<9x256xf32, #tpu.memory_space<vmem>>, %arg3: memref<64x72xbf16, #tpu.memory_space<vmem>>, %arg4: memref<64x1xf32, #tpu.memory_space<vmem>>, %arg5: memref<32x288xbf16, #tpu.memory_space<vmem>>, %arg6: memref<32x288xbf16, #tpu.memory_space<vmem>>, %arg7: memref<32x1xf32, #tpu.memory_space<vmem>>, %arg8: memref<32x288xbf16, #tpu.memory_space<vmem>>, %arg9: memref<32x288xbf16, #tpu.memory_space<vmem>>, %arg10: memref<32x1xf32, #tpu.memory_space<vmem>>, %arg11: memref<16x288xbf16, #tpu.memory_space<vmem>>, %arg12: memref<16x288xbf16, #tpu.memory_space<vmem>>, %arg13: memref<16x1xf32, #tpu.memory_space<vmem>>, %arg14: memref<1x3x256xf32, #tpu.memory_space<vmem>>, %arg15: memref<1x8x256xf32, #tpu.memory_space<vmem>>, %arg16: memref<1x8x256xf32, #tpu.memory_space<vmem>>, %arg17: memref<1x32x256xf32, #tpu.memory_space<vmem>>, %arg18: memref<1x32x256xf32, #tpu.memory_space<vmem>>, %arg19: memref<288x256xbf16, #tpu.memory_space<vmem>>, %arg20: memref<288x256xbf16, #tpu.memory_space<vmem>>, %arg21: memref<288x256xbf16, #tpu.memory_space<vmem>>, %arg22: memref<288x256xbf16, #tpu.memory_space<vmem>>) attributes {dimension_semantics = [#tpu.dimension_semantics<parallel>], iteration_bounds = array<i64: 2>, scalar_prefetch = 0 : i64, scratch_operands = 4 : i64, tpu.core_type = #tpu.core_type<tc>, window_params = [{transform_indices = @transform_0, window_bounds = array<i64: 1, 8, 256>}, {pipeline_mode = #tpu.pipeline_mode<synchronous>, transform_indices = @transform_1, window_bounds = array<i64: 9, 256>}, {pipeline_mode = #tpu.pipeline_mode<synchronous>, transform_indices = @transform_2, window_bounds = array<i64: 64, 72>}, {pipeline_mode = #tpu.pipeline_mode<synchronous>, transform_indices = @transform_3, window_bounds = array<i64: 64, 1>}, {pipeline_mode = #tpu.pipeline_mode<synchronous>, transform_indices = @transform_4, window_bounds = array<i64: 32, 288>}, {pipeline_mode = #tpu.pipeline_mode<synchronous>, transform_indices = @transform_5, window_bounds = array<i64: 32, 288>}, {pipeline_mode = #tpu.pipeline_mode<synchronous>, transform_indices = @transform_6, window_bounds = array<i64: 32, 1>}, {pipeline_mode = #tpu.pipeline_mode<synchronous>, transform_indices = @transform_7, window_bounds = array<i64: 32, 288>}, {pipeline_mode = #tpu.pipeline_mode<synchronous>, transform_indices = @transform_8, window_bounds = array<i64: 32, 288>}, {pipeline_mode = #tpu.pipeline_mode<synchronous>, transform_indices = @transform_9, window_bounds = array<i64: 32, 1>}, {pipeline_mode = #tpu.pipeline_mode<synchronous>, transform_indices = @transform_10, window_bounds = array<i64: 16, 288>}, {pipeline_mode = #tpu.pipeline_mode<synchronous>, transform_indices = @transform_11, window_bounds = array<i64: 16, 288>}, {pipeline_mode = #tpu.pipeline_mode<synchronous>, transform_indices = @transform_12, window_bounds = array<i64: 16, 1>}, {transform_indices = @transform_13, window_bounds = array<i64: 1, 3, 256>}, {transform_indices = @transform_14, window_bounds = array<i64: 1, 8, 256>}, {transform_indices = @transform_15, window_bounds = array<i64: 1, 8, 256>}, {transform_indices = @transform_16, window_bounds = array<i64: 1, 32, 256>}, {transform_indices = @transform_17, window_bounds = array<i64: 1, 32, 256>}]} {
    %c0 = arith.constant 0 : index
    %c0_0 = arith.constant 0 : index
    %0 = vector.load %arg2[%c0, %c0_0] : memref<9x256xf32, #tpu.memory_space<vmem>>, vector<9x256xf32>
    %c0_1 = arith.constant 0 : index
    %c0_2 = arith.constant 0 : index
    %c0_3 = arith.constant 0 : index
    %1 = vector.load %arg1[%c0_1, %c0_2, %c0_3] : memref<1x8x256xf32, #tpu.memory_space<vmem>>, vector<1x8x256xf32>
    %2 = vector.shape_cast %1 : vector<1x8x256xf32> to vector<8x256xf32>
    %c17_i32 = arith.constant 17 : i32
    %3 = tpu.dynamic_rotate %2 by %c17_i32 dim 1 : vector<8x256xf32>, i32 -> vector<8x256xf32>
    %4 = vector.extract_strided_slice %0 {offsets = [0, 0], sizes = [1, 256], strides = [1, 1]} : vector<9x256xf32> to vector<1x256xf32>
    %5 = vector.broadcast %4 : vector<1x256xf32> to vector<8x256xf32>
    %6 = arith.mulf %3, %5 : vector<8x256xf32>
    %c16_i32 = arith.constant 16 : i32
    %7 = tpu.dynamic_rotate %2 by %c16_i32 dim 1 : vector<8x256xf32>, i32 -> vector<8x256xf32>
    %8 = vector.extract_strided_slice %0 {offsets = [1, 0], sizes = [1, 256], strides = [1, 1]} : vector<9x256xf32> to vector<1x256xf32>
    %9 = vector.broadcast %8 : vector<1x256xf32> to vector<8x256xf32>
    %10 = arith.mulf %7, %9 : vector<8x256xf32>
    %c15_i32 = arith.constant 15 : i32
    %11 = tpu.dynamic_rotate %2 by %c15_i32 dim 1 : vector<8x256xf32>, i32 -> vector<8x256xf32>
    %12 = vector.extract_strided_slice %0 {offsets = [2, 0], sizes = [1, 256], strides = [1, 1]} : vector<9x256xf32> to vector<1x256xf32>
    %13 = vector.broadcast %12 : vector<1x256xf32> to vector<8x256xf32>
    %14 = arith.mulf %11, %13 : vector<8x256xf32>
    %c1_i32 = arith.constant 1 : i32
    %15 = tpu.dynamic_rotate %2 by %c1_i32 dim 1 : vector<8x256xf32>, i32 -> vector<8x256xf32>
    %16 = vector.extract_strided_slice %0 {offsets = [3, 0], sizes = [1, 256], strides = [1, 1]} : vector<9x256xf32> to vector<1x256xf32>
    %17 = vector.broadcast %16 : vector<1x256xf32> to vector<8x256xf32>
    %18 = arith.mulf %15, %17 : vector<8x256xf32>
    %c255_i32 = arith.constant 255 : i32
    %19 = tpu.dynamic_rotate %2 by %c255_i32 dim 1 : vector<8x256xf32>, i32 -> vector<8x256xf32>
    %20 = vector.extract_strided_slice %0 {offsets = [5, 0], sizes = [1, 256], strides = [1, 1]} : vector<9x256xf32> to vector<1x256xf32>
    %21 = vector.broadcast %20 : vector<1x256xf32> to vector<8x256xf32>
    %22 = arith.mulf %19, %21 : vector<8x256xf32>
    %c241_i32 = arith.constant 241 : i32
    %23 = tpu.dynamic_rotate %2 by %c241_i32 dim 1 : vector<8x256xf32>, i32 -> vector<8x256xf32>
    %24 = vector.extract_strided_slice %0 {offsets = [6, 0], sizes = [1, 256], strides = [1, 1]} : vector<9x256xf32> to vector<1x256xf32>
    %25 = vector.broadcast %24 : vector<1x256xf32> to vector<8x256xf32>
    %26 = arith.mulf %23, %25 : vector<8x256xf32>
    %c240_i32 = arith.constant 240 : i32
    %27 = tpu.dynamic_rotate %2 by %c240_i32 dim 1 : vector<8x256xf32>, i32 -> vector<8x256xf32>
    %28 = vector.extract_strided_slice %0 {offsets = [7, 0], sizes = [1, 256], strides = [1, 1]} : vector<9x256xf32> to vector<1x256xf32>
    %29 = vector.broadcast %28 : vector<1x256xf32> to vector<8x256xf32>
    %30 = arith.mulf %27, %29 : vector<8x256xf32>
    %c239_i32 = arith.constant 239 : i32
    %31 = tpu.dynamic_rotate %2 by %c239_i32 dim 1 : vector<8x256xf32>, i32 -> vector<8x256xf32>
    %32 = vector.extract_strided_slice %0 {offsets = [8, 0], sizes = [1, 256], strides = [1, 1]} : vector<9x256xf32> to vector<1x256xf32>
    %33 = vector.broadcast %32 : vector<1x256xf32> to vector<8x256xf32>
    %34 = arith.mulf %31, %33 : vector<8x256xf32>
    %35 = tpu.concatenate %6, %10, %14, %18, %2, %22, %26, %30, %34 in 0 : vector<8x256xf32>, vector<8x256xf32>, vector<8x256xf32>, vector<8x256xf32>, vector<8x256xf32>, vector<8x256xf32>, vector<8x256xf32>, vector<8x256xf32>, vector<8x256xf32> -> vector<72x256xf32>
    %36 = arith.truncf %35 : vector<72x256xf32> to vector<72x256xbf16>
    %c0_4 = arith.constant 0 : index
    %c0_5 = arith.constant 0 : index
    %37 = vector.load %arg3[%c0_4, %c0_5] : memref<64x72xbf16, #tpu.memory_space<vmem>>, vector<64x72xbf16>
    %cst = arith.constant dense<0.000000e+00> : vector<64x256xf32>
    %38 = tpu.matmul %37, %36, %cst {dimension_numbers = #tpu.dot_dimension_numbers<[1], [0], [0], [1], [0, 0, 1, 1], [], []>} : vector<64x72xbf16>, vector<72x256xbf16>, vector<64x256xf32> -> vector<64x256xf32>
    %c0_6 = arith.constant 0 : index
    %c0_7 = arith.constant 0 : index
    %39 = vector.load %arg4[%c0_6, %c0_7] : memref<64x1xf32, #tpu.memory_space<vmem>>, vector<64x1xf32>
    %40 = vector.broadcast %39 : vector<64x1xf32> to vector<64x256xf32>
    %41 = arith.addf %38, %40 : vector<64x256xf32>
    %cst_8 = arith.constant 0.000000e+00 : f32
    %42 = vector.broadcast %cst_8 : f32 to vector<64x256xf32>
    %43 = arith.maximumf %41, %42 : vector<64x256xf32>
    %44 = vector.extract_strided_slice %43 {offsets = [0, 0], sizes = [32, 256], strides = [1, 1]} : vector<64x256xf32> to vector<32x256xf32>
    %45 = vector.extract_strided_slice %43 {offsets = [32, 0], sizes = [32, 256], strides = [1, 1]} : vector<64x256xf32> to vector<32x256xf32>
    %46 = arith.addf %45, %44 : vector<32x256xf32>
    %c17_i32_9 = arith.constant 17 : i32
    %47 = tpu.dynamic_rotate %45 by %c17_i32_9 dim 1 : vector<32x256xf32>, i32 -> vector<32x256xf32>
    %48 = vector.extract_strided_slice %0 {offsets = [0, 0], sizes = [1, 256], strides = [1, 1]} : vector<9x256xf32> to vector<1x256xf32>
    %49 = vector.broadcast %48 : vector<1x256xf32> to vector<32x256xf32>
    %50 = arith.mulf %47, %49 : vector<32x256xf32>
    %51 = arith.truncf %50 : vector<32x256xf32> to vector<32x256xbf16>
    %c0_10 = arith.constant 0 : index
    %c0_11 = arith.constant 0 : index
    %52 = vector.load %arg19[%c0_10, %c0_11] : memref<288x256xbf16, #tpu.memory_space<vmem>>, vector<32x256xbf16>
    tpu.vector_store %arg19[%c0_10, %c0_11], %51 {strides = array<i32>} : memref<288x256xbf16, #tpu.memory_space<vmem>>, vector<32x256xbf16>,
    %c16_i32_12 = arith.constant 16 : i32
    %53 = tpu.dynamic_rotate %45 by %c16_i32_12 dim 1 : vector<32x256xf32>, i32 -> vector<32x256xf32>
    %54 = vector.extract_strided_slice %0 {offsets = [1, 0], sizes = [1, 256], strides = [1, 1]} : vector<9x256xf32> to vector<1x256xf32>
    %55 = vector.broadcast %54 : vector<1x256xf32> to vector<32x256xf32>
    %56 = arith.mulf %53, %55 : vector<32x256xf32>
    %57 = arith.truncf %56 : vector<32x256xf32> to vector<32x256xbf16>
    %c32 = arith.constant 32 : index
    %c0_13 = arith.constant 0 : index
    %58 = vector.load %arg19[%c32, %c0_13] : memref<288x256xbf16, #tpu.memory_space<vmem>>, vector<32x256xbf16>
    tpu.vector_store %arg19[%c32, %c0_13], %57 {strides = array<i32>} : memref<288x256xbf16, #tpu.memory_space<vmem>>, vector<32x256xbf16>,
    %c15_i32_14 = arith.constant 15 : i32
    %59 = tpu.dynamic_rotate %45 by %c15_i32_14 dim 1 : vector<32x256xf32>, i32 -> vector<32x256xf32>
    %60 = vector.extract_strided_slice %0 {offsets = [2, 0], sizes = [1, 256], strides = [1, 1]} : vector<9x256xf32> to vector<1x256xf32>
    %61 = vector.broadcast %60 : vector<1x256xf32> to vector<32x256xf32>
    %62 = arith.mulf %59, %61 : vector<32x256xf32>
    %63 = arith.truncf %62 : vector<32x256xf32> to vector<32x256xbf16>
    %c64 = arith.constant 64 : index
    %c0_15 = arith.constant 0 : index
    %64 = vector.load %arg19[%c64, %c0_15] : memref<288x256xbf16, #tpu.memory_space<vmem>>, vector<32x256xbf16>
    tpu.vector_store %arg19[%c64, %c0_15], %63 {strides = array<i32>} : memref<288x256xbf16, #tpu.memory_space<vmem>>, vector<32x256xbf16>,
    %c1_i32_16 = arith.constant 1 : i32
    %65 = tpu.dynamic_rotate %45 by %c1_i32_16 dim 1 : vector<32x256xf32>, i32 -> vector<32x256xf32>
    %66 = vector.extract_strided_slice %0 {offsets = [3, 0], sizes = [1, 256], strides = [1, 1]} : vector<9x256xf32> to vector<1x256xf32>
    %67 = vector.broadcast %66 : vector<1x256xf32> to vector<32x256xf32>
    %68 = arith.mulf %65, %67 : vector<32x256xf32>
    %69 = arith.truncf %68 : vector<32x256xf32> to vector<32x256xbf16>
    %c96 = arith.constant 96 : index
    %c0_17 = arith.constant 0 : index
    %70 = vector.load %arg19[%c96, %c0_17] : memref<288x256xbf16, #tpu.memory_space<vmem>>, vector<32x256xbf16>
    tpu.vector_store %arg19[%c96, %c0_17], %69 {strides = array<i32>} : memref<288x256xbf16, #tpu.memory_space<vmem>>, vector<32x256xbf16>,
    %71 = arith.truncf %45 : vector<32x256xf32> to vector<32x256xbf16>
    %c128 = arith.constant 128 : index
    %c0_18 = arith.constant 0 : index
    %72 = vector.load %arg19[%c128, %c0_18] : memref<288x256xbf16, #tpu.memory_space<vmem>>, vector<32x256xbf16>
    tpu.vector_store %arg19[%c128, %c0_18], %71 {strides = array<i32>} : memref<288x256xbf16, #tpu.memory_space<vmem>>, vector<32x256xbf16>,
    %c255_i32_19 = arith.constant 255 : i32
    %73 = tpu.dynamic_rotate %45 by %c255_i32_19 dim 1 : vector<32x256xf32>, i32 -> vector<32x256xf32>
    %74 = vector.extract_strided_slice %0 {offsets = [5, 0], sizes = [1, 256], strides = [1, 1]} : vector<9x256xf32> to vector<1x256xf32>
    %75 = vector.broadcast %74 : vector<1x256xf32> to vector<32x256xf32>
    %76 = arith.mulf %73, %75 : vector<32x256xf32>
    %77 = arith.truncf %76 : vector<32x256xf32> to vector<32x256xbf16>
    %c160 = arith.constant 160 : index
    %c0_20 = arith.constant 0 : index
    %78 = vector.load %arg19[%c160, %c0_20] : memref<288x256xbf16, #tpu.memory_space<vmem>>, vector<32x256xbf16>
    tpu.vector_store %arg19[%c160, %c0_20], %77 {strides = array<i32>} : memref<288x256xbf16, #tpu.memory_space<vmem>>, vector<32x256xbf16>,
    %c241_i32_21 = arith.constant 241 : i32
    %79 = tpu.dynamic_rotate %45 by %c241_i32_21 dim 1 : vector<32x256xf32>, i32 -> vector<32x256xf32>
    %80 = vector.extract_strided_slice %0 {offsets = [6, 0], sizes = [1, 256], strides = [1, 1]} : vector<9x256xf32> to vector<1x256xf32>
    %81 = vector.broadcast %80 : vector<1x256xf32> to vector<32x256xf32>
    %82 = arith.mulf %79, %81 : vector<32x256xf32>
    %83 = arith.truncf %82 : vector<32x256xf32> to vector<32x256xbf16>
    %c192 = arith.constant 192 : index
    %c0_22 = arith.constant 0 : index
    %84 = vector.load %arg19[%c192, %c0_22] : memref<288x256xbf16, #tpu.memory_space<vmem>>, vector<32x256xbf16>
    tpu.vector_store %arg19[%c192, %c0_22], %83 {strides = array<i32>} : memref<288x256xbf16, #tpu.memory_space<vmem>>, vector<32x256xbf16>,
    %c240_i32_23 = arith.constant 240 : i32
    %85 = tpu.dynamic_rotate %45 by %c240_i32_23 dim 1 : vector<32x256xf32>, i32 -> vector<32x256xf32>
    %86 = vector.extract_strided_slice %0 {offsets = [7, 0], sizes = [1, 256], strides = [1, 1]} : vector<9x256xf32> to vector<1x256xf32>
    %87 = vector.broadcast %86 : vector<1x256xf32> to vector<32x256xf32>
    %88 = arith.mulf %85, %87 : vector<32x256xf32>
    %89 = arith.truncf %88 : vector<32x256xf32> to vector<32x256xbf16>
    %c224 = arith.constant 224 : index
    %c0_24 = arith.constant 0 : index
    %90 = vector.load %arg19[%c224, %c0_24] : memref<288x256xbf16, #tpu.memory_space<vmem>>, vector<32x256xbf16>
    tpu.vector_store %arg19[%c224, %c0_24], %89 {strides = array<i32>} : memref<288x256xbf16, #tpu.memory_space<vmem>>, vector<32x256xbf16>,
    %c239_i32_25 = arith.constant 239 : i32
    %91 = tpu.dynamic_rotate %45 by %c239_i32_25 dim 1 : vector<32x256xf32>, i32 -> vector<32x256xf32>
    %92 = vector.extract_strided_slice %0 {offsets = [8, 0], sizes = [1, 256], strides = [1, 1]} : vector<9x256xf32> to vector<1x256xf32>
    %93 = vector.broadcast %92 : vector<1x256xf32> to vector<32x256xf32>
    %94 = arith.mulf %91, %93 : vector<32x256xf32>
    %95 = arith.truncf %94 : vector<32x256xf32> to vector<32x256xbf16>
    %c256 = arith.constant 256 : index
    %c0_26 = arith.constant 0 : index
    %96 = vector.load %arg19[%c256, %c0_26] : memref<288x256xbf16, #tpu.memory_space<vmem>>, vector<32x256xbf16>
    tpu.vector_store %arg19[%c256, %c0_26], %95 {strides = array<i32>} : memref<288x256xbf16, #tpu.memory_space<vmem>>, vector<32x256xbf16>,
    %c17_i32_27 = arith.constant 17 : i32
    %97 = tpu.dynamic_rotate %46 by %c17_i32_27 dim 1 : vector<32x256xf32>, i32 -> vector<32x256xf32>
    %98 = vector.extract_strided_slice %0 {offsets = [0, 0], sizes = [1, 256], strides = [1, 1]} : vector<9x256xf32> to vector<1x256xf32>
    %99 = vector.broadcast %98 : vector<1x256xf32> to vector<32x256xf32>
    %100 = arith.mulf %97, %99 : vector<32x256xf32>
    %101 = arith.truncf %100 : vector<32x256xf32> to vector<32x256xbf16>
    %c0_28 = arith.constant 0 : index
    %c0_29 = arith.constant 0 : index
    %102 = vector.load %arg20[%c0_28, %c0_29] : memref<288x256xbf16, #tpu.memory_space<vmem>>, vector<32x256xbf16>
    tpu.vector_store %arg20[%c0_28, %c0_29], %101 {strides = array<i32>} : memref<288x256xbf16, #tpu.memory_space<vmem>>, vector<32x256xbf16>,
    %c16_i32_30 = arith.constant 16 : i32
    %103 = tpu.dynamic_rotate %46 by %c16_i32_30 dim 1 : vector<32x256xf32>, i32 -> vector<32x256xf32>
    %104 = vector.extract_strided_slice %0 {offsets = [1, 0], sizes = [1, 256], strides = [1, 1]} : vector<9x256xf32> to vector<1x256xf32>
    %105 = vector.broadcast %104 : vector<1x256xf32> to vector<32x256xf32>
    %106 = arith.mulf %103, %105 : vector<32x256xf32>
    %107 = arith.truncf %106 : vector<32x256xf32> to vector<32x256xbf16>
    %c32_31 = arith.constant 32 : index
    %c0_32 = arith.constant 0 : index
    %108 = vector.load %arg20[%c32_31, %c0_32] : memref<288x256xbf16, #tpu.memory_space<vmem>>, vector<32x256xbf16>
    tpu.vector_store %arg20[%c32_31, %c0_32], %107 {strides = array<i32>} : memref<288x256xbf16, #tpu.memory_space<vmem>>, vector<32x256xbf16>,
    %c15_i32_33 = arith.constant 15 : i32
    %109 = tpu.dynamic_rotate %46 by %c15_i32_33 dim 1 : vector<32x256xf32>, i32 -> vector<32x256xf32>
    %110 = vector.extract_strided_slice %0 {offsets = [2, 0], sizes = [1, 256], strides = [1, 1]} : vector<9x256xf32> to vector<1x256xf32>
    %111 = vector.broadcast %110 : vector<1x256xf32> to vector<32x256xf32>
    %112 = arith.mulf %109, %111 : vector<32x256xf32>
    %113 = arith.truncf %112 : vector<32x256xf32> to vector<32x256xbf16>
    %c64_34 = arith.constant 64 : index
    %c0_35 = arith.constant 0 : index
    %114 = vector.load %arg20[%c64_34, %c0_35] : memref<288x256xbf16, #tpu.memory_space<vmem>>, vector<32x256xbf16>
    tpu.vector_store %arg20[%c64_34, %c0_35], %113 {strides = array<i32>} : memref<288x256xbf16, #tpu.memory_space<vmem>>, vector<32x256xbf16>,
    %c1_i32_36 = arith.constant 1 : i32
    %115 = tpu.dynamic_rotate %46 by %c1_i32_36 dim 1 : vector<32x256xf32>, i32 -> vector<32x256xf32>
    %116 = vector.extract_strided_slice %0 {offsets = [3, 0], sizes = [1, 256], strides = [1, 1]} : vector<9x256xf32> to vector<1x256xf32>
    %117 = vector.broadcast %116 : vector<1x256xf32> to vector<32x256xf32>
    %118 = arith.mulf %115, %117 : vector<32x256xf32>
    %119 = arith.truncf %118 : vector<32x256xf32> to vector<32x256xbf16>
    %c96_37 = arith.constant 96 : index
    %c0_38 = arith.constant 0 : index
    %120 = vector.load %arg20[%c96_37, %c0_38] : memref<288x256xbf16, #tpu.memory_space<vmem>>, vector<32x256xbf16>
    tpu.vector_store %arg20[%c96_37, %c0_38], %119 {strides = array<i32>} : memref<288x256xbf16, #tpu.memory_space<vmem>>, vector<32x256xbf16>,
    %121 = arith.truncf %46 : vector<32x256xf32> to vector<32x256xbf16>
    %c128_39 = arith.constant 128 : index
    %c0_40 = arith.constant 0 : index
    %122 = vector.load %arg20[%c128_39, %c0_40] : memref<288x256xbf16, #tpu.memory_space<vmem>>, vector<32x256xbf16>
    tpu.vector_store %arg20[%c128_39, %c0_40], %121 {strides = array<i32>} : memref<288x256xbf16, #tpu.memory_space<vmem>>, vector<32x256xbf16>,
    %c255_i32_41 = arith.constant 255 : i32
    %123 = tpu.dynamic_rotate %46 by %c255_i32_41 dim 1 : vector<32x256xf32>, i32 -> vector<32x256xf32>
    %124 = vector.extract_strided_slice %0 {offsets = [5, 0], sizes = [1, 256], strides = [1, 1]} : vector<9x256xf32> to vector<1x256xf32>
    %125 = vector.broadcast %124 : vector<1x256xf32> to vector<32x256xf32>
    %126 = arith.mulf %123, %125 : vector<32x256xf32>
    %127 = arith.truncf %126 : vector<32x256xf32> to vector<32x256xbf16>
    %c160_42 = arith.constant 160 : index
    %c0_43 = arith.constant 0 : index
    %128 = vector.load %arg20[%c160_42, %c0_43] : memref<288x256xbf16, #tpu.memory_space<vmem>>, vector<32x256xbf16>
    tpu.vector_store %arg20[%c160_42, %c0_43], %127 {strides = array<i32>} : memref<288x256xbf16, #tpu.memory_space<vmem>>, vector<32x256xbf16>,
    %c241_i32_44 = arith.constant 241 : i32
    %129 = tpu.dynamic_rotate %46 by %c241_i32_44 dim 1 : vector<32x256xf32>, i32 -> vector<32x256xf32>
    %130 = vector.extract_strided_slice %0 {offsets = [6, 0], sizes = [1, 256], strides = [1, 1]} : vector<9x256xf32> to vector<1x256xf32>
    %131 = vector.broadcast %130 : vector<1x256xf32> to vector<32x256xf32>
    %132 = arith.mulf %129, %131 : vector<32x256xf32>
    %133 = arith.truncf %132 : vector<32x256xf32> to vector<32x256xbf16>
    %c192_45 = arith.constant 192 : index
    %c0_46 = arith.constant 0 : index
    %134 = vector.load %arg20[%c192_45, %c0_46] : memref<288x256xbf16, #tpu.memory_space<vmem>>, vector<32x256xbf16>
    tpu.vector_store %arg20[%c192_45, %c0_46], %133 {strides = array<i32>} : memref<288x256xbf16, #tpu.memory_space<vmem>>, vector<32x256xbf16>,
    %c240_i32_47 = arith.constant 240 : i32
    %135 = tpu.dynamic_rotate %46 by %c240_i32_47 dim 1 : vector<32x256xf32>, i32 -> vector<32x256xf32>
    %136 = vector.extract_strided_slice %0 {offsets = [7, 0], sizes = [1, 256], strides = [1, 1]} : vector<9x256xf32> to vector<1x256xf32>
    %137 = vector.broadcast %136 : vector<1x256xf32> to vector<32x256xf32>
    %138 = arith.mulf %135, %137 : vector<32x256xf32>
    %139 = arith.truncf %138 : vector<32x256xf32> to vector<32x256xbf16>
    %c224_48 = arith.constant 224 : index
    %c0_49 = arith.constant 0 : index
    %140 = vector.load %arg20[%c224_48, %c0_49] : memref<288x256xbf16, #tpu.memory_space<vmem>>, vector<32x256xbf16>
    tpu.vector_store %arg20[%c224_48, %c0_49], %139 {strides = array<i32>} : memref<288x256xbf16, #tpu.memory_space<vmem>>, vector<32x256xbf16>,
    %c239_i32_50 = arith.constant 239 : i32
    %141 = tpu.dynamic_rotate %46 by %c239_i32_50 dim 1 : vector<32x256xf32>, i32 -> vector<32x256xf32>
    %142 = vector.extract_strided_slice %0 {offsets = [8, 0], sizes = [1, 256], strides = [1, 1]} : vector<9x256xf32> to vector<1x256xf32>
    %143 = vector.broadcast %142 : vector<1x256xf32> to vector<32x256xf32>
    %144 = arith.mulf %141, %143 : vector<32x256xf32>
    %145 = arith.truncf %144 : vector<32x256xf32> to vector<32x256xbf16>
    %c256_51 = arith.constant 256 : index
    %c0_52 = arith.constant 0 : index
    %146 = vector.load %arg20[%c256_51, %c0_52] : memref<288x256xbf16, #tpu.memory_space<vmem>>, vector<32x256xbf16>
    tpu.vector_store %arg20[%c256_51, %c0_52], %145 {strides = array<i32>} : memref<288x256xbf16, #tpu.memory_space<vmem>>, vector<32x256xbf16>,
    %c0_53 = arith.constant 0 : index
    %c0_54 = arith.constant 0 : index
    %147 = vector.load %arg19[%c0_53, %c0_54] : memref<288x256xbf16, #tpu.memory_space<vmem>>, vector<288x256xbf16>
    %c0_55 = arith.constant 0 : index
    %c0_56 = arith.constant 0 : index
    %148 = vector.load %arg5[%c0_55, %c0_56] : memref<32x288xbf16, #tpu.memory_space<vmem>>, vector<32x288xbf16>
    %cst_57 = arith.constant dense<0.000000e+00> : vector<32x256xf32>
    %149 = tpu.matmul %148, %147, %cst_57 {dimension_numbers = #tpu.dot_dimension_numbers<[1], [0], [0], [1], [0, 0, 1, 1], [], []>} : vector<32x288xbf16>, vector<288x256xbf16>, vector<32x256xf32> -> vector<32x256xf32>
    %c0_58 = arith.constant 0 : index
    %c0_59 = arith.constant 0 : index
    %150 = vector.load %arg20[%c0_58, %c0_59] : memref<288x256xbf16, #tpu.memory_space<vmem>>, vector<288x256xbf16>
    %c0_60 = arith.constant 0 : index
    %c0_61 = arith.constant 0 : index
    %151 = vector.load %arg6[%c0_60, %c0_61] : memref<32x288xbf16, #tpu.memory_space<vmem>>, vector<32x288xbf16>
    %cst_62 = arith.constant dense<0.000000e+00> : vector<32x256xf32>
    %152 = tpu.matmul %151, %150, %cst_62 {dimension_numbers = #tpu.dot_dimension_numbers<[1], [0], [0], [1], [0, 0, 1, 1], [], []>} : vector<32x288xbf16>, vector<288x256xbf16>, vector<32x256xf32> -> vector<32x256xf32>
    %153 = arith.addf %149, %152 : vector<32x256xf32>
    %c0_63 = arith.constant 0 : index
    %c0_64 = arith.constant 0 : index
    %154 = vector.load %arg7[%c0_63, %c0_64] : memref<32x1xf32, #tpu.memory_space<vmem>>, vector<32x1xf32>
    %155 = vector.broadcast %154 : vector<32x1xf32> to vector<32x256xf32>
    %156 = arith.addf %153, %155 : vector<32x256xf32>
    %cst_65 = arith.constant 0.000000e+00 : f32
    %157 = vector.broadcast %cst_65 : f32 to vector<32x256xf32>
    %158 = arith.maximumf %156, %157 : vector<32x256xf32>
    %c17_i32_66 = arith.constant 17 : i32
    %159 = tpu.dynamic_rotate %158 by %c17_i32_66 dim 1 : vector<32x256xf32>, i32 -> vector<32x256xf32>
    %160 = vector.extract_strided_slice %0 {offsets = [0, 0], sizes = [1, 256], strides = [1, 1]} : vector<9x256xf32> to vector<1x256xf32>
    %161 = vector.broadcast %160 : vector<1x256xf32> to vector<32x256xf32>
    %162 = arith.mulf %159, %161 : vector<32x256xf32>
    %163 = arith.truncf %162 : vector<32x256xf32> to vector<32x256xbf16>
    %c0_67 = arith.constant 0 : index
    %c0_68 = arith.constant 0 : index
    %164 = vector.load %arg21[%c0_67, %c0_68] : memref<288x256xbf16, #tpu.memory_space<vmem>>, vector<32x256xbf16>
    tpu.vector_store %arg21[%c0_67, %c0_68], %163 {strides = array<i32>} : memref<288x256xbf16, #tpu.memory_space<vmem>>, vector<32x256xbf16>,
    %c16_i32_69 = arith.constant 16 : i32
    %165 = tpu.dynamic_rotate %158 by %c16_i32_69 dim 1 : vector<32x256xf32>, i32 -> vector<32x256xf32>
    %166 = vector.extract_strided_slice %0 {offsets = [1, 0], sizes = [1, 256], strides = [1, 1]} : vector<9x256xf32> to vector<1x256xf32>
    %167 = vector.broadcast %166 : vector<1x256xf32> to vector<32x256xf32>
    %168 = arith.mulf %165, %167 : vector<32x256xf32>
    %169 = arith.truncf %168 : vector<32x256xf32> to vector<32x256xbf16>
    %c32_70 = arith.constant 32 : index
    %c0_71 = arith.constant 0 : index
    %170 = vector.load %arg21[%c32_70, %c0_71] : memref<288x256xbf16, #tpu.memory_space<vmem>>, vector<32x256xbf16>
    tpu.vector_store %arg21[%c32_70, %c0_71], %169 {strides = array<i32>} : memref<288x256xbf16, #tpu.memory_space<vmem>>, vector<32x256xbf16>,
    %c15_i32_72 = arith.constant 15 : i32
    %171 = tpu.dynamic_rotate %158 by %c15_i32_72 dim 1 : vector<32x256xf32>, i32 -> vector<32x256xf32>
    %172 = vector.extract_strided_slice %0 {offsets = [2, 0], sizes = [1, 256], strides = [1, 1]} : vector<9x256xf32> to vector<1x256xf32>
    %173 = vector.broadcast %172 : vector<1x256xf32> to vector<32x256xf32>
    %174 = arith.mulf %171, %173 : vector<32x256xf32>
    %175 = arith.truncf %174 : vector<32x256xf32> to vector<32x256xbf16>
    %c64_73 = arith.constant 64 : index
    %c0_74 = arith.constant 0 : index
    %176 = vector.load %arg21[%c64_73, %c0_74] : memref<288x256xbf16, #tpu.memory_space<vmem>>, vector<32x256xbf16>
    tpu.vector_store %arg21[%c64_73, %c0_74], %175 {strides = array<i32>} : memref<288x256xbf16, #tpu.memory_space<vmem>>, vector<32x256xbf16>,
    %c1_i32_75 = arith.constant 1 : i32
    %177 = tpu.dynamic_rotate %158 by %c1_i32_75 dim 1 : vector<32x256xf32>, i32 -> vector<32x256xf32>
    %178 = vector.extract_strided_slice %0 {offsets = [3, 0], sizes = [1, 256], strides = [1, 1]} : vector<9x256xf32> to vector<1x256xf32>
    %179 = vector.broadcast %178 : vector<1x256xf32> to vector<32x256xf32>
    %180 = arith.mulf %177, %179 : vector<32x256xf32>
    %181 = arith.truncf %180 : vector<32x256xf32> to vector<32x256xbf16>
    %c96_76 = arith.constant 96 : index
    %c0_77 = arith.constant 0 : index
    %182 = vector.load %arg21[%c96_76, %c0_77] : memref<288x256xbf16, #tpu.memory_space<vmem>>, vector<32x256xbf16>
    tpu.vector_store %arg21[%c96_76, %c0_77], %181 {strides = array<i32>} : memref<288x256xbf16, #tpu.memory_space<vmem>>, vector<32x256xbf16>,
    %183 = arith.truncf %158 : vector<32x256xf32> to vector<32x256xbf16>
    %c128_78 = arith.constant 128 : index
    %c0_79 = arith.constant 0 : index
    %184 = vector.load %arg21[%c128_78, %c0_79] : memref<288x256xbf16, #tpu.memory_space<vmem>>, vector<32x256xbf16>
    tpu.vector_store %arg21[%c128_78, %c0_79], %183 {strides = array<i32>} : memref<288x256xbf16, #tpu.memory_space<vmem>>, vector<32x256xbf16>,
    %c255_i32_80 = arith.constant 255 : i32
    %185 = tpu.dynamic_rotate %158 by %c255_i32_80 dim 1 : vector<32x256xf32>, i32 -> vector<32x256xf32>
    %186 = vector.extract_strided_slice %0 {offsets = [5, 0], sizes = [1, 256], strides = [1, 1]} : vector<9x256xf32> to vector<1x256xf32>
    %187 = vector.broadcast %186 : vector<1x256xf32> to vector<32x256xf32>
    %188 = arith.mulf %185, %187 : vector<32x256xf32>
    %189 = arith.truncf %188 : vector<32x256xf32> to vector<32x256xbf16>
    %c160_81 = arith.constant 160 : index
    %c0_82 = arith.constant 0 : index
    %190 = vector.load %arg21[%c160_81, %c0_82] : memref<288x256xbf16, #tpu.memory_space<vmem>>, vector<32x256xbf16>
    tpu.vector_store %arg21[%c160_81, %c0_82], %189 {strides = array<i32>} : memref<288x256xbf16, #tpu.memory_space<vmem>>, vector<32x256xbf16>,
    %c241_i32_83 = arith.constant 241 : i32
    %191 = tpu.dynamic_rotate %158 by %c241_i32_83 dim 1 : vector<32x256xf32>, i32 -> vector<32x256xf32>
    %192 = vector.extract_strided_slice %0 {offsets = [6, 0], sizes = [1, 256], strides = [1, 1]} : vector<9x256xf32> to vector<1x256xf32>
    %193 = vector.broadcast %192 : vector<1x256xf32> to vector<32x256xf32>
    %194 = arith.mulf %191, %193 : vector<32x256xf32>
    %195 = arith.truncf %194 : vector<32x256xf32> to vector<32x256xbf16>
    %c192_84 = arith.constant 192 : index
    %c0_85 = arith.constant 0 : index
    %196 = vector.load %arg21[%c192_84, %c0_85] : memref<288x256xbf16, #tpu.memory_space<vmem>>, vector<32x256xbf16>
    tpu.vector_store %arg21[%c192_84, %c0_85], %195 {strides = array<i32>} : memref<288x256xbf16, #tpu.memory_space<vmem>>, vector<32x256xbf16>,
    %c240_i32_86 = arith.constant 240 : i32
    %197 = tpu.dynamic_rotate %158 by %c240_i32_86 dim 1 : vector<32x256xf32>, i32 -> vector<32x256xf32>
    %198 = vector.extract_strided_slice %0 {offsets = [7, 0], sizes = [1, 256], strides = [1, 1]} : vector<9x256xf32> to vector<1x256xf32>
    %199 = vector.broadcast %198 : vector<1x256xf32> to vector<32x256xf32>
    %200 = arith.mulf %197, %199 : vector<32x256xf32>
    %201 = arith.truncf %200 : vector<32x256xf32> to vector<32x256xbf16>
    %c224_87 = arith.constant 224 : index
    %c0_88 = arith.constant 0 : index
    %202 = vector.load %arg21[%c224_87, %c0_88] : memref<288x256xbf16, #tpu.memory_space<vmem>>, vector<32x256xbf16>
    tpu.vector_store %arg21[%c224_87, %c0_88], %201 {strides = array<i32>} : memref<288x256xbf16, #tpu.memory_space<vmem>>, vector<32x256xbf16>,
    %c239_i32_89 = arith.constant 239 : i32
    %203 = tpu.dynamic_rotate %158 by %c239_i32_89 dim 1 : vector<32x256xf32>, i32 -> vector<32x256xf32>
    %204 = vector.extract_strided_slice %0 {offsets = [8, 0], sizes = [1, 256], strides = [1, 1]} : vector<9x256xf32> to vector<1x256xf32>
    %205 = vector.broadcast %204 : vector<1x256xf32> to vector<32x256xf32>
    %206 = arith.mulf %203, %205 : vector<32x256xf32>
    %207 = arith.truncf %206 : vector<32x256xf32> to vector<32x256xbf16>
    %c256_90 = arith.constant 256 : index
    %c0_91 = arith.constant 0 : index
    %208 = vector.load %arg21[%c256_90, %c0_91] : memref<288x256xbf16, #tpu.memory_space<vmem>>, vector<32x256xbf16>
    tpu.vector_store %arg21[%c256_90, %c0_91], %207 {strides = array<i32>} : memref<288x256xbf16, #tpu.memory_space<vmem>>, vector<32x256xbf16>,
    %c0_92 = arith.constant 0 : index
    %c0_93 = arith.constant 0 : index
    %209 = vector.load %arg20[%c0_92, %c0_93] : memref<288x256xbf16, #tpu.memory_space<vmem>>, vector<288x256xbf16>
    %c0_94 = arith.constant 0 : index
    %c0_95 = arith.constant 0 : index
    %210 = vector.load %arg8[%c0_94, %c0_95] : memref<32x288xbf16, #tpu.memory_space<vmem>>, vector<32x288xbf16>
    %cst_96 = arith.constant dense<0.000000e+00> : vector<32x256xf32>
    %211 = tpu.matmul %210, %209, %cst_96 {dimension_numbers = #tpu.dot_dimension_numbers<[1], [0], [0], [1], [0, 0, 1, 1], [], []>} : vector<32x288xbf16>, vector<288x256xbf16>, vector<32x256xf32> -> vector<32x256xf32>
    %c0_97 = arith.constant 0 : index
    %c0_98 = arith.constant 0 : index
    %212 = vector.load %arg21[%c0_97, %c0_98] : memref<288x256xbf16, #tpu.memory_space<vmem>>, vector<288x256xbf16>
    %c0_99 = arith.constant 0 : index
    %c0_100 = arith.constant 0 : index
    %213 = vector.load %arg9[%c0_99, %c0_100] : memref<32x288xbf16, #tpu.memory_space<vmem>>, vector<32x288xbf16>
    %cst_101 = arith.constant dense<0.000000e+00> : vector<32x256xf32>
    %214 = tpu.matmul %213, %212, %cst_101 {dimension_numbers = #tpu.dot_dimension_numbers<[1], [0], [0], [1], [0, 0, 1, 1], [], []>} : vector<32x288xbf16>, vector<288x256xbf16>, vector<32x256xf32> -> vector<32x256xf32>
    %215 = arith.addf %211, %214 : vector<32x256xf32>
    %c0_102 = arith.constant 0 : index
    %c0_103 = arith.constant 0 : index
    %216 = vector.load %arg10[%c0_102, %c0_103] : memref<32x1xf32, #tpu.memory_space<vmem>>, vector<32x1xf32>
    %217 = vector.broadcast %216 : vector<32x1xf32> to vector<32x256xf32>
    %218 = arith.addf %215, %217 : vector<32x256xf32>
    %cst_104 = arith.constant 0.000000e+00 : f32
    %219 = vector.broadcast %cst_104 : f32 to vector<32x256xf32>
    %220 = arith.maximumf %218, %219 : vector<32x256xf32>
    %c17_i32_105 = arith.constant 17 : i32
    %221 = tpu.dynamic_rotate %220 by %c17_i32_105 dim 1 : vector<32x256xf32>, i32 -> vector<32x256xf32>
    %222 = vector.extract_strided_slice %0 {offsets = [0, 0], sizes = [1, 256], strides = [1, 1]} : vector<9x256xf32> to vector<1x256xf32>
    %223 = vector.broadcast %222 : vector<1x256xf32> to vector<32x256xf32>
    %224 = arith.mulf %221, %223 : vector<32x256xf32>
    %225 = arith.truncf %224 : vector<32x256xf32> to vector<32x256xbf16>
    %c0_106 = arith.constant 0 : index
    %c0_107 = arith.constant 0 : index
    %226 = vector.load %arg22[%c0_106, %c0_107] : memref<288x256xbf16, #tpu.memory_space<vmem>>, vector<32x256xbf16>
    tpu.vector_store %arg22[%c0_106, %c0_107], %225 {strides = array<i32>} : memref<288x256xbf16, #tpu.memory_space<vmem>>, vector<32x256xbf16>,
    %c16_i32_108 = arith.constant 16 : i32
    %227 = tpu.dynamic_rotate %220 by %c16_i32_108 dim 1 : vector<32x256xf32>, i32 -> vector<32x256xf32>
    %228 = vector.extract_strided_slice %0 {offsets = [1, 0], sizes = [1, 256], strides = [1, 1]} : vector<9x256xf32> to vector<1x256xf32>
    %229 = vector.broadcast %228 : vector<1x256xf32> to vector<32x256xf32>
    %230 = arith.mulf %227, %229 : vector<32x256xf32>
    %231 = arith.truncf %230 : vector<32x256xf32> to vector<32x256xbf16>
    %c32_109 = arith.constant 32 : index
    %c0_110 = arith.constant 0 : index
    %232 = vector.load %arg22[%c32_109, %c0_110] : memref<288x256xbf16, #tpu.memory_space<vmem>>, vector<32x256xbf16>
    tpu.vector_store %arg22[%c32_109, %c0_110], %231 {strides = array<i32>} : memref<288x256xbf16, #tpu.memory_space<vmem>>, vector<32x256xbf16>,
    %c15_i32_111 = arith.constant 15 : i32
    %233 = tpu.dynamic_rotate %220 by %c15_i32_111 dim 1 : vector<32x256xf32>, i32 -> vector<32x256xf32>
    %234 = vector.extract_strided_slice %0 {offsets = [2, 0], sizes = [1, 256], strides = [1, 1]} : vector<9x256xf32> to vector<1x256xf32>
    %235 = vector.broadcast %234 : vector<1x256xf32> to vector<32x256xf32>
    %236 = arith.mulf %233, %235 : vector<32x256xf32>
    %237 = arith.truncf %236 : vector<32x256xf32> to vector<32x256xbf16>
    %c64_112 = arith.constant 64 : index
    %c0_113 = arith.constant 0 : index
    %238 = vector.load %arg22[%c64_112, %c0_113] : memref<288x256xbf16, #tpu.memory_space<vmem>>, vector<32x256xbf16>
    tpu.vector_store %arg22[%c64_112, %c0_113], %237 {strides = array<i32>} : memref<288x256xbf16, #tpu.memory_space<vmem>>, vector<32x256xbf16>,
    %c1_i32_114 = arith.constant 1 : i32
    %239 = tpu.dynamic_rotate %220 by %c1_i32_114 dim 1 : vector<32x256xf32>, i32 -> vector<32x256xf32>
    %240 = vector.extract_strided_slice %0 {offsets = [3, 0], sizes = [1, 256], strides = [1, 1]} : vector<9x256xf32> to vector<1x256xf32>
    %241 = vector.broadcast %240 : vector<1x256xf32> to vector<32x256xf32>
    %242 = arith.mulf %239, %241 : vector<32x256xf32>
    %243 = arith.truncf %242 : vector<32x256xf32> to vector<32x256xbf16>
    %c96_115 = arith.constant 96 : index
    %c0_116 = arith.constant 0 : index
    %244 = vector.load %arg22[%c96_115, %c0_116] : memref<288x256xbf16, #tpu.memory_space<vmem>>, vector<32x256xbf16>
    tpu.vector_store %arg22[%c96_115, %c0_116], %243 {strides = array<i32>} : memref<288x256xbf16, #tpu.memory_space<vmem>>, vector<32x256xbf16>,
    %245 = arith.truncf %220 : vector<32x256xf32> to vector<32x256xbf16>
    %c128_117 = arith.constant 128 : index
    %c0_118 = arith.constant 0 : index
    %246 = vector.load %arg22[%c128_117, %c0_118] : memref<288x256xbf16, #tpu.memory_space<vmem>>, vector<32x256xbf16>
    tpu.vector_store %arg22[%c128_117, %c0_118], %245 {strides = array<i32>} : memref<288x256xbf16, #tpu.memory_space<vmem>>, vector<32x256xbf16>,
    %c255_i32_119 = arith.constant 255 : i32
    %247 = tpu.dynamic_rotate %220 by %c255_i32_119 dim 1 : vector<32x256xf32>, i32 -> vector<32x256xf32>
    %248 = vector.extract_strided_slice %0 {offsets = [5, 0], sizes = [1, 256], strides = [1, 1]} : vector<9x256xf32> to vector<1x256xf32>
    %249 = vector.broadcast %248 : vector<1x256xf32> to vector<32x256xf32>
    %250 = arith.mulf %247, %249 : vector<32x256xf32>
    %251 = arith.truncf %250 : vector<32x256xf32> to vector<32x256xbf16>
    %c160_120 = arith.constant 160 : index
    %c0_121 = arith.constant 0 : index
    %252 = vector.load %arg22[%c160_120, %c0_121] : memref<288x256xbf16, #tpu.memory_space<vmem>>, vector<32x256xbf16>
    tpu.vector_store %arg22[%c160_120, %c0_121], %251 {strides = array<i32>} : memref<288x256xbf16, #tpu.memory_space<vmem>>, vector<32x256xbf16>,
    %c241_i32_122 = arith.constant 241 : i32
    %253 = tpu.dynamic_rotate %220 by %c241_i32_122 dim 1 : vector<32x256xf32>, i32 -> vector<32x256xf32>
    %254 = vector.extract_strided_slice %0 {offsets = [6, 0], sizes = [1, 256], strides = [1, 1]} : vector<9x256xf32> to vector<1x256xf32>
    %255 = vector.broadcast %254 : vector<1x256xf32> to vector<32x256xf32>
    %256 = arith.mulf %253, %255 : vector<32x256xf32>
    %257 = arith.truncf %256 : vector<32x256xf32> to vector<32x256xbf16>
    %c192_123 = arith.constant 192 : index
    %c0_124 = arith.constant 0 : index
    %258 = vector.load %arg22[%c192_123, %c0_124] : memref<288x256xbf16, #tpu.memory_space<vmem>>, vector<32x256xbf16>
    tpu.vector_store %arg22[%c192_123, %c0_124], %257 {strides = array<i32>} : memref<288x256xbf16, #tpu.memory_space<vmem>>, vector<32x256xbf16>,
    %c240_i32_125 = arith.constant 240 : i32
    %259 = tpu.dynamic_rotate %220 by %c240_i32_125 dim 1 : vector<32x256xf32>, i32 -> vector<32x256xf32>
    %260 = vector.extract_strided_slice %0 {offsets = [7, 0], sizes = [1, 256], strides = [1, 1]} : vector<9x256xf32> to vector<1x256xf32>
    %261 = vector.broadcast %260 : vector<1x256xf32> to vector<32x256xf32>
    %262 = arith.mulf %259, %261 : vector<32x256xf32>
    %263 = arith.truncf %262 : vector<32x256xf32> to vector<32x256xbf16>
    %c224_126 = arith.constant 224 : index
    %c0_127 = arith.constant 0 : index
    %264 = vector.load %arg22[%c224_126, %c0_127] : memref<288x256xbf16, #tpu.memory_space<vmem>>, vector<32x256xbf16>
    tpu.vector_store %arg22[%c224_126, %c0_127], %263 {strides = array<i32>} : memref<288x256xbf16, #tpu.memory_space<vmem>>, vector<32x256xbf16>,
    %c239_i32_128 = arith.constant 239 : i32
    %265 = tpu.dynamic_rotate %220 by %c239_i32_128 dim 1 : vector<32x256xf32>, i32 -> vector<32x256xf32>
    %266 = vector.extract_strided_slice %0 {offsets = [8, 0], sizes = [1, 256], strides = [1, 1]} : vector<9x256xf32> to vector<1x256xf32>
    %267 = vector.broadcast %266 : vector<1x256xf32> to vector<32x256xf32>
    %268 = arith.mulf %265, %267 : vector<32x256xf32>
    %269 = arith.truncf %268 : vector<32x256xf32> to vector<32x256xbf16>
    %c256_129 = arith.constant 256 : index
    %c0_130 = arith.constant 0 : index
    %270 = vector.load %arg22[%c256_129, %c0_130] : memref<288x256xbf16, #tpu.memory_space<vmem>>, vector<32x256xbf16>
    tpu.vector_store %arg22[%c256_129, %c0_130], %269 {strides = array<i32>} : memref<288x256xbf16, #tpu.memory_space<vmem>>, vector<32x256xbf16>,
    %c0_131 = arith.constant 0 : index
    %c0_132 = arith.constant 0 : index
    %271 = vector.load %arg21[%c0_131, %c0_132] : memref<288x256xbf16, #tpu.memory_space<vmem>>, vector<288x256xbf16>
    %c0_133 = arith.constant 0 : index
    %c0_134 = arith.constant 0 : index
    %272 = vector.load %arg11[%c0_133, %c0_134] : memref<16x288xbf16, #tpu.memory_space<vmem>>, vector<16x288xbf16>
    %cst_135 = arith.constant dense<0.000000e+00> : vector<16x256xf32>
    %273 = tpu.matmul %272, %271, %cst_135 {dimension_numbers = #tpu.dot_dimension_numbers<[1], [0], [0], [1], [0, 0, 1, 1], [], []>} : vector<16x288xbf16>, vector<288x256xbf16>, vector<16x256xf32> -> vector<16x256xf32>
    %c0_136 = arith.constant 0 : index
    %c0_137 = arith.constant 0 : index
    %274 = vector.load %arg22[%c0_136, %c0_137] : memref<288x256xbf16, #tpu.memory_space<vmem>>, vector<288x256xbf16>
    %c0_138 = arith.constant 0 : index
    %c0_139 = arith.constant 0 : index
    %275 = vector.load %arg12[%c0_138, %c0_139] : memref<16x288xbf16, #tpu.memory_space<vmem>>, vector<16x288xbf16>
    %cst_140 = arith.constant dense<0.000000e+00> : vector<16x256xf32>
    %276 = tpu.matmul %275, %274, %cst_140 {dimension_numbers = #tpu.dot_dimension_numbers<[1], [0], [0], [1], [0, 0, 1, 1], [], []>} : vector<16x288xbf16>, vector<288x256xbf16>, vector<16x256xf32> -> vector<16x256xf32>
    %277 = arith.addf %273, %276 : vector<16x256xf32>
    %c0_141 = arith.constant 0 : index
    %c0_142 = arith.constant 0 : index
    %278 = vector.load %arg13[%c0_141, %c0_142] : memref<16x1xf32, #tpu.memory_space<vmem>>, vector<16x1xf32>
    %279 = vector.broadcast %278 : vector<16x1xf32> to vector<16x256xf32>
    %280 = arith.addf %277, %279 : vector<16x256xf32>
    %281 = math.tanh %280 : vector<16x256xf32>
    %282 = vector.extract_strided_slice %281 {offsets = [0, 0], sizes = [8, 256], strides = [1, 1]} : vector<16x256xf32> to vector<8x256xf32>
    %283 = vector.extract_strided_slice %281 {offsets = [8, 0], sizes = [8, 256], strides = [1, 1]} : vector<16x256xf32> to vector<8x256xf32>
    %cst_143 = arith.constant 1.000000e+00 : f32
    %284 = vector.broadcast %cst_143 : f32 to vector<1x256xf32>
    %cst_144 = arith.constant 0.000000e+00 : f32
    %285 = vector.broadcast %cst_144 : f32 to vector<1x256xf32>
    %286 = vector.extract_strided_slice %282 {offsets = [0, 0], sizes = [1, 256], strides = [1, 1]} : vector<8x256xf32> to vector<1x256xf32>
    %cst_145 = arith.constant 1.000000e+00 : f32
    %287 = vector.broadcast %cst_145 : f32 to vector<1x256xf32>
    %288 = arith.addf %286, %287 : vector<1x256xf32>
    %289 = arith.mulf %284, %288 : vector<1x256xf32>
    %290 = vector.extract_strided_slice %283 {offsets = [0, 0], sizes = [1, 256], strides = [1, 1]} : vector<8x256xf32> to vector<1x256xf32>
    %291 = arith.subf %285, %290 : vector<1x256xf32>
    %292 = arith.mulf %291, %288 : vector<1x256xf32>
    %293 = vector.extract_strided_slice %282 {offsets = [1, 0], sizes = [1, 256], strides = [1, 1]} : vector<8x256xf32> to vector<1x256xf32>
    %cst_146 = arith.constant 1.000000e+00 : f32
    %294 = vector.broadcast %cst_146 : f32 to vector<1x256xf32>
    %295 = arith.addf %293, %294 : vector<1x256xf32>
    %296 = arith.mulf %289, %295 : vector<1x256xf32>
    %297 = vector.extract_strided_slice %283 {offsets = [1, 0], sizes = [1, 256], strides = [1, 1]} : vector<8x256xf32> to vector<1x256xf32>
    %298 = arith.subf %292, %297 : vector<1x256xf32>
    %299 = arith.mulf %298, %295 : vector<1x256xf32>
    %300 = vector.extract_strided_slice %282 {offsets = [2, 0], sizes = [1, 256], strides = [1, 1]} : vector<8x256xf32> to vector<1x256xf32>
    %cst_147 = arith.constant 1.000000e+00 : f32
    %301 = vector.broadcast %cst_147 : f32 to vector<1x256xf32>
    %302 = arith.addf %300, %301 : vector<1x256xf32>
    %303 = arith.mulf %296, %302 : vector<1x256xf32>
    %304 = vector.extract_strided_slice %283 {offsets = [2, 0], sizes = [1, 256], strides = [1, 1]} : vector<8x256xf32> to vector<1x256xf32>
    %305 = arith.subf %299, %304 : vector<1x256xf32>
    %306 = arith.mulf %305, %302 : vector<1x256xf32>
    %307 = vector.extract_strided_slice %282 {offsets = [3, 0], sizes = [1, 256], strides = [1, 1]} : vector<8x256xf32> to vector<1x256xf32>
    %cst_148 = arith.constant 1.000000e+00 : f32
    %308 = vector.broadcast %cst_148 : f32 to vector<1x256xf32>
    %309 = arith.addf %307, %308 : vector<1x256xf32>
    %310 = arith.mulf %303, %309 : vector<1x256xf32>
    %311 = vector.extract_strided_slice %283 {offsets = [3, 0], sizes = [1, 256], strides = [1, 1]} : vector<8x256xf32> to vector<1x256xf32>
    %312 = arith.subf %306, %311 : vector<1x256xf32>
    %313 = arith.mulf %312, %309 : vector<1x256xf32>
    %314 = vector.extract_strided_slice %282 {offsets = [4, 0], sizes = [1, 256], strides = [1, 1]} : vector<8x256xf32> to vector<1x256xf32>
    %cst_149 = arith.constant 1.000000e+00 : f32
    %315 = vector.broadcast %cst_149 : f32 to vector<1x256xf32>
    %316 = arith.addf %314, %315 : vector<1x256xf32>
    %317 = arith.mulf %310, %316 : vector<1x256xf32>
    %318 = vector.extract_strided_slice %283 {offsets = [4, 0], sizes = [1, 256], strides = [1, 1]} : vector<8x256xf32> to vector<1x256xf32>
    %319 = arith.subf %313, %318 : vector<1x256xf32>
    %320 = arith.mulf %319, %316 : vector<1x256xf32>
    %321 = vector.extract_strided_slice %282 {offsets = [5, 0], sizes = [1, 256], strides = [1, 1]} : vector<8x256xf32> to vector<1x256xf32>
    %cst_150 = arith.constant 1.000000e+00 : f32
    %322 = vector.broadcast %cst_150 : f32 to vector<1x256xf32>
    %323 = arith.addf %321, %322 : vector<1x256xf32>
    %324 = arith.mulf %317, %323 : vector<1x256xf32>
    %325 = vector.extract_strided_slice %283 {offsets = [5, 0], sizes = [1, 256], strides = [1, 1]} : vector<8x256xf32> to vector<1x256xf32>
    %326 = arith.subf %320, %325 : vector<1x256xf32>
    %327 = arith.mulf %326, %323 : vector<1x256xf32>
    %328 = vector.extract_strided_slice %282 {offsets = [6, 0], sizes = [1, 256], strides = [1, 1]} : vector<8x256xf32> to vector<1x256xf32>
    %cst_151 = arith.constant 1.000000e+00 : f32
    %329 = vector.broadcast %cst_151 : f32 to vector<1x256xf32>
    %330 = arith.addf %328, %329 : vector<1x256xf32>
    %331 = arith.mulf %324, %330 : vector<1x256xf32>
    %332 = vector.extract_strided_slice %283 {offsets = [6, 0], sizes = [1, 256], strides = [1, 1]} : vector<8x256xf32> to vector<1x256xf32>
    %333 = arith.subf %327, %332 : vector<1x256xf32>
    %334 = arith.mulf %333, %330 : vector<1x256xf32>
    %335 = vector.extract_strided_slice %282 {offsets = [7, 0], sizes = [1, 256], strides = [1, 1]} : vector<8x256xf32> to vector<1x256xf32>
    %cst_152 = arith.constant 1.000000e+00 : f32
    %336 = vector.broadcast %cst_152 : f32 to vector<1x256xf32>
    %337 = arith.addf %335, %336 : vector<1x256xf32>
    %338 = arith.mulf %331, %337 : vector<1x256xf32>
    %339 = vector.extract_strided_slice %283 {offsets = [7, 0], sizes = [1, 256], strides = [1, 1]} : vector<8x256xf32> to vector<1x256xf32>
    %340 = arith.subf %334, %339 : vector<1x256xf32>
    %341 = arith.mulf %340, %337 : vector<1x256xf32>
    %342 = vector.extract_strided_slice %2 {offsets = [0, 0], sizes = [3, 256], strides = [1, 1]} : vector<8x256xf32> to vector<3x256xf32>
    %343 = vector.broadcast %338 : vector<1x256xf32> to vector<3x256xf32>
    %344 = arith.mulf %342, %343 : vector<3x256xf32>
    %345 = vector.broadcast %341 : vector<1x256xf32> to vector<3x256xf32>
    %346 = arith.addf %344, %345 : vector<3x256xf32>
    %c0_153 = arith.constant 0 : index
    %c0_154 = arith.constant 0 : index
    %c0_155 = arith.constant 0 : index
    %347 = vector.load %arg14[%c0_153, %c0_154, %c0_155] : memref<1x3x256xf32, #tpu.memory_space<vmem>>, vector<1x3x256xf32>
    %348 = vector.shape_cast %347 : vector<1x3x256xf32> to vector<3x256xf32>
    %349 = vector.shape_cast %346 : vector<3x256xf32> to vector<1x3x256xf32>
    tpu.vector_store %arg14[%c0_153, %c0_154, %c0_155], %349 {strides = array<i32>} : memref<1x3x256xf32, #tpu.memory_space<vmem>>, vector<1x3x256xf32>,
    %cst_156 = arith.constant 1.000000e+00 : f32
    %350 = vector.broadcast %cst_156 : f32 to vector<8x256xf32>
    %351 = arith.addf %282, %350 : vector<8x256xf32>
    %c0_157 = arith.constant 0 : index
    %c0_158 = arith.constant 0 : index
    %c0_159 = arith.constant 0 : index
    %352 = vector.load %arg15[%c0_157, %c0_158, %c0_159] : memref<1x8x256xf32, #tpu.memory_space<vmem>>, vector<1x8x256xf32>
    %353 = vector.shape_cast %352 : vector<1x8x256xf32> to vector<8x256xf32>
    %354 = vector.shape_cast %351 : vector<8x256xf32> to vector<1x8x256xf32>
    tpu.vector_store %arg15[%c0_157, %c0_158, %c0_159], %354 {strides = array<i32>} : memref<1x8x256xf32, #tpu.memory_space<vmem>>, vector<1x8x256xf32>,
    %c0_160 = arith.constant 0 : index
    %c0_161 = arith.constant 0 : index
    %c0_162 = arith.constant 0 : index
    %355 = vector.load %arg16[%c0_160, %c0_161, %c0_162] : memref<1x8x256xf32, #tpu.memory_space<vmem>>, vector<1x8x256xf32>
    %356 = vector.shape_cast %355 : vector<1x8x256xf32> to vector<8x256xf32>
    %357 = vector.shape_cast %283 : vector<8x256xf32> to vector<1x8x256xf32>
    tpu.vector_store %arg16[%c0_160, %c0_161, %c0_162], %357 {strides = array<i32>} : memref<1x8x256xf32, #tpu.memory_space<vmem>>, vector<1x8x256xf32>,
    %c0_163 = arith.constant 0 : index
    %c0_164 = arith.constant 0 : index
    %c0_165 = arith.constant 0 : index
    %358 = vector.load %arg17[%c0_163, %c0_164, %c0_165] : memref<1x32x256xf32, #tpu.memory_space<vmem>>, vector<1x32x256xf32>
    %359 = vector.shape_cast %358 : vector<1x32x256xf32> to vector<32x256xf32>
    %360 = vector.shape_cast %44 : vector<32x256xf32> to vector<1x32x256xf32>
    tpu.vector_store %arg17[%c0_163, %c0_164, %c0_165], %360 {strides = array<i32>} : memref<1x32x256xf32, #tpu.memory_space<vmem>>, vector<1x32x256xf32>,
    %c0_166 = arith.constant 0 : index
    %c0_167 = arith.constant 0 : index
    %c0_168 = arith.constant 0 : index
    %361 = vector.load %arg18[%c0_166, %c0_167, %c0_168] : memref<1x32x256xf32, #tpu.memory_space<vmem>>, vector<1x32x256xf32>
    %362 = vector.shape_cast %361 : vector<1x32x256xf32> to vector<32x256xf32>
    %363 = vector.shape_cast %45 : vector<32x256xf32> to vector<1x32x256xf32>
    tpu.vector_store %arg18[%c0_166, %c0_167, %c0_168], %363 {strides = array<i32>} : memref<1x32x256xf32, #tpu.memory_space<vmem>>, vector<1x32x256xf32>,
    return
  }
  func.func @transform_0(%arg0: i32) -> (i32, i32, i32) {
    %c0_i32 = arith.constant 0 : i32
    %c0_i32_0 = arith.constant 0 : i32
    %c0_i32_1 = arith.constant 0 : i32
    return %arg0, %c0_i32, %c0_i32_0 : i32, i32, i32
  }
  func.func @transform_1(%arg0: i32) -> (i32, i32) {
    %c0_i32 = arith.constant 0 : i32
    %c0_i32_0 = arith.constant 0 : i32
    %c0_i32_1 = arith.constant 0 : i32
    return %c0_i32, %c0_i32_0 : i32, i32
  }
  func.func @transform_2(%arg0: i32) -> (i32, i32) {
    %c0_i32 = arith.constant 0 : i32
    %c0_i32_0 = arith.constant 0 : i32
    %c0_i32_1 = arith.constant 0 : i32
    return %c0_i32, %c0_i32_0 : i32, i32
  }
  func.func @transform_3(%arg0: i32) -> (i32, i32) {
    %c0_i32 = arith.constant 0 : i32
    %c0_i32_0 = arith.constant 0 : i32
    %c0_i32_1 = arith.constant 0 : i32
    return %c0_i32, %c0_i32_0 : i32, i32
  }
  func.func @transform_4(%arg0: i32) -> (i32, i32) {
    %c0_i32 = arith.constant 0 : i32
    %c0_i32_0 = arith.constant 0 : i32
    %c0_i32_1 = arith.constant 0 : i32
    return %c0_i32, %c0_i32_0 : i32, i32
  }
  func.func @transform_5(%arg0: i32) -> (i32, i32) {
    %c0_i32 = arith.constant 0 : i32
    %c0_i32_0 = arith.constant 0 : i32
    %c0_i32_1 = arith.constant 0 : i32
    return %c0_i32, %c0_i32_0 : i32, i32
  }
  func.func @transform_6(%arg0: i32) -> (i32, i32) {
    %c0_i32 = arith.constant 0 : i32
    %c0_i32_0 = arith.constant 0 : i32
    %c0_i32_1 = arith.constant 0 : i32
    return %c0_i32, %c0_i32_0 : i32, i32
  }
  func.func @transform_7(%arg0: i32) -> (i32, i32) {
    %c0_i32 = arith.constant 0 : i32
    %c0_i32_0 = arith.constant 0 : i32
    %c0_i32_1 = arith.constant 0 : i32
    return %c0_i32, %c0_i32_0 : i32, i32
  }
  func.func @transform_8(%arg0: i32) -> (i32, i32) {
    %c0_i32 = arith.constant 0 : i32
    %c0_i32_0 = arith.constant 0 : i32
    %c0_i32_1 = arith.constant 0 : i32
    return %c0_i32, %c0_i32_0 : i32, i32
  }
  func.func @transform_9(%arg0: i32) -> (i32, i32) {
    %c0_i32 = arith.constant 0 : i32
    %c0_i32_0 = arith.constant 0 : i32
    %c0_i32_1 = arith.constant 0 : i32
    return %c0_i32, %c0_i32_0 : i32, i32
  }
  func.func @transform_10(%arg0: i32) -> (i32, i32) {
    %c0_i32 = arith.constant 0 : i32
    %c0_i32_0 = arith.constant 0 : i32
    %c0_i32_1 = arith.constant 0 : i32
    return %c0_i32, %c0_i32_0 : i32, i32
  }
  func.func @transform_11(%arg0: i32) -> (i32, i32) {
    %c0_i32 = arith.constant 0 : i32
    %c0_i32_0 = arith.constant 0 : i32
    %c0_i32_1 = arith.constant 0 : i32
    return %c0_i32, %c0_i32_0 : i32, i32
  }
  func.func @transform_12(%arg0: i32) -> (i32, i32) {
    %c0_i32 = arith.constant 0 : i32
    %c0_i32_0 = arith.constant 0 : i32
    %c0_i32_1 = arith.constant 0 : i32
    return %c0_i32, %c0_i32_0 : i32, i32
  }
  func.func @transform_13(%arg0: i32) -> (i32, i32, i32) {
    %c0_i32 = arith.constant 0 : i32
    %c0_i32_0 = arith.constant 0 : i32
    %c0_i32_1 = arith.constant 0 : i32
    return %arg0, %c0_i32, %c0_i32_0 : i32, i32, i32
  }
  func.func @transform_14(%arg0: i32) -> (i32, i32, i32) {
    %c0_i32 = arith.constant 0 : i32
    %c0_i32_0 = arith.constant 0 : i32
    %c0_i32_1 = arith.constant 0 : i32
    return %arg0, %c0_i32, %c0_i32_0 : i32, i32, i32
  }
  func.func @transform_15(%arg0: i32) -> (i32, i32, i32) {
    %c0_i32 = arith.constant 0 : i32
    %c0_i32_0 = arith.constant 0 : i32
    %c0_i32_1 = arith.constant 0 : i32
    return %arg0, %c0_i32, %c0_i32_0 : i32, i32, i32
  }
  func.func @transform_16(%arg0: i32) -> (i32, i32, i32) {
    %c0_i32 = arith.constant 0 : i32
    %c0_i32_0 = arith.constant 0 : i32
    %c0_i32_1 = arith.constant 0 : i32
    return %arg0, %c0_i32, %c0_i32_0 : i32, i32, i32
  }
  func.func @transform_17(%arg0: i32) -> (i32, i32, i32) {
    %c0_i32 = arith.constant 0 : i32
    %c0_i32_0 = arith.constant 0 : i32
    %c0_i32_1 = arith.constant 0 : i32
    return %arg0, %c0_i32, %c0_i32_0 : i32, i32, i32
  }
}

</mosaic_0001>

<llo_original>
// kernel: enhancer_forward.1
$region0: #{enhancer_forward.1}
  #allocation0 [shape = 'u32[]', space=smem, size = 0x4, offset = 0x4, fixed_abs, tag = 'smem constant byte address 0x4 - core index']
  #allocation1 [shape = 'u32[144,128]{1,0:T(1,128)}', space=vmem, size = 0x12000, scoped, tag = 'internal scratch']
  #allocation2 [shape = 'bf16[288,256]{1,0:T(16,128)(2,1)}', space=vmem, size = 0x24000, scoped, tag = 'scratch operand']
  #allocation3 [shape = 'bf16[288,256]{1,0:T(16,128)(2,1)}', space=vmem, size = 0x24000, scoped, tag = 'scratch operand']
  #allocation4 [shape = 'bf16[288,256]{1,0:T(16,128)(2,1)}', space=vmem, size = 0x24000, scoped, tag = 'scratch operand']
  #allocation5 [shape = 'bf16[288,256]{1,0:T(16,128)(2,1)}', space=vmem, size = 0x24000, scoped, tag = 'scratch operand']
  %s0 = inlined_call_operand.vmem [shape: f32[2,8,256], index: 0, kind: input, shape index: {}]
  %s1 = inlined_call_operand.vmem [shape: f32[9,256], index: 1, kind: input, shape index: {}]
  %s2 = inlined_call_operand.vmem [shape: bf16[64,72], index: 2, kind: input, shape index: {}]
  %s3 = inlined_call_operand.vmem [shape: f32[64,1], index: 3, kind: input, shape index: {}]
  %s4 = inlined_call_operand.vmem [shape: bf16[32,288], index: 4, kind: input, shape index: {}]
  %s5 = inlined_call_operand.vmem [shape: bf16[32,288], index: 5, kind: input, shape index: {}]
  %s6 = inlined_call_operand.vmem [shape: f32[32,1], index: 6, kind: input, shape index: {}]
  %s7 = inlined_call_operand.vmem [shape: bf16[32,288], index: 7, kind: input, shape index: {}]
  %s8 = inlined_call_operand.vmem [shape: bf16[32,288], index: 8, kind: input, shape index: {}]
  %s9 = inlined_call_operand.vmem [shape: f32[32,1], index: 9, kind: input, shape index: {}]
  %s10 = inlined_call_operand.vmem [shape: bf16[16,288], index: 10, kind: input, shape index: {}]
  %s11 = inlined_call_operand.vmem [shape: bf16[16,288], index: 11, kind: input, shape index: {}]
  %s12 = inlined_call_operand.vmem [shape: f32[16,1], index: 12, kind: input, shape index: {}]
  %s13 = inlined_call_operand.vmem [shape: f32[2,3,256], index: 13, kind: output, shape index: {0}]
  %s14 = inlined_call_operand.vmem [shape: f32[2,8,256], index: 14, kind: output, shape index: {1}]
  %s15 = inlined_call_operand.vmem [shape: f32[2,8,256], index: 15, kind: output, shape index: {2}]
  %s16 = inlined_call_operand.vmem [shape: f32[2,32,256], index: 16, kind: output, shape index: {3}]
  %s17 = inlined_call_operand.vmem [shape: f32[2,32,256], index: 17, kind: output, shape index: {4}]
  %18 = xla_tuple %s13, %s14, %s15, %s16, %s17
  %s19 = sld [smem:[#allocation0]]
  $region117: #{enhancer_forward.1} parent=0
    _
  %s21 = ssub.s32 1, %s19
  %s22 = scalar_select 0, %s21, %s19
  loop: start=0, step=1, limit=4
  $region2: #{enhancer_forward.1} parent=0 // loop_pre_header
    _
  $region3: #{enhancer_forward.1} parent=0 // loop_header
    %s24 = sphi 0, %s28
    %p25 = scmp.ge.s32.totalorder %s24, 4
    %s34 = sphi 0, %s36
    %s37 = sphi 0, %s34
    %s38 = sphi 0, %s37
    %s54 = sphi 0, %s38
    %s58 = sphi 0, %s58
    %s60 = sphi 0, %s58
    %s61 = sphi 0, %s60
    %s75 = sphi 0, %s61
    %s79 = sphi 0, %s79
    %s81 = sphi 0, %s79
    %s82 = sphi 0, %s81
    %s96 = sphi 0, %s82
    %s100 = sphi 0, %s100
    %s102 = sphi 0, %s100
    %s103 = sphi 0, %s102
    %s117 = sphi 0, %s103
    %s121 = sphi 0, %s121
    %s123 = sphi 0, %s121
    %s124 = sphi 0, %s123
    %s138 = sphi 0, %s124
    %s142 = sphi 0, %s142
    %s144 = sphi 0, %s142
    %s145 = sphi 0, %s144
    %s159 = sphi 0, %s145
    %s163 = sphi 0, %s163
    %s165 = sphi 0, %s163
    %s166 = sphi 0, %s165
    %s180 = sphi 0, %s166
    %s184 = sphi 0, %s184
    %s186 = sphi 0, %s184
    %s187 = sphi 0, %s186
    %s201 = sphi 0, %s187
    %s205 = sphi 0, %s205
    %s207 = sphi 0, %s205
    %s208 = sphi 0, %s207
    %s222 = sphi 0, %s208
    %s226 = sphi 0, %s226
    %s228 = sphi 0, %s226
    %s229 = sphi 0, %s228
    %s243 = sphi 0, %s229
    %s247 = sphi 0, %s247
    %s249 = sphi 0, %s247
    %s250 = sphi 0, %s249
    %s264 = sphi 0, %s250
    %s268 = sphi 0, %s268
    %s270 = sphi 0, %s268
    %s271 = sphi 0, %s270
    %s285 = sphi 0, %s271
    %s289 = sphi 0, %s289
    %s291 = sphi 0, %s289
    %s292 = sphi 0, %s291
    %s306 = sphi 0, %s292
    %s312 = sphi 0, %s314
    %s315 = sphi 0, %s312
    %s316 = sphi 0, %s315
    %s332 = sphi 0, %s316
    %s338 = sphi 0, %s340
    %s341 = sphi 0, %s338
    %s342 = sphi 0, %s341
    %s358 = sphi 0, %s342
    %s364 = sphi 0, %s366
    %s367 = sphi 0, %s364
    %s368 = sphi 0, %s367
    %s384 = sphi 0, %s368
    %s390 = sphi 0, %s392
    %s393 = sphi 0, %s390
    %s394 = sphi 0, %s393
    %s410 = sphi 0, %s394
    %s416 = sphi 0, %s418
    %s419 = sphi 0, %s416
    %s420 = sphi 0, %s419
    %s436 = sphi 0, %s420
  $region4: #{enhancer_forward.1} parent=0 // loop_header_branch
    %27 = sbr.rel (%p25) target = $region8
  $region5: #{enhancer_forward.1} parent=0 // loop_body
    %s29 = ssub.s32 %s24, 1
    %s30 = ssub.s32 %s24, 2
    %s31 = sadd.s32 %s24, 1
    %s32 = ssub.s32 %s24, %s31
    %p33 = scmp.eq.s32.totalorder %s32, 0
    %s35 = sadd.s32 %s34, 1
    %s36 = scalar_select %p33, %s34, %s35
    %p39 = pneg %p33
    %p40 = scmp.eq.s32.totalorder %s24, 1
    %p41 = por %p39, %p40
    %p42 = scmp.ne.s32.totalorder %s34, %s37
    %p43 = scmp.eq.s32.totalorder %s24, 0
    %p44 = por %p42, %p43
    %p45 = scmp.ne.s32.totalorder %s34, %s37
    %p46 = scmp.eq.s32.totalorder %s29, 1
    %p47 = por %p45, %p46
    %p48 = scmp.ne.s32.totalorder %s37, %s38
    %p49 = scmp.eq.s32.totalorder %s29, 0
    %p50 = por %p48, %p49
    %p51 = scmp.ne.s32.totalorder %s37, %s38
    %p52 = scmp.eq.s32.totalorder %s30, 1
    %p53 = por %p51, %p52
    %p55 = scmp.ne.s32.totalorder %s38, %s54
    %p56 = scmp.eq.s32.totalorder %s30, 0
    %p57 = por %p55, %p56
    %s59 = sadd.s32 %s58, 1
    %p62 = scmp.eq.s32.totalorder %s24, 1
    %p63 = scmp.ne.s32.totalorder %s58, %s60
    %p64 = scmp.eq.s32.totalorder %s24, 0
    %p65 = por %p63, %p64
    %p66 = scmp.ne.s32.totalorder %s58, %s60
    %p67 = scmp.eq.s32.totalorder %s29, 1
    %p68 = por %p66, %p67
    %p69 = scmp.ne.s32.totalorder %s60, %s61
    %p70 = scmp.eq.s32.totalorder %s29, 0
    %p71 = por %p69, %p70
    %p72 = scmp.ne.s32.totalorder %s60, %s61
    %p73 = scmp.eq.s32.totalorder %s30, 1
    %p74 = por %p72, %p73
    %p76 = scmp.ne.s32.totalorder %s61, %s75
    %p77 = scmp.eq.s32.totalorder %s30, 0
    %p78 = por %p76, %p77
    %s80 = sadd.s32 %s79, 1
    %p83 = scmp.eq.s32.totalorder %s24, 1
    %p84 = scmp.ne.s32.totalorder %s79, %s81
    %p85 = scmp.eq.s32.totalorder %s24, 0
    %p86 = por %p84, %p85
    %p87 = scmp.ne.s32.totalorder %s79, %s81
    %p88 = scmp.eq.s32.totalorder %s29, 1
    %p89 = por %p87, %p88
    %p90 = scmp.ne.s32.totalorder %s81, %s82
    %p91 = scmp.eq.s32.totalorder %s29, 0
    %p92 = por %p90, %p91
    %p93 = scmp.ne.s32.totalorder %s81, %s82
    %p94 = scmp.eq.s32.totalorder %s30, 1
    %p95 = por %p93, %p94
    %p97 = scmp.ne.s32.totalorder %s82, %s96
    %p98 = scmp.eq.s32.totalorder %s30, 0
    %p99 = por %p97, %p98
    %s101 = sadd.s32 %s100, 1
    %p104 = scmp.eq.s32.totalorder %s24, 1
    %p105 = scmp.ne.s32.totalorder %s100, %s102
    %p106 = scmp.eq.s32.totalorder %s24, 0
    %p107 = por %p105, %p106
    %p108 = scmp.ne.s32.totalorder %s100, %s102
    %p109 = scmp.eq.s32.totalorder %s29, 1
    %p110 = por %p108, %p109
    %p111 = scmp.ne.s32.totalorder %s102, %s103
    %p112 = scmp.eq.s32.totalorder %s29, 0
    %p113 = por %p111, %p112
    %p114 = scmp.ne.s32.totalorder %s102, %s103
    %p115 = scmp.eq.s32.totalorder %s30, 1
    %p116 = por %p114, %p115
    %p118 = scmp.ne.s32.totalorder %s103, %s117
    %p119 = scmp.eq.s32.totalorder %s30, 0
    %p120 = por %p118, %p119
    %s122 = sadd.s32 %s121, 1
    %p125 = scmp.eq.s32.totalorder %s24, 1
    %p126 = scmp.ne.s32.totalorder %s121, %s123
    %p127 = scmp.eq.s32.totalorder %s24, 0
    %p128 = por %p126, %p127
    %p129 = scmp.ne.s32.totalorder %s121, %s123
    %p130 = scmp.eq.s32.totalorder %s29, 1
    %p131 = por %p129, %p130
    %p132 = scmp.ne.s32.totalorder %s123, %s124
    %p133 = scmp.eq.s32.totalorder %s29, 0
    %p134 = por %p132, %p133
    %p135 = scmp.ne.s32.totalorder %s123, %s124
    %p136 = scmp.eq.s32.totalorder %s30, 1
    %p137 = por %p135, %p136
    %p139 = scmp.ne.s32.totalorder %s124, %s138
    %p140 = scmp.eq.s32.totalorder %s30, 0
    %p141 = por %p139, %p140
    %s143 = sadd.s32 %s142, 1
    %p146 = scmp.eq.s32.totalorder %s24, 1
    %p147 = scmp.ne.s32.totalorder %s142, %s144
    %p148 = scmp.eq.s32.totalorder %s24, 0
    %p149 = por %p147, %p148
    %p150 = scmp.ne.s32.totalorder %s142, %s144
    %p151 = scmp.eq.s32.totalorder %s29, 1
    %p152 = por %p150, %p151
    %p153 = scmp.ne.s32.totalorder %s144, %s145
    %p154 = scmp.eq.s32.totalorder %s29, 0
    %p155 = por %p153, %p154
    %p156 = scmp.ne.s32.totalorder %s144, %s145
    %p157 = scmp.eq.s32.totalorder %s30, 1
    %p158 = por %p156, %p157
    %p160 = scmp.ne.s32.totalorder %s145, %s159
    %p161 = scmp.eq.s32.totalorder %s30, 0
    %p162 = por %p160, %p161
    %s164 = sadd.s32 %s163, 1
    %p167 = scmp.eq.s32.totalorder %s24, 1
    %p168 = scmp.ne.s32.totalorder %s163, %s165
    %p169 = scmp.eq.s32.totalorder %s24, 0
    %p170 = por %p168, %p169
    %p171 = scmp.ne.s32.totalorder %s163, %s165
    %p172 = scmp.eq.s32.totalorder %s29, 1
    %p173 = por %p171, %p172
    %p174 = scmp.ne.s32.totalorder %s165, %s166
    %p175 = scmp.eq.s32.totalorder %s29, 0
    %p176 = por %p174, %p175
    %p177 = scmp.ne.s32.totalorder %s165, %s166
    %p178 = scmp.eq.s32.totalorder %s30, 1
    %p179 = por %p177, %p178
    %p181 = scmp.ne.s32.totalorder %s166, %s180
    %p182 = scmp.eq.s32.totalorder %s30, 0
    %p183 = por %p181, %p182
    %s185 = sadd.s32 %s184, 1
    %p188 = scmp.eq.s32.totalorder %s24, 1
    %p189 = scmp.ne.s32.totalorder %s184, %s186
    %p190 = scmp.eq.s32.totalorder %s24, 0
    %p191 = por %p189, %p190
    %p192 = scmp.ne.s32.totalorder %s184, %s186
    %p193 = scmp.eq.s32.totalorder %s29, 1
    %p194 = por %p192, %p193
    %p195 = scmp.ne.s32.totalorder %s186, %s187
    %p196 = scmp.eq.s32.totalorder %s29, 0
    %p197 = por %p195, %p196
    %p198 = scmp.ne.s32.totalorder %s186, %s187
    %p199 = scmp.eq.s32.totalorder %s30, 1
    %p200 = por %p198, %p199
    %p202 = scmp.ne.s32.totalorder %s187, %s201
    %p203 = scmp.eq.s32.totalorder %s30, 0
    %p204 = por %p202, %p203
    %s206 = sadd.s32 %s205, 1
    %p209 = scmp.eq.s32.totalorder %s24, 1
    %p210 = scmp.ne.s32.totalorder %s205, %s207
    %p211 = scmp.eq.s32.totalorder %s24, 0
    %p212 = por %p210, %p211
    %p213 = scmp.ne.s32.totalorder %s205, %s207
    %p214 = scmp.eq.s32.totalorder %s29, 1
    %p215 = por %p213, %p214
    %p216 = scmp.ne.s32.totalorder %s207, %s208
    %p217 = scmp.eq.s32.totalorder %s29, 0
    %p218 = por %p216, %p217
    %p219 = scmp.ne.s32.totalorder %s207, %s208
    %p220 = scmp.eq.s32.totalorder %s30, 1
    %p221 = por %p219, %p220
    %p223 = scmp.ne.s32.totalorder %s208, %s222
    %p224 = scmp.eq.s32.totalorder %s30, 0
    %p225 = por %p223, %p224
    %s227 = sadd.s32 %s226, 1
    %p230 = scmp.eq.s32.totalorder %s24, 1
    %p231 = scmp.ne.s32.totalorder %s226, %s228
    %p232 = scmp.eq.s32.totalorder %s24, 0
    %p233 = por %p231, %p232
    %p234 = scmp.ne.s32.totalorder %s226, %s228
    %p235 = scmp.eq.s32.totalorder %s29, 1
    %p236 = por %p234, %p235
    %p237 = scmp.ne.s32.totalorder %s228, %s229
    %p238 = scmp.eq.s32.totalorder %s29, 0
    %p239 = por %p237, %p238
    %p240 = scmp.ne.s32.totalorder %s228, %s229
    %p241 = scmp.eq.s32.totalorder %s30, 1
    %p242 = por %p240, %p241
    %p244 = scmp.ne.s32.totalorder %s229, %s243
    %p245 = scmp.eq.s32.totalorder %s30, 0
    %p246 = por %p244, %p245
    %s248 = sadd.s32 %s247, 1
    %p251 = scmp.eq.s32.totalorder %s24, 1
    %p252 = scmp.ne.s32.totalorder %s247, %s249
    %p253 = scmp.eq.s32.totalorder %s24, 0
    %p254 = por %p252, %p253
    %p255 = scmp.ne.s32.totalorder %s247, %s249
    %p256 = scmp.eq.s32.totalorder %s29, 1
    %p257 = por %p255, %p256
    %p258 = scmp.ne.s32.totalorder %s249, %s250
    %p259 = scmp.eq.s32.totalorder %s29, 0
    %p260 = por %p258, %p259
    %p261 = scmp.ne.s32.totalorder %s249, %s250
    %p262 = scmp.eq.s32.totalorder %s30, 1
    %p263 = por %p261, %p262
    %p265 = scmp.ne.s32.totalorder %s250, %s264
    %p266 = scmp.eq.s32.totalorder %s30, 0
    %p267 = por %p265, %p266
    %s269 = sadd.s32 %s268, 1
    %p272 = scmp.eq.s32.totalorder %s24, 1
    %p273 = scmp.ne.s32.totalorder %s268, %s270
    %p274 = scmp.eq.s32.totalorder %s24, 0
    %p275 = por %p273, %p274
    %p276 = scmp.ne.s32.totalorder %s268, %s270
    %p277 = scmp.eq.s32.totalorder %s29, 1
    %p278 = por %p276, %p277
    %p279 = scmp.ne.s32.totalorder %s270, %s271
    %p280 = scmp.eq.s32.totalorder %s29, 0
    %p281 = por %p279, %p280
    %p282 = scmp.ne.s32.totalorder %s270, %s271
    %p283 = scmp.eq.s32.totalorder %s30, 1
    %p284 = por %p282, %p283
    %p286 = scmp.ne.s32.totalorder %s271, %s285
    %p287 = scmp.eq.s32.totalorder %s30, 0
    %p288 = por %p286, %p287
    %s290 = sadd.s32 %s289, 1
    %p293 = scmp.eq.s32.totalorder %s24, 1
    %p294 = scmp.ne.s32.totalorder %s289, %s291
    %p295 = scmp.eq.s32.totalorder %s24, 0
    %p296 = por %p294, %p295
    %p297 = scmp.ne.s32.totalorder %s289, %s291
    %p298 = scmp.eq.s32.totalorder %s29, 1
    %p299 = por %p297, %p298
    %p300 = scmp.ne.s32.totalorder %s291, %s292
    %p301 = scmp.eq.s32.totalorder %s29, 0
    %p302 = por %p300, %p301
    %p303 = scmp.ne.s32.totalorder %s291, %s292
    %p304 = scmp.eq.s32.totalorder %s30, 1
    %p305 = por %p303, %p304
    %p307 = scmp.ne.s32.totalorder %s292, %s306
    %p308 = scmp.eq.s32.totalorder %s30, 0
    %p309 = por %p307, %p308
    %s310 = ssub.s32 %s24, %s31
    %p311 = scmp.eq.s32.totalorder %s310, 0
    %s313 = sadd.s32 %s312, 1
    %s314 = scalar_select %p311, %s312, %s313
    %p317 = pneg %p311
    %p318 = scmp.eq.s32.totalorder %s24, 1
    %p319 = por %p317, %p318
    %p320 = scmp.ne.s32.totalorder %s312, %s315
    %p321 = scmp.eq.s32.totalorder %s24, 0
    %p322 = por %p320, %p321
    %p323 = scmp.ne.s32.totalorder %s312, %s315
    %p324 = scmp.eq.s32.totalorder %s29, 1
    %p325 = por %p323, %p324
    %p326 = scmp.ne.s32.totalorder %s315, %s316
    %p327 = scmp.eq.s32.totalorder %s29, 0
    %p328 = por %p326, %p327
    %p329 = scmp.ne.s32.totalorder %s315, %s316
    %p330 = scmp.eq.s32.totalorder %s30, 1
    %p331 = por %p329, %p330
    %p333 = scmp.ne.s32.totalorder %s316, %s332
    %p334 = scmp.eq.s32.totalorder %s30, 0
    %p335 = por %p333, %p334
    %s336 = ssub.s32 %s24, %s31
    %p337 = scmp.eq.s32.totalorder %s336, 0
    %s339 = sadd.s32 %s338, 1
    %s340 = scalar_select %p337, %s338, %s339
    %p343 = pneg %p337
    %p344 = scmp.eq.s32.totalorder %s24, 1
    %p345 = por %p343, %p344
    %p346 = scmp.ne.s32.totalorder %s338, %s341
    %p347 = scmp.eq.s32.totalorder %s24, 0
    %p348 = por %p346, %p347
    %p349 = scmp.ne.s32.totalorder %s338, %s341
    %p350 = scmp.eq.s32.totalorder %s29, 1
    %p351 = por %p349, %p350
    %p352 = scmp.ne.s32.totalorder %s341, %s342
    %p353 = scmp.eq.s32.totalorder %s29, 0
    %p354 = por %p352, %p353
    %p355 = scmp.ne.s32.totalorder %s341, %s342
    %p356 = scmp.eq.s32.totalorder %s30, 1
    %p357 = por %p355, %p356
    %p359 = scmp.ne.s32.totalorder %s342, %s358
    %p360 = scmp.eq.s32.totalorder %s30, 0
    %p361 = por %p359, %p360
    %s362 = ssub.s32 %s24, %s31
    %p363 = scmp.eq.s32.totalorder %s362, 0
    %s365 = sadd.s32 %s364, 1
    %s366 = scalar_select %p363, %s364, %s365
    %p369 = pneg %p363
    %p370 = scmp.eq.s32.totalorder %s24, 1
    %p371 = por %p369, %p370
    %p372 = scmp.ne.s32.totalorder %s364, %s367
    %p373 = scmp.eq.s32.totalorder %s24, 0
    %p374 = por %p372, %p373
    %p375 = scmp.ne.s32.totalorder %s364, %s367
    %p376 = scmp.eq.s32.totalorder %s29, 1
    %p377 = por %p375, %p376
    %p378 = scmp.ne.s32.totalorder %s367, %s368
    %p379 = scmp.eq.s32.totalorder %s29, 0
    %p380 = por %p378, %p379
    %p381 = scmp.ne.s32.totalorder %s367, %s368
    %p382 = scmp.eq.s32.totalorder %s30, 1
    %p383 = por %p381, %p382
    %p385 = scmp.ne.s32.totalorder %s368, %s384
    %p386 = scmp.eq.s32.totalorder %s30, 0
    %p387 = por %p385, %p386
    %s388 = ssub.s32 %s24, %s31
    %p389 = scmp.eq.s32.totalorder %s388, 0
    %s391 = sadd.s32 %s390, 1
    %s392 = scalar_select %p389, %s390, %s391
    %p395 = pneg %p389
    %p396 = scmp.eq.s32.totalorder %s24, 1
    %p397 = por %p395, %p396
    %p398 = scmp.ne.s32.totalorder %s390, %s393
    %p399 = scmp.eq.s32.totalorder %s24, 0
    %p400 = por %p398, %p399
    %p401 = scmp.ne.s32.totalorder %s390, %s393
    %p402 = scmp.eq.s32.totalorder %s29, 1
    %p403 = por %p401, %p402
    %p404 = scmp.ne.s32.totalorder %s393, %s394
    %p405 = scmp.eq.s32.totalorder %s29, 0
    %p406 = por %p404, %p405
    %p407 = scmp.ne.s32.totalorder %s393, %s394
    %p408 = scmp.eq.s32.totalorder %s30, 1
    %p409 = por %p407, %p408
    %p411 = scmp.ne.s32.totalorder %s394, %s410
    %p412 = scmp.eq.s32.totalorder %s30, 0
    %p413 = por %p411, %p412
    %s414 = ssub.s32 %s24, %s31
    %p415 = scmp.eq.s32.totalorder %s414, 0
    %s417 = sadd.s32 %s416, 1
    %s418 = scalar_select %p415, %s416, %s417
    %p421 = pneg %p415
    %p422 = scmp.eq.s32.totalorder %s24, 1
    %p423 = por %p421, %p422
    %p424 = scmp.ne.s32.totalorder %s416, %s419
    %p425 = scmp.eq.s32.totalorder %s24, 0
    %p426 = por %p424, %p425
    %p427 = scmp.ne.s32.totalorder %s416, %s419
    %p428 = scmp.eq.s32.totalorder %s29, 1
    %p429 = por %p427, %p428
    %p430 = scmp.ne.s32.totalorder %s419, %s420
    %p431 = scmp.eq.s32.totalorder %s29, 0
    %p432 = por %p430, %p431
    %p433 = scmp.ne.s32.totalorder %s419, %s420
    %p434 = scmp.eq.s32.totalorder %s30, 1
    %p435 = por %p433, %p434
    %p437 = scmp.ne.s32.totalorder %s420, %s436
    %p438 = scmp.eq.s32.totalorder %s30, 0
    %p439 = por %p437, %p438
    %p440 = scmp.le.s32.totalorder 1, %s24
    %p441 = scmp.lt.s32.totalorder %s24, 3
    %p442 = pnand %p440, %p441
    %p443 = pneg %p442
    // Predicated region
    $region9: #{enhancer_forward.1} parent=5 // pred_check
      _
    $region10: #{enhancer_forward.1} parent=5 // pred_check_branch
      %445 = sbr.rel (%p442) target = $region12
    $region11: #{enhancer_forward.1} parent=5 // pred_region
      %s446 = ssub.s32 %s24, 1
      // Predicated region
      $region13: #{enhancer_forward.1} parent=11 // pred_check
        %p447 = pneg %p71
      $region14: #{enhancer_forward.1} parent=11 // pred_check_branch
        %449 = sbr.rel (%p447) target = $region16
      $region15: #{enhancer_forward.1} parent=11 // pred_region
        _
      $region16: #{enhancer_forward.1} parent=11 // pred_fallthru
        _
      // Predicated region
      $region17: #{enhancer_forward.1} parent=11 // pred_check
        %p450 = pneg %p92
      $region18: #{enhancer_forward.1} parent=11 // pred_check_branch
        %452 = sbr.rel (%p450) target = $region20
      $region19: #{enhancer_forward.1} parent=11 // pred_region
        _
      $region20: #{enhancer_forward.1} parent=11 // pred_fallthru
        _
      // Predicated region
      $region21: #{enhancer_forward.1} parent=11 // pred_check
        %p453 = pneg %p113
      $region22: #{enhancer_forward.1} parent=11 // pred_check_branch
        %455 = sbr.rel (%p453) target = $region24
      $region23: #{enhancer_forward.1} parent=11 // pred_region
        _
      $region24: #{enhancer_forward.1} parent=11 // pred_fallthru
        _
      // Predicated region
      $region25: #{enhancer_forward.1} parent=11 // pred_check
        %p456 = pneg %p134
      $region26: #{enhancer_forward.1} parent=11 // pred_check_branch
        %458 = sbr.rel (%p456) target = $region28
      $region27: #{enhancer_forward.1} parent=11 // pred_region
        _
      $region28: #{enhancer_forward.1} parent=11 // pred_fallthru
        _
      // Predicated region
      $region29: #{enhancer_forward.1} parent=11 // pred_check
        %p459 = pneg %p155
      $region30: #{enhancer_forward.1} parent=11 // pred_check_branch
        %461 = sbr.rel (%p459) target = $region32
      $region31: #{enhancer_forward.1} parent=11 // pred_region
        _
      $region32: #{enhancer_forward.1} parent=11 // pred_fallthru
        _
      // Predicated region
      $region33: #{enhancer_forward.1} parent=11 // pred_check
        %p462 = pneg %p176
      $region34: #{enhancer_forward.1} parent=11 // pred_check_branch
        %464 = sbr.rel (%p462) target = $region36
      $region35: #{enhancer_forward.1} parent=11 // pred_region
        _
      $region36: #{enhancer_forward.1} parent=11 // pred_fallthru
        _
      // Predicated region
      $region37: #{enhancer_forward.1} parent=11 // pred_check
        %p465 = pneg %p197
      $region38: #{enhancer_forward.1} parent=11 // pred_check_branch
        %467 = sbr.rel (%p465) target = $region40
      $region39: #{enhancer_forward.1} parent=11 // pred_region
        _
      $region40: #{enhancer_forward.1} parent=11 // pred_fallthru
        _
      // Predicated region
      $region41: #{enhancer_forward.1} parent=11 // pred_check
        %p468 = pneg %p218
      $region42: #{enhancer_forward.1} parent=11 // pred_check_branch
        %470 = sbr.rel (%p468) target = $region44
      $region43: #{enhancer_forward.1} parent=11 // pred_region
        _
      $region44: #{enhancer_forward.1} parent=11 // pred_fallthru
        _
      // Predicated region
      $region45: #{enhancer_forward.1} parent=11 // pred_check
        %p471 = pneg %p239
      $region46: #{enhancer_forward.1} parent=11 // pred_check_branch
        %473 = sbr.rel (%p471) target = $region48
      $region47: #{enhancer_forward.1} parent=11 // pred_region
        _
      $region48: #{enhancer_forward.1} parent=11 // pred_fallthru
        _
      // Predicated region
      $region49: #{enhancer_forward.1} parent=11 // pred_check
        %p474 = pneg %p260
      $region50: #{enhancer_forward.1} parent=11 // pred_check_branch
        %476 = sbr.rel (%p474) target = $region52
      $region51: #{enhancer_forward.1} parent=11 // pred_region
        _
      $region52: #{enhancer_forward.1} parent=11 // pred_fallthru
        _
      // Predicated region
      $region53: #{enhancer_forward.1} parent=11 // pred_check
        %p477 = pneg %p281
      $region54: #{enhancer_forward.1} parent=11 // pred_check_branch
        %479 = sbr.rel (%p477) target = $region56
      $region55: #{enhancer_forward.1} parent=11 // pred_region
        _
      $region56: #{enhancer_forward.1} parent=11 // pred_fallthru
        _
      // Predicated region
      $region57: #{enhancer_forward.1} parent=11 // pred_check
        %p480 = pneg %p302
      $region58: #{enhancer_forward.1} parent=11 // pred_check_branch
        %482 = sbr.rel (%p480) target = $region60
      $region59: #{enhancer_forward.1} parent=11 // pred_region
        _
      $region60: #{enhancer_forward.1} parent=11 // pred_fallthru
        _
    $region12: #{enhancer_forward.1} parent=5 // pred_fallthru
      _
    %p483 = scmp.lt.s32.totalorder %s24, 2
    // Predicated region
    $region61: #{enhancer_forward.1} parent=5 // pred_check
      %p484 = pneg %p483
    $region62: #{enhancer_forward.1} parent=5 // pred_check_branch
      %486 = sbr.rel (%p484) target = $region64
    $region63: #{enhancer_forward.1} parent=5 // pred_region
      // Predicated region
      $region65: #{enhancer_forward.1} parent=63 // pred_check
        %p487 = pneg %p44
      $region66: #{enhancer_forward.1} parent=63 // pred_check_branch
        %489 = sbr.rel (%p487) target = $region68
      $region67: #{enhancer_forward.1} parent=63 // pred_region
        %p490 = scmp.lt.s32.totalorder %s24, 1
        %s491 = scalar_select %p490, %s24, 1
        %s492 = smul.addr %s491, 2
        %s493 = smul.addr %s492, 8
        %s494 = scalar_lea.vmem %s0, %s493
      $region68: #{enhancer_forward.1} parent=63 // pred_fallthru
        _
    $region64: #{enhancer_forward.1} parent=5 // pred_fallthru
      _
    %p495 = scmp.le.s32.totalorder 1, %s24
    %p496 = scmp.lt.s32.totalorder %s24, 3
    %p497 = pnand %p495, %p496
    %p498 = pneg %p497
    // Predicated region
    $region69: #{enhancer_forward.1} parent=5 // pred_check
      _
    $region70: #{enhancer_forward.1} parent=5 // pred_check_branch
      %500 = sbr.rel (%p497) target = $region72
    $region71: #{enhancer_forward.1} parent=5 // pred_region
      %s501 = ssub.s32 %s24, 1
      %p502 = scmp.lt.s32.totalorder %s29, 1
      %s503 = scalar_select %p502, %s29, 1
      %s504 = smul.addr %s503, 2
      %s505 = smul.addr %s504, 8
      %s506 = scalar_lea.vmem %s0, %s505
      %p507 = pneg %p50
      %p508 = pneg %p47
      %p509 = pneg %p71
      %p510 = pneg %p68
      %p511 = pneg %p92
      %p512 = pneg %p89
      %p513 = pneg %p113
      %p514 = pneg %p110
      %p515 = pneg %p134
      %p516 = pneg %p131
      %p517 = pneg %p155
      %p518 = pneg %p152
      %p519 = pneg %p176
      %p520 = pneg %p173
      %p521 = pneg %p197
      %p522 = pneg %p194
      %p523 = pneg %p218
      %p524 = pneg %p215
      %p525 = pneg %p239
      %p526 = pneg %p236
      %p527 = pneg %p260
      %p528 = pneg %p257
      %p529 = pneg %p281
      %p530 = pneg %p278
      %p531 = pneg %p302
      %p532 = pneg %p299
      %p533 = pneg %p328
      %p534 = pneg %p325
      %p535 = scmp.lt.s32.totalorder %s29, 1
      %s536 = scalar_select %p535, %s29, 1
      %s537 = smul.addr %s536, 2
      %s538 = smul.addr %s537, 4
      %s539 = scalar_lea.vmem %s13, %s538
      %p540 = pneg %p354
      %p541 = pneg %p351
      %p542 = scmp.lt.s32.totalorder %s29, 1
      %s543 = scalar_select %p542, %s29, 1
      %s544 = smul.addr %s543, 2
      %s545 = smul.addr %s544, 8
      %s546 = scalar_lea.vmem %s14, %s545
      %p547 = pneg %p380
      %p548 = pneg %p377
      %p549 = scmp.lt.s32.totalorder %s29, 1
      %s550 = scalar_select %p549, %s29, 1
      %s551 = smul.addr %s550, 2
      %s552 = smul.addr %s551, 8
      %s553 = scalar_lea.vmem %s15, %s552
      %p554 = pneg %p406
      %p555 = pneg %p403
      %p556 = scmp.lt.s32.totalorder %s29, 1
      %s557 = scalar_select %p556, %s29, 1
      %s558 = smul.addr %s557, 8
      %s559 = smul.addr %s558, 8
      %s560 = scalar_lea.vmem %s16, %s559
      %p561 = pneg %p432
      %p562 = pneg %p429
      %p563 = scmp.lt.s32.totalorder %s29, 1
      %s564 = scalar_select %p563, %s29, 1
      %s565 = smul.addr %s564, 8
      %s566 = smul.addr %s565, 8
      %s567 = scalar_lea.vmem %s17, %s566
      %p568 = scmp.lt.s32.totalorder %s29, 1
      %s569 = scalar_select %p568, %s29, 1
      %s570 = smul.addr %s569, 2
      %s571 = smul.addr %s570, 8
      %s572 = scalar_lea.vmem %s0, %s571
      %p573 = scmp.lt.s32.totalorder %s29, 1
      %s574 = scalar_select %p573, %s29, 1
      %s575 = smul.addr %s574, 2
      %s576 = smul.addr %s575, 4
      %s577 = scalar_lea.vmem %s13, %s576
      %p578 = scmp.lt.s32.totalorder %s29, 1
      %s579 = scalar_select %p578, %s29, 1
      %s580 = smul.addr %s579, 2
      %s581 = smul.addr %s580, 8
      %s582 = scalar_lea.vmem %s14, %s581
      %p583 = scmp.lt.s32.totalorder %s29, 1
      %s584 = scalar_select %p583, %s29, 1
      %s585 = smul.addr %s584, 2
      %s586 = smul.addr %s585, 8
      %s587 = scalar_lea.vmem %s15, %s586
      %p588 = scmp.lt.s32.totalorder %s29, 1
      %s589 = scalar_select %p588, %s29, 1
      %s590 = smul.addr %s589, 8
      %s591 = smul.addr %s590, 8
      %s592 = scalar_lea.vmem %s16, %s591
      %p593 = scmp.lt.s32.totalorder %s29, 1
      %s594 = scalar_select %p593, %s29, 1
      %s595 = smul.addr %s594, 8
      %s596 = smul.addr %s595, 8
      %s597 = scalar_lea.vmem %s17, %s596
      %v599 = vld [vmem:[%s1] sm:$0xff]
      %v600 = vld [vmem:[%s1 + $0x8] sm:$0xff]
      %v601 = vld [vmem:[%s1 + $0x10] sm:$0x1]
      %v602 = vld [vmem:[%s1 + $0x18] sm:$0x1]
      %v603 = vld [vmem:[%s572] sm:$0xff]
      %v604 = vld [vmem:[%s572 + $0x8] sm:$0xff]
      %605 = vrot.lane.b32.xlu0 %v603, 17
      %v606 = vpop.permute.xlu0 %605
      %607 = vrot.lane.b32.xlu0 %v604, 17
      %v608 = vpop.permute.xlu0 %607
      %v609 = vlaneseq
      %v610 = vand.u32 %v609, 127
      %vm611 = vcmp.lt.s32.totalorder %v610, 17
      %v612 = vsel %vm611, %v606, %v608
      %v613 = vsel %vm611, %v608, %v606
      %v614 = vlaneseq
      %v615 = vshrl.u32 %v614, 7
      %v616 = vsub.s32 0, %v615
      %v617 = vrot.slane %v599, %v616
      %v618 = vlaneseq
      %v619 = vshrl.u32 %v618, 7
      %v620 = vsub.s32 0, %v619
      %v621 = vrot.slane %v600, %v620
      %v622 = vmul.f32 %v613, %v617
      %v623 = vmul.f32 %v612, %v621
      %624 = vrot.lane.b32.xlu0 %v603, 16
      %v625 = vpop.permute.xlu0 %624
      %626 = vrot.lane.b32.xlu0 %v604, 16
      %v627 = vpop.permute.xlu0 %626
      %vm628 = vcmp.lt.s32.totalorder %v610, 16
      %v629 = vsel %vm628, %v625, %v627
      %v630 = vsel %vm628, %v627, %v625
      %v631 = vlaneseq
      %v632 = vshrl.u32 %v631, 7
      %v633 = vsub.s32 1, %v632
      %v634 = vrot.slane %v599, %v633
      %v635 = vlaneseq
      %v636 = vshrl.u32 %v635, 7
      %v637 = vsub.s32 1, %v636
      %v638 = vrot.slane %v600, %v637
      %v639 = vmul.f32 %v630, %v634
      %v640 = vmul.f32 %v629, %v638
      %641 = vrot.lane.b32.xlu0 %v603, 15
      %v642 = vpop.permute.xlu0 %641
      %643 = vrot.lane.b32.xlu0 %v604, 15
      %v644 = vpop.permute.xlu0 %643
      %vm645 = vcmp.lt.s32.totalorder %v610, 15
      %v646 = vsel %vm645, %v642, %v644
      %v647 = vsel %vm645, %v644, %v642
      %v648 = vlaneseq
      %v649 = vshrl.u32 %v648, 7
      %v650 = vsub.s32 2, %v649
      %v651 = vrot.slane %v599, %v650
      %v652 = vlaneseq
      %v653 = vshrl.u32 %v652, 7
      %v654 = vsub.s32 2, %v653
      %v655 = vrot.slane %v600, %v654
      %v656 = vmul.f32 %v647, %v651
      %v657 = vmul.f32 %v646, %v655
      %658 = vrot.lane.b32.xlu0 %v603, 1
      %v659 = vpop.permute.xlu0 %658
      %660 = vrot.lane.b32.xlu0 %v604, 1
      %v661 = vpop.permute.xlu0 %660
      %vm662 = vcmp.lt.s32.totalorder %v610, 1
      %v663 = vsel %vm662, %v659, %v661
      %v664 = vsel %vm662, %v661, %v659
      %v665 = vlaneseq
      %v666 = vshrl.u32 %v665, 7
      %v667 = vsub.s32 3, %v666
      %v668 = vrot.slane %v599, %v667
      %v669 = vlaneseq
      %v670 = vshrl.u32 %v669, 7
      %v671 = vsub.s32 3, %v670
      %v672 = vrot.slane %v600, %v671
      %v673 = vmul.f32 %v664, %v668
      %v674 = vmul.f32 %v663, %v672
      %675 = vrot.lane.b32.xlu0 %v603, 127
      %v676 = vpop.permute.xlu0 %675
      %677 = vrot.lane.b32.xlu0 %v604, 127
      %v678 = vpop.permute.xlu0 %677
      %vm679 = vcmp.lt.s32.totalorder %v610, 127
      %v680 = vsel %vm679, %v676, %v678
      %v681 = vsel %vm679, %v678, %v676
      %v682 = vlaneseq
      %v683 = vshrl.u32 %v682, 7
      %v684 = vsub.s32 5, %v683
      %v685 = vrot.slane %v599, %v684
      %v686 = vlaneseq
      %v687 = vshrl.u32 %v686, 7
      %v688 = vsub.s32 5, %v687
      %v689 = vrot.slane %v600, %v688
      %v690 = vmul.f32 %v680, %v685
      %v691 = vmul.f32 %v681, %v689
      %692 = vrot.lane.b32.xlu0 %v603, 113
      %v693 = vpop.permute.xlu0 %692
      %694 = vrot.lane.b32.xlu0 %v604, 113
      %v695 = vpop.permute.xlu0 %694
      %vm696 = vcmp.lt.s32.totalorder %v610, 113
      %v697 = vsel %vm696, %v693, %v695
      %v698 = vsel %vm696, %v695, %v693
      %v699 = vlaneseq
      %v700 = vshrl.u32 %v699, 7
      %v701 = vsub.s32 6, %v700
      %v702 = vrot.slane %v599, %v701
      %v703 = vlaneseq
      %v704 = vshrl.u32 %v703, 7
      %v705 = vsub.s32 6, %v704
      %v706 = vrot.slane %v600, %v705
      %v707 = vmul.f32 %v697, %v702
      %v708 = vmul.f32 %v698, %v706
      %709 = vrot.lane.b32.xlu0 %v603, 112
      %v710 = vpop.permute.xlu0 %709
      %711 = vrot.lane.b32.xlu0 %v604, 112
      %v712 = vpop.permute.xlu0 %711
      %vm713 = vcmp.lt.s32.totalorder %v610, 112
      %v714 = vsel %vm713, %v710, %v712
      %v715 = vsel %vm713, %v712, %v710
      %v716 = vlaneseq
      %v717 = vshrl.u32 %v716, 7
      %v718 = vsub.s32 7, %v717
      %v719 = vrot.slane %v599, %v718
      %v720 = vlaneseq
      %v721 = vshrl.u32 %v720, 7
      %v722 = vsub.s32 7, %v721
      %v723 = vrot.slane %v600, %v722
      %v724 = vmul.f32 %v714, %v719
      %v725 = vmul.f32 %v715, %v723
      %726 = vrot.lane.b32.xlu0 %v603, 111
      %v727 = vpop.permute.xlu0 %726
      %728 = vrot.lane.b32.xlu0 %v604, 111
      %v729 = vpop.permute.xlu0 %728
      %vm730 = vcmp.lt.s32.totalorder %v610, 111
      %v731 = vsel %vm730, %v727, %v729
      %v732 = vsel %vm730, %v729, %v727
      %v733 = vlaneseq
      %v734 = vshrl.u32 %v733, 7
      %v735 = vsub.s32 0, %v734
      %v736 = vrot.slane %v601, %v735
      %v737 = vlaneseq
      %v738 = vshrl.u32 %v737, 7
      %v739 = vsub.s32 0, %v738
      %v740 = vrot.slane %v602, %v739
      %v741 = vmul.f32 %v731, %v736
      %v742 = vmul.f32 %v732, %v740
      %v743 = vpack.c.bf16 %v639, %v622
      %v744 = vpack.c.bf16 %v640, %v623
      %v745 = vpack.c.bf16 %v673, %v656
      %v746 = vpack.c.bf16 %v674, %v657
      %v747 = vpack.c.bf16 %v690, %v603
      %v748 = vpack.c.bf16 %v691, %v604
      %v749 = vpack.c.bf16 %v724, %v707
      %v750 = vpack.c.bf16 %v725, %v708
      %v751 = vpack.c.bf16 %v741, %v741
      %v752 = vpack.c.bf16 %v742, %v742
      %v753 = vld [vmem:[%s2] sm:$0xf]
      %v754 = vld [vmem:[%s2 + $0x4] sm:$0xf]
      %v755 = vld [vmem:[%s2 + $0x8] sm:$0xf]
      %v756 = vld [vmem:[%s2 + $0xc] sm:$0xf]
      %v757 = vld [vmem:[%s2 + $0x10] sm:$0xf]
      %v758 = vld [vmem:[%s2 + $0x14] sm:$0xf]
      %v759 = vld [vmem:[%s2 + $0x18] sm:$0xf]
      %v760 = vld [vmem:[%s2 + $0x1c] sm:$0xf]
      %v761 = vld [vmem:[%s3] sm:$0xff]
      %v762 = vld [vmem:[%s3 + $0x8] sm:$0xff]
      %v763 = vld [vmem:[%s3 + $0x10] sm:$0xff]
      %v764 = vld [vmem:[%s3 + $0x18] sm:$0xff]
      %v765 = vld [vmem:[%s3 + $0x20] sm:$0xff]
      %v766 = vld [vmem:[%s3 + $0x28] sm:$0xff]
      %v767 = vld [vmem:[%s3 + $0x30] sm:$0xff]
      %v768 = vld [vmem:[%s3 + $0x38] sm:$0xff]
      %770 = vset.pattern.permute.xlu0 0
      %771 = vperm.xlu0 %770, %v761
      %v772 = vpop.permute.xlu0 %771
      %775 = vset.pattern.permute.xlu0 0
      %776 = vperm.xlu0 %775, %v762
      %v777 = vpop.permute.xlu0 %776
      %780 = vset.pattern.permute.xlu0 0
      %781 = vperm.xlu0 %780, %v763
      %v782 = vpop.permute.xlu0 %781
      %785 = vset.pattern.permute.xlu0 0
      %786 = vperm.xlu0 %785, %v764
      %v787 = vpop.permute.xlu0 %786
      %790 = vset.pattern.permute.xlu0 0
      %791 = vperm.xlu0 %790, %v765
      %v792 = vpop.permute.xlu0 %791
      %795 = vset.pattern.permute.xlu0 0
      %796 = vperm.xlu0 %795, %v766
      %v797 = vpop.permute.xlu0 %796
      %800 = vset.pattern.permute.xlu0 0
      %801 = vperm.xlu0 %800, %v767
      %v802 = vpop.permute.xlu0 %801
      %805 = vset.pattern.permute.xlu0 0
      %806 = vperm.xlu0 %805, %v768
      %v807 = vpop.permute.xlu0 %806
      %v817 = vunpack.c.l.b16 %v753
      %v818 = vunpack.c.l.b16 %v754
      %v819 = vunpack.c.l.b16 %v755
      %v820 = vunpack.c.l.b16 %v756
      %v821 = vunpack.c.l.b16 %v757
      %v822 = vunpack.c.l.b16 %v758
      %v823 = vunpack.c.l.b16 %v759
      %v824 = vunpack.c.l.b16 %v760
      %v825 = vpack.c.b16 %v818, %v817
      %v826 = vpack.c.b16 %v820, %v819
      %v827 = vpack.c.b16 %v822, %v821
      %v828 = vpack.c.b16 %v824, %v823
      %vm829 = vcmask 588800
      %v831 = vsel %vm829, %v825, 0
      %v834 = vsel %vm829, %v826, 0
      %v837 = vsel %vm829, %v827, 0
      %v840 = vsel %vm829, %v828, 0
      %vm842 = vcmask 1043456
      %v844 = vsel %vm842, %v751, 0
      %v847 = vsel %vm842, %v752, 0
      %849 = vmatprep.subr.bf16.mxu0 %v744
      %850 = vmatpush1.bf16.msra.mxu0 %v743
      %851 = vmatprep.subr.bf16.mxu0 %v746
      %852 = vmatpush1.bf16.msra.mxu0 %v745
      %853 = vmatprep.subr.bf16.mxu0 %v748
      %854 = vmatpush1.bf16.msra.mxu0 %v747
      %855 = vmatprep.subr.bf16.mxu0 %v750
      %856 = vmatpush1.bf16.msra.mxu0 %v749
      %857 = vmatprep.subr.bf16.mxu0 %v847
      %858 = vmatpush1.bf16.msra.mxu0 %v844
      %859 = vmatprep.subr.bf16.mxu0 0
      %860 = vmatpush1.bf16.msra.mxu0 0
      %861 = vmatprep.subr.bf16.mxu0 0
      %862 = vmatpush1.bf16.msra.mxu0 0
      %863 = vmatprep.subr.bf16.mxu0 0
      %864 = vmatpush1.bf16.msra.mxu0 0
      %865 = vmatprep.subr.bf16.mxu0 0
      %866 = vmatpush1.bf16.msra.mxu0 0
      %867 = vmatprep.subr.bf16.mxu0 0
      %868 = vmatpush1.bf16.msra.mxu0 0
      %869 = vmatprep.subr.bf16.mxu0 0
      %870 = vmatpush1.bf16.msra.mxu0 0
      %871 = vmatprep.subr.bf16.mxu0 0
      %872 = vmatpush1.bf16.msra.mxu0 0
      %873 = vmatprep.subr.bf16.mxu0 0
      %874 = vmatpush1.bf16.msra.mxu0 0
      %875 = vmatprep.subr.bf16.mxu0 0
      %876 = vmatpush1.bf16.msra.mxu0 0
      %877 = vmatprep.subr.bf16.mxu0 0
      %878 = vmatpush1.bf16.msra.mxu0 0
      %879 = vmatprep.subr.bf16.mxu0 0
      %880 = vmatpush1.bf16.msra.mxu0 0
      %881 = vmatprep.mubr.bf16.mxu0 0
      %882 = vmatmul.mubr.bf16.gmra.mrb[0].mxu0 %v831
      %v883 = vpop.f32.mrb[0].mxu0
      %v884 = vadd.f32 %v772, %v883
      %v885 = vpop.f32.mrb[0].mxu0
      %v886 = vadd.f32 %v772, %v885
      %v887 = vpop.f32.mrb[0].mxu0
      %v888 = vadd.f32 %v777, %v887
      %v889 = vpop.f32.mrb[0].mxu0
      %v890 = vadd.f32 %v777, %v889
      %891 = vmatprep.mubr.bf16.mxu0 0
      %892 = vmatmul.mubr.bf16.gmra.mrb[0].mxu0 %v834
      %v893 = vpop.f32.mrb[0].mxu0
      %v894 = vadd.f32 %v782, %v893
      %v895 = vpop.f32.mrb[0].mxu0
      %v896 = vadd.f32 %v782, %v895
      %v897 = vpop.f32.mrb[0].mxu0
      %v898 = vadd.f32 %v787, %v897
      %v899 = vpop.f32.mrb[0].mxu0
      %v900 = vadd.f32 %v787, %v899
      %901 = vmatprep.mubr.bf16.mxu0 0
      %902 = vmatmul.mubr.bf16.gmra.mrb[0].mxu0 %v837
      %v903 = vpop.f32.mrb[0].mxu0
      %v904 = vadd.f32 %v792, %v903
      %v905 = vpop.f32.mrb[0].mxu0
      %v906 = vadd.f32 %v792, %v905
      %v907 = vpop.f32.mrb[0].mxu0
      %v908 = vadd.f32 %v797, %v907
      %v909 = vpop.f32.mrb[0].mxu0
      %v910 = vadd.f32 %v797, %v909
      %911 = vmatprep.mubr.bf16.mxu0 0
      %912 = vmatmul.mubr.bf16.gmra.mrb[0].mxu0 %v840
      %v913 = vpop.f32.mrb[0].mxu0
      %v914 = vadd.f32 %v802, %v913
      %v915 = vpop.f32.mrb[0].mxu0
      %v916 = vadd.f32 %v802, %v915
      %v917 = vpop.f32.mrb[0].mxu0
      %v918 = vadd.f32 %v807, %v917
      %v919 = vpop.f32.mrb[0].mxu0
      %v920 = vadd.f32 %v807, %v919
      %921 = vdwg.mxu0
      %v922 = vmax.f32 %v884, 0.0
      %v923 = vmax.f32 %v886, 0.0
      %v924 = vmax.f32 %v888, 0.0
      %v925 = vmax.f32 %v890, 0.0
      %v926 = vmax.f32 %v894, 0.0
      %v927 = vmax.f32 %v896, 0.0
      %v928 = vmax.f32 %v898, 0.0
      %v929 = vmax.f32 %v900, 0.0
      %v930 = vmax.f32 %v904, 0.0
      %v931 = vmax.f32 %v906, 0.0
      %v932 = vmax.f32 %v908, 0.0
      %v933 = vmax.f32 %v910, 0.0
      %v934 = vmax.f32 %v914, 0.0
      %v935 = vmax.f32 %v916, 0.0
      %v936 = vmax.f32 %v918, 0.0
      %v937 = vmax.f32 %v920, 0.0
      %v938 = vadd.f32 %v930, %v922
      %v939 = vadd.f32 %v931, %v923
      %v940 = vadd.f32 %v932, %v924
      %v941 = vadd.f32 %v933, %v925
      %v942 = vadd.f32 %v934, %v926
      %v943 = vadd.f32 %v935, %v927
      %v944 = vadd.f32 %v936, %v928
      %v945 = vadd.f32 %v937, %v929
      %946 = vrot.lane.b32.xlu0 %v930, 17
      %v947 = vpop.permute.xlu0 %946
      %948 = vrot.lane.b32.xlu0 %v932, 17
      %v949 = vpop.permute.xlu0 %948
      %950 = vrot.lane.b32.xlu0 %v934, 17
      %v951 = vpop.permute.xlu0 %950
      %952 = vrot.lane.b32.xlu0 %v936, 17
      %v953 = vpop.permute.xlu0 %952
      %954 = vrot.lane.b32.xlu0 %v931, 17
      %v955 = vpop.permute.xlu0 %954
      %956 = vrot.lane.b32.xlu0 %v933, 17
      %v957 = vpop.permute.xlu0 %956
      %958 = vrot.lane.b32.xlu0 %v935, 17
      %v959 = vpop.permute.xlu0 %958
      %960 = vrot.lane.b32.xlu0 %v937, 17
      %v961 = vpop.permute.xlu0 %960
      %v962 = vsel %vm611, %v947, %v955
      %v963 = vsel %vm611, %v949, %v957
      %v964 = vsel %vm611, %v951, %v959
      %v965 = vsel %vm611, %v953, %v961
      %v966 = vsel %vm611, %v955, %v947
      %v967 = vsel %vm611, %v957, %v949
      %v968 = vsel %vm611, %v959, %v951
      %v969 = vsel %vm611, %v961, %v953
      %v970 = vmul.f32 %v966, %v617
      %v971 = vmul.f32 %v962, %v621
      %v972 = vmul.f32 %v967, %v617
      %v973 = vmul.f32 %v963, %v621
      %v974 = vmul.f32 %v968, %v617
      %v975 = vmul.f32 %v964, %v621
      %v976 = vmul.f32 %v969, %v617
      %v977 = vmul.f32 %v965, %v621
      %v978 = vpack.c.bf16 %v972, %v970
      %v979 = vpack.c.bf16 %v973, %v971
      %v980 = vpack.c.bf16 %v976, %v974
      %v981 = vpack.c.bf16 %v977, %v975
      %982 = vst [vmem:[#allocation2] sm:$0xff] %v978
      %983 = vst [vmem:[#allocation2 + $0x8] sm:$0xff] %v979
      %984 = vst [vmem:[#allocation2 + $0x10] sm:$0xff] %v980
      %985 = vst [vmem:[#allocation2 + $0x18] sm:$0xff] %v981
      %986 = vrot.lane.b32.xlu0 %v930, 16
      %v987 = vpop.permute.xlu0 %986
      %988 = vrot.lane.b32.xlu0 %v932, 16
      %v989 = vpop.permute.xlu0 %988
      %990 = vrot.lane.b32.xlu0 %v934, 16
      %v991 = vpop.permute.xlu0 %990
      %992 = vrot.lane.b32.xlu0 %v936, 16
      %v993 = vpop.permute.xlu0 %992
      %994 = vrot.lane.b32.xlu0 %v931, 16
      %v995 = vpop.permute.xlu0 %994
      %996 = vrot.lane.b32.xlu0 %v933, 16
      %v997 = vpop.permute.xlu0 %996
      %998 = vrot.lane.b32.xlu0 %v935, 16
      %v999 = vpop.permute.xlu0 %998
      %1000 = vrot.lane.b32.xlu0 %v937, 16
      %v1001 = vpop.permute.xlu0 %1000
      %v1002 = vsel %vm628, %v987, %v995
      %v1003 = vsel %vm628, %v989, %v997
      %v1004 = vsel %vm628, %v991, %v999
      %v1005 = vsel %vm628, %v993, %v1001
      %v1006 = vsel %vm628, %v995, %v987
      %v1007 = vsel %vm628, %v997, %v989
      %v1008 = vsel %vm628, %v999, %v991
      %v1009 = vsel %vm628, %v1001, %v993
      %v1010 = vmul.f32 %v1006, %v634
      %v1011 = vmul.f32 %v1002, %v638
      %v1012 = vmul.f32 %v1007, %v634
      %v1013 = vmul.f32 %v1003, %v638
      %v1014 = vmul.f32 %v1008, %v634
      %v1015 = vmul.f32 %v1004, %v638
      %v1016 = vmul.f32 %v1009, %v634
      %v1017 = vmul.f32 %v1005, %v638
      %v1018 = vpack.c.bf16 %v1012, %v1010
      %v1019 = vpack.c.bf16 %v1013, %v1011
      %v1020 = vpack.c.bf16 %v1016, %v1014
      %v1021 = vpack.c.bf16 %v1017, %v1015
      %1022 = vst [vmem:[#allocation2 + $0x20] sm:$0xff] %v1018
      %1023 = vst [vmem:[#allocation2 + $0x28] sm:$0xff] %v1019
      %1024 = vst [vmem:[#allocation2 + $0x30] sm:$0xff] %v1020
      %1025 = vst [vmem:[#allocation2 + $0x38] sm:$0xff] %v1021
      %1026 = vrot.lane.b32.xlu0 %v930, 15
      %v1027 = vpop.permute.xlu0 %1026
      %1028 = vrot.lane.b32.xlu0 %v932, 15
      %v1029 = vpop.permute.xlu0 %1028
      %1030 = vrot.lane.b32.xlu0 %v934, 15
      %v1031 = vpop.permute.xlu0 %1030
      %1032 = vrot.lane.b32.xlu0 %v936, 15
      %v1033 = vpop.permute.xlu0 %1032
      %1034 = vrot.lane.b32.xlu0 %v931, 15
      %v1035 = vpop.permute.xlu0 %1034
      %1036 = vrot.lane.b32.xlu0 %v933, 15
      %v1037 = vpop.permute.xlu0 %1036
      %1038 = vrot.lane.b32.xlu0 %v935, 15
      %v1039 = vpop.permute.xlu0 %1038
      %1040 = vrot.lane.b32.xlu0 %v937, 15
      %v1041 = vpop.permute.xlu0 %1040
      %v1042 = vsel %vm645, %v1027, %v1035
      %v1043 = vsel %vm645, %v1029, %v1037
      %v1044 = vsel %vm645, %v1031, %v1039
      %v1045 = vsel %vm645, %v1033, %v1041
      %v1046 = vsel %vm645, %v1035, %v1027
      %v1047 = vsel %vm645, %v1037, %v1029
      %v1048 = vsel %vm645, %v1039, %v1031
      %v1049 = vsel %vm645, %v1041, %v1033
      %v1050 = vmul.f32 %v1046, %v651
      %v1051 = vmul.f32 %v1042, %v655
      %v1052 = vmul.f32 %v1047, %v651
      %v1053 = vmul.f32 %v1043, %v655
      %v1054 = vmul.f32 %v1048, %v651
      %v1055 = vmul.f32 %v1044, %v655
      %v1056 = vmul.f32 %v1049, %v651
      %v1057 = vmul.f32 %v1045, %v655
      %v1058 = vpack.c.bf16 %v1052, %v1050
      %v1059 = vpack.c.bf16 %v1053, %v1051
      %v1060 = vpack.c.bf16 %v1056, %v1054
      %v1061 = vpack.c.bf16 %v1057, %v1055
      %1062 = vst [vmem:[#allocation2 + $0x40] sm:$0xff] %v1058
      %1063 = vst [vmem:[#allocation2 + $0x48] sm:$0xff] %v1059
      %1064 = vst [vmem:[#allocation2 + $0x50] sm:$0xff] %v1060
      %1065 = vst [vmem:[#allocation2 + $0x58] sm:$0xff] %v1061
      %1066 = vrot.lane.b32.xlu0 %v930, 1
      %v1067 = vpop.permute.xlu0 %1066
      %1068 = vrot.lane.b32.xlu0 %v932, 1
      %v1069 = vpop.permute.xlu0 %1068
      %1070 = vrot.lane.b32.xlu0 %v934, 1
      %v1071 = vpop.permute.xlu0 %1070
      %1072 = vrot.lane.b32.xlu0 %v936, 1
      %v1073 = vpop.permute.xlu0 %1072
      %1074 = vrot.lane.b32.xlu0 %v931, 1
      %v1075 = vpop.permute.xlu0 %1074
      %1076 = vrot.lane.b32.xlu0 %v933, 1
      %v1077 = vpop.permute.xlu0 %1076
      %1078 = vrot.lane.b32.xlu0 %v935, 1
      %v1079 = vpop.permute.xlu0 %1078
      %1080 = vrot.lane.b32.xlu0 %v937, 1
      %v1081 = vpop.permute.xlu0 %1080
      %v1082 = vsel %vm662, %v1067, %v1075
      %v1083 = vsel %vm662, %v1069, %v1077
      %v1084 = vsel %vm662, %v1071, %v1079
      %v1085 = vsel %vm662, %v1073, %v1081
      %v1086 = vsel %vm662, %v1075, %v1067
      %v1087 = vsel %vm662, %v1077, %v1069
      %v1088 = vsel %vm662, %v1079, %v1071
      %v1089 = vsel %vm662, %v1081, %v1073
      %v1090 = vmul.f32 %v1086, %v668
      %v1091 = vmul.f32 %v1082, %v672
      %v1092 = vmul.f32 %v1087, %v668
      %v1093 = vmul.f32 %v1083, %v672
      %v1094 = vmul.f32 %v1088, %v668
      %v1095 = vmul.f32 %v1084, %v672
      %v1096 = vmul.f32 %v1089, %v668
      %v1097 = vmul.f32 %v1085, %v672
      %v1098 = vpack.c.bf16 %v1092, %v1090
      %v1099 = vpack.c.bf16 %v1093, %v1091
      %v1100 = vpack.c.bf16 %v1096, %v1094
      %v1101 = vpack.c.bf16 %v1097, %v1095
      %1102 = vst [vmem:[#allocation2 + $0x60] sm:$0xff] %v1098
      %1103 = vst [vmem:[#allocation2 + $0x68] sm:$0xff] %v1099
      %1104 = vst [vmem:[#allocation2 + $0x70] sm:$0xff] %v1100
      %1105 = vst [vmem:[#allocation2 + $0x78] sm:$0xff] %v1101
      %v1106 = vpack.c.bf16 %v932, %v930
      %v1107 = vpack.c.bf16 %v933, %v931
      %v1108 = vpack.c.bf16 %v936, %v934
      %v1109 = vpack.c.bf16 %v937, %v935
      %1110 = vst [vmem:[#allocation2 + $0x80] sm:$0xff] %v1106
      %1111 = vst [vmem:[#allocation2 + $0x88] sm:$0xff] %v1107
      %1112 = vst [vmem:[#allocation2 + $0x90] sm:$0xff] %v1108
      %1113 = vst [vmem:[#allocation2 + $0x98] sm:$0xff] %v1109
      %1114 = vrot.lane.b32.xlu0 %v930, 127
      %v1115 = vpop.permute.xlu0 %1114
      %1116 = vrot.lane.b32.xlu0 %v932, 127
      %v1117 = vpop.permute.xlu0 %1116
      %1118 = vrot.lane.b32.xlu0 %v934, 127
      %v1119 = vpop.permute.xlu0 %1118
      %1120 = vrot.lane.b32.xlu0 %v936, 127
      %v1121 = vpop.permute.xlu0 %1120
      %1122 = vrot.lane.b32.xlu0 %v931, 127
      %v1123 = vpop.permute.xlu0 %1122
      %1124 = vrot.lane.b32.xlu0 %v933, 127
      %v1125 = vpop.permute.xlu0 %1124
      %1126 = vrot.lane.b32.xlu0 %v935, 127
      %v1127 = vpop.permute.xlu0 %1126
      %1128 = vrot.lane.b32.xlu0 %v937, 127
      %v1129 = vpop.permute.xlu0 %1128
      %v1130 = vsel %vm679, %v1115, %v1123
      %v1131 = vsel %vm679, %v1117, %v1125
      %v1132 = vsel %vm679, %v1119, %v1127
      %v1133 = vsel %vm679, %v1121, %v1129
      %v1134 = vsel %vm679, %v1123, %v1115
      %v1135 = vsel %vm679, %v1125, %v1117
      %v1136 = vsel %vm679, %v1127, %v1119
      %v1137 = vsel %vm679, %v1129, %v1121
      %v1138 = vmul.f32 %v1130, %v685
      %v1139 = vmul.f32 %v1134, %v689
      %v1140 = vmul.f32 %v1131, %v685
      %v1141 = vmul.f32 %v1135, %v689
      %v1142 = vmul.f32 %v1132, %v685
      %v1143 = vmul.f32 %v1136, %v689
      %v1144 = vmul.f32 %v1133, %v685
      %v1145 = vmul.f32 %v1137, %v689
      %v1146 = vpack.c.bf16 %v1140, %v1138
      %v1147 = vpack.c.bf16 %v1141, %v1139
      %v1148 = vpack.c.bf16 %v1144, %v1142
      %v1149 = vpack.c.bf16 %v1145, %v1143
      %1150 = vst [vmem:[#allocation2 + $0xa0] sm:$0xff] %v1146
      %1151 = vst [vmem:[#allocation2 + $0xa8] sm:$0xff] %v1147
      %1152 = vst [vmem:[#allocation2 + $0xb0] sm:$0xff] %v1148
      %1153 = vst [vmem:[#allocation2 + $0xb8] sm:$0xff] %v1149
      %1154 = vrot.lane.b32.xlu0 %v930, 113
      %v1155 = vpop.permute.xlu0 %1154
      %1156 = vrot.lane.b32.xlu0 %v932, 113
      %v1157 = vpop.permute.xlu0 %1156
      %1158 = vrot.lane.b32.xlu0 %v934, 113
      %v1159 = vpop.permute.xlu0 %1158
      %1160 = vrot.lane.b32.xlu0 %v936, 113
      %v1161 = vpop.permute.xlu0 %1160
      %1162 = vrot.lane.b32.xlu0 %v931, 113
      %v1163 = vpop.permute.xlu0 %1162
      %1164 = vrot.lane.b32.xlu0 %v933, 113
      %v1165 = vpop.permute.xlu0 %1164
      %1166 = vrot.lane.b32.xlu0 %v935, 113
      %v1167 = vpop.permute.xlu0 %1166
      %1168 = vrot.lane.b32.xlu0 %v937, 113
      %v1169 = vpop.permute.xlu0 %1168
      %v1170 = vsel %vm696, %v1155, %v1163
      %v1171 = vsel %vm696, %v1157, %v1165
      %v1172 = vsel %vm696, %v1159, %v1167
      %v1173 = vsel %vm696, %v1161, %v1169
      %v1174 = vsel %vm696, %v1163, %v1155
      %v1175 = vsel %vm696, %v1165, %v1157
      %v1176 = vsel %vm696, %v1167, %v1159
      %v1177 = vsel %vm696, %v1169, %v1161
      %v1178 = vmul.f32 %v1170, %v702
      %v1179 = vmul.f32 %v1174, %v706
      %v1180 = vmul.f32 %v1171, %v702
      %v1181 = vmul.f32 %v1175, %v706
      %v1182 = vmul.f32 %v1172, %v702
      %v1183 = vmul.f32 %v1176, %v706
      %v1184 = vmul.f32 %v1173, %v702
      %v1185 = vmul.f32 %v1177, %v706
      %v1186 = vpack.c.bf16 %v1180, %v1178
      %v1187 = vpack.c.bf16 %v1181, %v1179
      %v1188 = vpack.c.bf16 %v1184, %v1182
      %v1189 = vpack.c.bf16 %v1185, %v1183
      %1190 = vst [vmem:[#allocation2 + $0xc0] sm:$0xff] %v1186
      %1191 = vst [vmem:[#allocation2 + $0xc8] sm:$0xff] %v1187
      %1192 = vst [vmem:[#allocation2 + $0xd0] sm:$0xff] %v1188
      %1193 = vst [vmem:[#allocation2 + $0xd8] sm:$0xff] %v1189
      %1194 = vrot.lane.b32.xlu0 %v930, 112
      %v1195 = vpop.permute.xlu0 %1194
      %1196 = vrot.lane.b32.xlu0 %v932, 112
      %v1197 = vpop.permute.xlu0 %1196
      %1198 = vrot.lane.b32.xlu0 %v934, 112
      %v1199 = vpop.permute.xlu0 %1198
      %1200 = vrot.lane.b32.xlu0 %v936, 112
      %v1201 = vpop.permute.xlu0 %1200
      %1202 = vrot.lane.b32.xlu0 %v931, 112
      %v1203 = vpop.permute.xlu0 %1202
      %1204 = vrot.lane.b32.xlu0 %v933, 112
      %v1205 = vpop.permute.xlu0 %1204
      %1206 = vrot.lane.b32.xlu0 %v935, 112
      %v1207 = vpop.permute.xlu0 %1206
      %1208 = vrot.lane.b32.xlu0 %v937, 112
      %v1209 = vpop.permute.xlu0 %1208
      %v1210 = vsel %vm713, %v1195, %v1203
      %v1211 = vsel %vm713, %v1197, %v1205
      %v1212 = vsel %vm713, %v1199, %v1207
      %v1213 = vsel %vm713, %v1201, %v1209
      %v1214 = vsel %vm713, %v1203, %v1195
      %v1215 = vsel %vm713, %v1205, %v1197
      %v1216 = vsel %vm713, %v1207, %v1199
      %v1217 = vsel %vm713, %v1209, %v1201
      %v1218 = vmul.f32 %v1210, %v719
      %v1219 = vmul.f32 %v1214, %v723
      %v1220 = vmul.f32 %v1211, %v719
      %v1221 = vmul.f32 %v1215, %v723
      %v1222 = vmul.f32 %v1212, %v719
      %v1223 = vmul.f32 %v1216, %v723
      %v1224 = vmul.f32 %v1213, %v719
      %v1225 = vmul.f32 %v1217, %v723
      %v1226 = vpack.c.bf16 %v1220, %v1218
      %v1227 = vpack.c.bf16 %v1221, %v1219
      %v1228 = vpack.c.bf16 %v1224, %v1222
      %v1229 = vpack.c.bf16 %v1225, %v1223
      %1230 = vst [vmem:[#allocation2 + $0xe0] sm:$0xff] %v1226
      %1231 = vst [vmem:[#allocation2 + $0xe8] sm:$0xff] %v1227
      %1232 = vst [vmem:[#allocation2 + $0xf0] sm:$0xff] %v1228
      %1233 = vst [vmem:[#allocation2 + $0xf8] sm:$0xff] %v1229
      %1234 = vrot.lane.b32.xlu0 %v930, 111
      %v1235 = vpop.permute.xlu0 %1234
      %1236 = vrot.lane.b32.xlu0 %v932, 111
      %v1237 = vpop.permute.xlu0 %1236
      %1238 = vrot.lane.b32.xlu0 %v934, 111
      %v1239 = vpop.permute.xlu0 %1238
      %1240 = vrot.lane.b32.xlu0 %v936, 111
      %v1241 = vpop.permute.xlu0 %1240
      %1242 = vrot.lane.b32.xlu0 %v931, 111
      %v1243 = vpop.permute.xlu0 %1242
      %1244 = vrot.lane.b32.xlu0 %v933, 111
      %v1245 = vpop.permute.xlu0 %1244
      %1246 = vrot.lane.b32.xlu0 %v935, 111
      %v1247 = vpop.permute.xlu0 %1246
      %1248 = vrot.lane.b32.xlu0 %v937, 111
      %v1249 = vpop.permute.xlu0 %1248
      %v1250 = vsel %vm730, %v1235, %v1243
      %v1251 = vsel %vm730, %v1237, %v1245
      %v1252 = vsel %vm730, %v1239, %v1247
      %v1253 = vsel %vm730, %v1241, %v1249
      %v1254 = vsel %vm730, %v1243, %v1235
      %v1255 = vsel %vm730, %v1245, %v1237
      %v1256 = vsel %vm730, %v1247, %v1239
      %v1257 = vsel %vm730, %v1249, %v1241
      %v1258 = vmul.f32 %v1250, %v736
      %v1259 = vmul.f32 %v1254, %v740
      %v1260 = vmul.f32 %v1251, %v736
      %v1261 = vmul.f32 %v1255, %v740
      %v1262 = vmul.f32 %v1252, %v736
      %v1263 = vmul.f32 %v1256, %v740
      %v1264 = vmul.f32 %v1253, %v736
      %v1265 = vmul.f32 %v1257, %v740
      %v1266 = vpack.c.bf16 %v1260, %v1258
      %v1267 = vpack.c.bf16 %v1261, %v1259
      %v1268 = vpack.c.bf16 %v1264, %v1262
      %v1269 = vpack.c.bf16 %v1265, %v1263
      %1270 = vst [vmem:[#allocation2 + $0x100] sm:$0xff] %v1266
      %1271 = vst [vmem:[#allocation2 + $0x108] sm:$0xff] %v1267
      %1272 = vst [vmem:[#allocation2 + $0x110] sm:$0xff] %v1268
      %1273 = vst [vmem:[#allocation2 + $0x118] sm:$0xff] %v1269
      %1274 = vrot.lane.b32.xlu0 %v938, 17
      %v1275 = vpop.permute.xlu0 %1274
      %1276 = vrot.lane.b32.xlu0 %v940, 17
      %v1277 = vpop.permute.xlu0 %1276
      %1278 = vrot.lane.b32.xlu0 %v942, 17
      %v1279 = vpop.permute.xlu0 %1278
      %1280 = vrot.lane.b32.xlu0 %v944, 17
      %v1281 = vpop.permute.xlu0 %1280
      %1282 = vrot.lane.b32.xlu0 %v939, 17
      %v1283 = vpop.permute.xlu0 %1282
      %1284 = vrot.lane.b32.xlu0 %v941, 17
      %v1285 = vpop.permute.xlu0 %1284
      %1286 = vrot.lane.b32.xlu0 %v943, 17
      %v1287 = vpop.permute.xlu0 %1286
      %1288 = vrot.lane.b32.xlu0 %v945, 17
      %v1289 = vpop.permute.xlu0 %1288
      %v1290 = vsel %vm611, %v1275, %v1283
      %v1291 = vsel %vm611, %v1277, %v1285
      %v1292 = vsel %vm611, %v1279, %v1287
      %v1293 = vsel %vm611, %v1281, %v1289
      %v1294 = vsel %vm611, %v1283, %v1275
      %v1295 = vsel %vm611, %v1285, %v1277
      %v1296 = vsel %vm611, %v1287, %v1279
      %v1297 = vsel %vm611, %v1289, %v1281
      %v1298 = vmul.f32 %v1294, %v617
      %v1299 = vmul.f32 %v1290, %v621
      %v1300 = vmul.f32 %v1295, %v617
      %v1301 = vmul.f32 %v1291, %v621
      %v1302 = vmul.f32 %v1296, %v617
      %v1303 = vmul.f32 %v1292, %v621
      %v1304 = vmul.f32 %v1297, %v617
      %v1305 = vmul.f32 %v1293, %v621
      %v1306 = vpack.c.bf16 %v1300, %v1298
      %v1307 = vpack.c.bf16 %v1301, %v1299
      %v1308 = vpack.c.bf16 %v1304, %v1302
      %v1309 = vpack.c.bf16 %v1305, %v1303
      %1310 = vst [vmem:[#allocation3] sm:$0xff] %v1306
      %1311 = vst [vmem:[#allocation3 + $0x8] sm:$0xff] %v1307
      %1312 = vst [vmem:[#allocation3 + $0x10] sm:$0xff] %v1308
      %1313 = vst [vmem:[#allocation3 + $0x18] sm:$0xff] %v1309
      %1314 = vrot.lane.b32.xlu0 %v938, 16
      %v1315 = vpop.permute.xlu0 %1314
      %1316 = vrot.lane.b32.xlu0 %v940, 16
      %v1317 = vpop.permute.xlu0 %1316
      %1318 = vrot.lane.b32.xlu0 %v942, 16
      %v1319 = vpop.permute.xlu0 %1318
      %1320 = vrot.lane.b32.xlu0 %v944, 16
      %v1321 = vpop.permute.xlu0 %1320
      %1322 = vrot.lane.b32.xlu0 %v939, 16
      %v1323 = vpop.permute.xlu0 %1322
      %1324 = vrot.lane.b32.xlu0 %v941, 16
      %v1325 = vpop.permute.xlu0 %1324
      %1326 = vrot.lane.b32.xlu0 %v943, 16
      %v1327 = vpop.permute.xlu0 %1326
      %1328 = vrot.lane.b32.xlu0 %v945, 16
      %v1329 = vpop.permute.xlu0 %1328
      %v1330 = vsel %vm628, %v1315, %v1323
      %v1331 = vsel %vm628, %v1317, %v1325
      %v1332 = vsel %vm628, %v1319, %v1327
      %v1333 = vsel %vm628, %v1321, %v1329
      %v1334 = vsel %vm628, %v1323, %v1315
      %v1335 = vsel %vm628, %v1325, %v1317
      %v1336 = vsel %vm628, %v1327, %v1319
      %v1337 = vsel %vm628, %v1329, %v1321
      %v1338 = vmul.f32 %v1334, %v634
      %v1339 = vmul.f32 %v1330, %v638
      %v1340 = vmul.f32 %v1335, %v634
      %v1341 = vmul.f32 %v1331, %v638
      %v1342 = vmul.f32 %v1336, %v634
      %v1343 = vmul.f32 %v1332, %v638
      %v1344 = vmul.f32 %v1337, %v634
      %v1345 = vmul.f32 %v1333, %v638
      %v1346 = vpack.c.bf16 %v1340, %v1338
      %v1347 = vpack.c.bf16 %v1341, %v1339
      %v1348 = vpack.c.bf16 %v1344, %v1342
      %v1349 = vpack.c.bf16 %v1345, %v1343
      %1350 = vst [vmem:[#allocation3 + $0x20] sm:$0xff] %v1346
      %1351 = vst [vmem:[#allocation3 + $0x28] sm:$0xff] %v1347
      %1352 = vst [vmem:[#allocation3 + $0x30] sm:$0xff] %v1348
      %1353 = vst [vmem:[#allocation3 + $0x38] sm:$0xff] %v1349
      %1354 = vrot.lane.b32.xlu0 %v938, 15
      %v1355 = vpop.permute.xlu0 %1354
      %1356 = vrot.lane.b32.xlu0 %v940, 15
      %v1357 = vpop.permute.xlu0 %1356
      %1358 = vrot.lane.b32.xlu0 %v942, 15
      %v1359 = vpop.permute.xlu0 %1358
      %1360 = vrot.lane.b32.xlu0 %v944, 15
      %v1361 = vpop.permute.xlu0 %1360
      %1362 = vrot.lane.b32.xlu0 %v939, 15
      %v1363 = vpop.permute.xlu0 %1362
      %1364 = vrot.lane.b32.xlu0 %v941, 15
      %v1365 = vpop.permute.xlu0 %1364
      %1366 = vrot.lane.b32.xlu0 %v943, 15
      %v1367 = vpop.permute.xlu0 %1366
      %1368 = vrot.lane.b32.xlu0 %v945, 15
      %v1369 = vpop.permute.xlu0 %1368
      %v1370 = vsel %vm645, %v1355, %v1363
      %v1371 = vsel %vm645, %v1357, %v1365
      %v1372 = vsel %vm645, %v1359, %v1367
      %v1373 = vsel %vm645, %v1361, %v1369
      %v1374 = vsel %vm645, %v1363, %v1355
      %v1375 = vsel %vm645, %v1365, %v1357
      %v1376 = vsel %vm645, %v1367, %v1359
      %v1377 = vsel %vm645, %v1369, %v1361
      %v1378 = vmul.f32 %v1374, %v651
      %v1379 = vmul.f32 %v1370, %v655
      %v1380 = vmul.f32 %v1375, %v651
      %v1381 = vmul.f32 %v1371, %v655
      %v1382 = vmul.f32 %v1376, %v651
      %v1383 = vmul.f32 %v1372, %v655
      %v1384 = vmul.f32 %v1377, %v651
      %v1385 = vmul.f32 %v1373, %v655
      %v1386 = vpack.c.bf16 %v1380, %v1378
      %v1387 = vpack.c.bf16 %v1381, %v1379
      %v1388 = vpack.c.bf16 %v1384, %v1382
      %v1389 = vpack.c.bf16 %v1385, %v1383
      %1390 = vst [vmem:[#allocation3 + $0x40] sm:$0xff] %v1386
      %1391 = vst [vmem:[#allocation3 + $0x48] sm:$0xff] %v1387
      %1392 = vst [vmem:[#allocation3 + $0x50] sm:$0xff] %v1388
      %1393 = vst [vmem:[#allocation3 + $0x58] sm:$0xff] %v1389
      %1394 = vrot.lane.b32.xlu0 %v938, 1
      %v1395 = vpop.permute.xlu0 %1394
      %1396 = vrot.lane.b32.xlu0 %v940, 1
      %v1397 = vpop.permute.xlu0 %1396
      %1398 = vrot.lane.b32.xlu0 %v942, 1
      %v1399 = vpop.permute.xlu0 %1398
      %1400 = vrot.lane.b32.xlu0 %v944, 1
      %v1401 = vpop.permute.xlu0 %1400
      %1402 = vrot.lane.b32.xlu0 %v939, 1
      %v1403 = vpop.permute.xlu0 %1402
      %1404 = vrot.lane.b32.xlu0 %v941, 1
      %v1405 = vpop.permute.xlu0 %1404
      %1406 = vrot.lane.b32.xlu0 %v943, 1
      %v1407 = vpop.permute.xlu0 %1406
      %1408 = vrot.lane.b32.xlu0 %v945, 1
      %v1409 = vpop.permute.xlu0 %1408
      %v1410 = vsel %vm662, %v1395, %v1403
      %v1411 = vsel %vm662, %v1397, %v1405
      %v1412 = vsel %vm662, %v1399, %v1407
      %v1413 = vsel %vm662, %v1401, %v1409
      %v1414 = vsel %vm662, %v1403, %v1395
      %v1415 = vsel %vm662, %v1405, %v1397
      %v1416 = vsel %vm662, %v1407, %v1399
      %v1417 = vsel %vm662, %v1409, %v1401
      %v1418 = vmul.f32 %v1414, %v668
      %v1419 = vmul.f32 %v1410, %v672
      %v1420 = vmul.f32 %v1415, %v668
      %v1421 = vmul.f32 %v1411, %v672
      %v1422 = vmul.f32 %v1416, %v668
      %v1423 = vmul.f32 %v1412, %v672
      %v1424 = vmul.f32 %v1417, %v668
      %v1425 = vmul.f32 %v1413, %v672
      %v1426 = vpack.c.bf16 %v1420, %v1418
      %v1427 = vpack.c.bf16 %v1421, %v1419
      %v1428 = vpack.c.bf16 %v1424, %v1422
      %v1429 = vpack.c.bf16 %v1425, %v1423
      %1430 = vst [vmem:[#allocation3 + $0x60] sm:$0xff] %v1426
      %1431 = vst [vmem:[#allocation3 + $0x68] sm:$0xff] %v1427
      %1432 = vst [vmem:[#allocation3 + $0x70] sm:$0xff] %v1428
      %1433 = vst [vmem:[#allocation3 + $0x78] sm:$0xff] %v1429
      %v1434 = vpack.c.bf16 %v940, %v938
      %v1435 = vpack.c.bf16 %v941, %v939
      %v1436 = vpack.c.bf16 %v944, %v942
      %v1437 = vpack.c.bf16 %v945, %v943
      %1438 = vst [vmem:[#allocation3 + $0x80] sm:$0xff] %v1434
      %1439 = vst [vmem:[#allocation3 + $0x88] sm:$0xff] %v1435
      %1440 = vst [vmem:[#allocation3 + $0x90] sm:$0xff] %v1436
      %1441 = vst [vmem:[#allocation3 + $0x98] sm:$0xff] %v1437
      %1442 = vrot.lane.b32.xlu0 %v938, 127
      %v1443 = vpop.permute.xlu0 %1442
      %1444 = vrot.lane.b32.xlu0 %v940, 127
      %v1445 = vpop.permute.xlu0 %1444
      %1446 = vrot.lane.b32.xlu0 %v942, 127
      %v1447 = vpop.permute.xlu0 %1446
      %1448 = vrot.lane.b32.xlu0 %v944, 127
      %v1449 = vpop.permute.xlu0 %1448
      %1450 = vrot.lane.b32.xlu0 %v939, 127
      %v1451 = vpop.permute.xlu0 %1450
      %1452 = vrot.lane.b32.xlu0 %v941, 127
      %v1453 = vpop.permute.xlu0 %1452
      %1454 = vrot.lane.b32.xlu0 %v943, 127
      %v1455 = vpop.permute.xlu0 %1454
      %1456 = vrot.lane.b32.xlu0 %v945, 127
      %v1457 = vpop.permute.xlu0 %1456
      %v1458 = vsel %vm679, %v1443, %v1451
      %v1459 = vsel %vm679, %v1445, %v1453
      %v1460 = vsel %vm679, %v1447, %v1455
      %v1461 = vsel %vm679, %v1449, %v1457
      %v1462 = vsel %vm679, %v1451, %v1443
      %v1463 = vsel %vm679, %v1453, %v1445
      %v1464 = vsel %vm679, %v1455, %v1447
      %v1465 = vsel %vm679, %v1457, %v1449
      %v1466 = vmul.f32 %v1458, %v685
      %v1467 = vmul.f32 %v1462, %v689
      %v1468 = vmul.f32 %v1459, %v685
      %v1469 = vmul.f32 %v1463, %v689
      %v1470 = vmul.f32 %v1460, %v685
      %v1471 = vmul.f32 %v1464, %v689
      %v1472 = vmul.f32 %v1461, %v685
      %v1473 = vmul.f32 %v1465, %v689
      %v1474 = vpack.c.bf16 %v1468, %v1466
      %v1475 = vpack.c.bf16 %v1469, %v1467
      %v1476 = vpack.c.bf16 %v1472, %v1470
      %v1477 = vpack.c.bf16 %v1473, %v1471
      %1478 = vst [vmem:[#allocation3 + $0xa0] sm:$0xff] %v1474
      %1479 = vst [vmem:[#allocation3 + $0xa8] sm:$0xff] %v1475
      %1480 = vst [vmem:[#allocation3 + $0xb0] sm:$0xff] %v1476
      %1481 = vst [vmem:[#allocation3 + $0xb8] sm:$0xff] %v1477
      %1482 = vrot.lane.b32.xlu0 %v938, 113
      %v1483 = vpop.permute.xlu0 %1482
      %1484 = vrot.lane.b32.xlu0 %v940, 113
      %v1485 = vpop.permute.xlu0 %1484
      %1486 = vrot.lane.b32.xlu0 %v942, 113
      %v1487 = vpop.permute.xlu0 %1486
      %1488 = vrot.lane.b32.xlu0 %v944, 113
      %v1489 = vpop.permute.xlu0 %1488
      %1490 = vrot.lane.b32.xlu0 %v939, 113
      %v1491 = vpop.permute.xlu0 %1490
      %1492 = vrot.lane.b32.xlu0 %v941, 113
      %v1493 = vpop.permute.xlu0 %1492
      %1494 = vrot.lane.b32.xlu0 %v943, 113
      %v1495 = vpop.permute.xlu0 %1494
      %1496 = vrot.lane.b32.xlu0 %v945, 113
      %v1497 = vpop.permute.xlu0 %1496
      %v1498 = vsel %vm696, %v1483, %v1491
      %v1499 = vsel %vm696, %v1485, %v1493
      %v1500 = vsel %vm696, %v1487, %v1495
      %v1501 = vsel %vm696, %v1489, %v1497
      %v1502 = vsel %vm696, %v1491, %v1483
      %v1503 = vsel %vm696, %v1493, %v1485
      %v1504 = vsel %vm696, %v1495, %v1487
      %v1505 = vsel %vm696, %v1497, %v1489
      %v1506 = vmul.f32 %v1498, %v702
      %v1507 = vmul.f32 %v1502, %v706
      %v1508 = vmul.f32 %v1499, %v702
      %v1509 = vmul.f32 %v1503, %v706
      %v1510 = vmul.f32 %v1500, %v702
      %v1511 = vmul.f32 %v1504, %v706
      %v1512 = vmul.f32 %v1501, %v702
      %v1513 = vmul.f32 %v1505, %v706
      %v1514 = vpack.c.bf16 %v1508, %v1506
      %v1515 = vpack.c.bf16 %v1509, %v1507
      %v1516 = vpack.c.bf16 %v1512, %v1510
      %v1517 = vpack.c.bf16 %v1513, %v1511
      %1518 = vst [vmem:[#allocation3 + $0xc0] sm:$0xff] %v1514
      %1519 = vst [vmem:[#allocation3 + $0xc8] sm:$0xff] %v1515
      %1520 = vst [vmem:[#allocation3 + $0xd0] sm:$0xff] %v1516
      %1521 = vst [vmem:[#allocation3 + $0xd8] sm:$0xff] %v1517
      %1522 = vrot.lane.b32.xlu0 %v938, 112
      %v1523 = vpop.permute.xlu0 %1522
      %1524 = vrot.lane.b32.xlu0 %v940, 112
      %v1525 = vpop.permute.xlu0 %1524
      %1526 = vrot.lane.b32.xlu0 %v942, 112
      %v1527 = vpop.permute.xlu0 %1526
      %1528 = vrot.lane.b32.xlu0 %v944, 112
      %v1529 = vpop.permute.xlu0 %1528
      %1530 = vrot.lane.b32.xlu0 %v939, 112
      %v1531 = vpop.permute.xlu0 %1530
      %1532 = vrot.lane.b32.xlu0 %v941, 112
      %v1533 = vpop.permute.xlu0 %1532
      %1534 = vrot.lane.b32.xlu0 %v943, 112
      %v1535 = vpop.permute.xlu0 %1534
      %1536 = vrot.lane.b32.xlu0 %v945, 112
      %v1537 = vpop.permute.xlu0 %1536
      %v1538 = vsel %vm713, %v1523, %v1531
      %v1539 = vsel %vm713, %v1525, %v1533
      %v1540 = vsel %vm713, %v1527, %v1535
      %v1541 = vsel %vm713, %v1529, %v1537
      %v1542 = vsel %vm713, %v1531, %v1523
      %v1543 = vsel %vm713, %v1533, %v1525
      %v1544 = vsel %vm713, %v1535, %v1527
      %v1545 = vsel %vm713, %v1537, %v1529
      %v1546 = vmul.f32 %v1538, %v719
      %v1547 = vmul.f32 %v1542, %v723
      %v1548 = vmul.f32 %v1539, %v719
      %v1549 = vmul.f32 %v1543, %v723
      %v1550 = vmul.f32 %v1540, %v719
      %v1551 = vmul.f32 %v1544, %v723
      %v1552 = vmul.f32 %v1541, %v719
      %v1553 = vmul.f32 %v1545, %v723
      %v1554 = vpack.c.bf16 %v1548, %v1546
      %v1555 = vpack.c.bf16 %v1549, %v1547
      %v1556 = vpack.c.bf16 %v1552, %v1550
      %v1557 = vpack.c.bf16 %v1553, %v1551
      %1558 = vst [vmem:[#allocation3 + $0xe0] sm:$0xff] %v1554
      %1559 = vst [vmem:[#allocation3 + $0xe8] sm:$0xff] %v1555
      %1560 = vst [vmem:[#allocation3 + $0xf0] sm:$0xff] %v1556
      %1561 = vst [vmem:[#allocation3 + $0xf8] sm:$0xff] %v1557
      %1562 = vrot.lane.b32.xlu0 %v938, 111
      %v1563 = vpop.permute.xlu0 %1562
      %1564 = vrot.lane.b32.xlu0 %v940, 111
      %v1565 = vpop.permute.xlu0 %1564
      %1566 = vrot.lane.b32.xlu0 %v942, 111
      %v1567 = vpop.permute.xlu0 %1566
      %1568 = vrot.lane.b32.xlu0 %v944, 111
      %v1569 = vpop.permute.xlu0 %1568
      %1570 = vrot.lane.b32.xlu0 %v939, 111
      %v1571 = vpop.permute.xlu0 %1570
      %1572 = vrot.lane.b32.xlu0 %v941, 111
      %v1573 = vpop.permute.xlu0 %1572
      %1574 = vrot.lane.b32.xlu0 %v943, 111
      %v1575 = vpop.permute.xlu0 %1574
      %1576 = vrot.lane.b32.xlu0 %v945, 111
      %v1577 = vpop.permute.xlu0 %1576
      %v1578 = vsel %vm730, %v1563, %v1571
      %v1579 = vsel %vm730, %v1565, %v1573
      %v1580 = vsel %vm730, %v1567, %v1575
      %v1581 = vsel %vm730, %v1569, %v1577
      %v1582 = vsel %vm730, %v1571, %v1563
      %v1583 = vsel %vm730, %v1573, %v1565
      %v1584 = vsel %vm730, %v1575, %v1567
      %v1585 = vsel %vm730, %v1577, %v1569
      %v1586 = vmul.f32 %v1578, %v736
      %v1587 = vmul.f32 %v1582, %v740
      %v1588 = vmul.f32 %v1579, %v736
      %v1589 = vmul.f32 %v1583, %v740
      %v1590 = vmul.f32 %v1580, %v736
      %v1591 = vmul.f32 %v1584, %v740
      %v1592 = vmul.f32 %v1581, %v736
      %v1593 = vmul.f32 %v1585, %v740
      %v1594 = vpack.c.bf16 %v1588, %v1586
      %v1595 = vpack.c.bf16 %v1589, %v1587
      %v1596 = vpack.c.bf16 %v1592, %v1590
      %v1597 = vpack.c.bf16 %v1593, %v1591
      %1598 = vst [vmem:[#allocation3 + $0x100] sm:$0xff] %v1594
      %1599 = vst [vmem:[#allocation3 + $0x108] sm:$0xff] %v1595
      %1600 = vst [vmem:[#allocation3 + $0x110] sm:$0xff] %v1596
      %1601 = vst [vmem:[#allocation3 + $0x118] sm:$0xff] %v1597
      %v1602 = vld [vmem:[#allocation2] sm:$0xff]
      %v1603 = vld [vmem:[#allocation2 + $0x8] sm:$0xff]
      %v1604 = vld [vmem:[#allocation2 + $0x10] sm:$0xff]
      %v1605 = vld [vmem:[#allocation2 + $0x18] sm:$0xff]
      %v1606 = vld [vmem:[#allocation2 + $0x20] sm:$0xff]
      %v1607 = vld [vmem:[#allocation2 + $0x28] sm:$0xff]
      %v1608 = vld [vmem:[#allocation2 + $0x30] sm:$0xff]
      %v1609 = vld [vmem:[#allocation2 + $0x38] sm:$0xff]
      %v1610 = vld [vmem:[#allocation2 + $0x40] sm:$0xff]
      %v1611 = vld [vmem:[#allocation2 + $0x48] sm:$0xff]
      %v1612 = vld [vmem:[#allocation2 + $0x50] sm:$0xff]
      %v1613 = vld [vmem:[#allocation2 + $0x58] sm:$0xff]
      %v1614 = vld [vmem:[#allocation2 + $0x60] sm:$0xff]
      %v1615 = vld [vmem:[#allocation2 + $0x68] sm:$0xff]
      %v1616 = vld [vmem:[#allocation2 + $0x70] sm:$0xff]
      %v1617 = vld [vmem:[#allocation2 + $0x78] sm:$0xff]
      %v1618 = vld [vmem:[#allocation2 + $0x80] sm:$0xff]
      %v1619 = vld [vmem:[#allocation2 + $0x88] sm:$0xff]
      %v1620 = vld [vmem:[#allocation2 + $0x90] sm:$0xff]
      %v1621 = vld [vmem:[#allocation2 + $0x98] sm:$0xff]
      %v1622 = vld [vmem:[#allocation2 + $0xa0] sm:$0xff]
      %v1623 = vld [vmem:[#allocation2 + $0xa8] sm:$0xff]
      %v1624 = vld [vmem:[#allocation2 + $0xb0] sm:$0xff]
      %v1625 = vld [vmem:[#allocation2 + $0xb8] sm:$0xff]
      %v1626 = vld [vmem:[#allocation2 + $0xc0] sm:$0xff]
      %v1627 = vld [vmem:[#allocation2 + $0xc8] sm:$0xff]
      %v1628 = vld [vmem:[#allocation2 + $0xd0] sm:$0xff]
      %v1629 = vld [vmem:[#allocation2 + $0xd8] sm:$0xff]
      %v1630 = vld [vmem:[#allocation2 + $0xe0] sm:$0xff]
      %v1631 = vld [vmem:[#allocation2 + $0xe8] sm:$0xff]
      %v1632 = vld [vmem:[#allocation2 + $0xf0] sm:$0xff]
      %v1633 = vld [vmem:[#allocation2 + $0xf8] sm:$0xff]
      %v1634 = vld [vmem:[#allocation2 + $0x100] sm:$0xff]
      %v1635 = vld [vmem:[#allocation2 + $0x108] sm:$0xff]
      %v1636 = vld [vmem:[#allocation2 + $0x110] sm:$0xff]
      %v1637 = vld [vmem:[#allocation2 + $0x118] sm:$0xff]
      %v1638 = vld [vmem:[%s4] sm:$0xff]
      %v1639 = vld [vmem:[%s4 + $0x8] sm:$0xf]
      %v1640 = vld [vmem:[%s4 + $0xc] sm:$0xff]
      %v1641 = vld [vmem:[%s4 + $0x14] sm:$0xf]
      %v1642 = vld [vmem:[%s4 + $0x18] sm:$0xff]
      %v1643 = vld [vmem:[%s4 + $0x20] sm:$0xf]
      %v1644 = vld [vmem:[%s4 + $0x24] sm:$0xff]
      %v1645 = vld [vmem:[%s4 + $0x2c] sm:$0xf]
      %v1646 = vld [vmem:[#allocation3] sm:$0xff]
      %v1647 = vld [vmem:[#allocation3 + $0x8] sm:$0xff]
      %v1648 = vld [vmem:[#allocation3 + $0x10] sm:$0xff]
      %v1649 = vld [vmem:[#allocation3 + $0x18] sm:$0xff]
      %v1650 = vld [vmem:[#allocation3 + $0x20] sm:$0xff]
      %v1651 = vld [vmem:[#allocation3 + $0x28] sm:$0xff]
      %v1652 = vld [vmem:[#allocation3 + $0x30] sm:$0xff]
      %v1653 = vld [vmem:[#allocation3 + $0x38] sm:$0xff]
      %v1654 = vld [vmem:[#allocation3 + $0x40] sm:$0xff]
      %v1655 = vld [vmem:[#allocation3 + $0x48] sm:$0xff]
      %v1656 = vld [vmem:[#allocation3 + $0x50] sm:$0xff]
      %v1657 = vld [vmem:[#allocation3 + $0x58] sm:$0xff]
      %v1658 = vld [vmem:[#allocation3 + $0x60] sm:$0xff]
      %v1659 = vld [vmem:[#allocation3 + $0x68] sm:$0xff]
      %v1660 = vld [vmem:[#allocation3 + $0x70] sm:$0xff]
      %v1661 = vld [vmem:[#allocation3 + $0x78] sm:$0xff]
      %v1662 = vld [vmem:[#allocation3 + $0x80] sm:$0xff]
      %v1663 = vld [vmem:[#allocation3 + $0x88] sm:$0xff]
      %v1664 = vld [vmem:[#allocation3 + $0x90] sm:$0xff]
      %v1665 = vld [vmem:[#allocation3 + $0x98] sm:$0xff]
      %v1666 = vld [vmem:[#allocation3 + $0xa0] sm:$0xff]
      %v1667 = vld [vmem:[#allocation3 + $0xa8] sm:$0xff]
      %v1668 = vld [vmem:[#allocation3 + $0xb0] sm:$0xff]
      %v1669 = vld [vmem:[#allocation3 + $0xb8] sm:$0xff]
      %v1670 = vld [vmem:[#allocation3 + $0xc0] sm:$0xff]
      %v1671 = vld [vmem:[#allocation3 + $0xc8] sm:$0xff]
      %v1672 = vld [vmem:[#allocation3 + $0xd0] sm:$0xff]
      %v1673 = vld [vmem:[#allocation3 + $0xd8] sm:$0xff]
      %v1674 = vld [vmem:[#allocation3 + $0xe0] sm:$0xff]
      %v1675 = vld [vmem:[#allocation3 + $0xe8] sm:$0xff]
      %v1676 = vld [vmem:[#allocation3 + $0xf0] sm:$0xff]
      %v1677 = vld [vmem:[#allocation3 + $0xf8] sm:$0xff]
      %v1678 = vld [vmem:[#allocation3 + $0x100] sm:$0xff]
      %v1679 = vld [vmem:[#allocation3 + $0x108] sm:$0xff]
      %v1680 = vld [vmem:[#allocation3 + $0x110] sm:$0xff]
      %v1681 = vld [vmem:[#allocation3 + $0x118] sm:$0xff]
      %v1682 = vld [vmem:[%s5] sm:$0xff]
      %v1683 = vld [vmem:[%s5 + $0x8] sm:$0xf]
      %v1684 = vld [vmem:[%s5 + $0xc] sm:$0xff]
      %v1685 = vld [vmem:[%s5 + $0x14] sm:$0xf]
      %v1686 = vld [vmem:[%s5 + $0x18] sm:$0xff]
      %v1687 = vld [vmem:[%s5 + $0x20] sm:$0xf]
      %v1688 = vld [vmem:[%s5 + $0x24] sm:$0xff]
      %v1689 = vld [vmem:[%s5 + $0x2c] sm:$0xf]
      %v1698 = vunpack.c.l.b16 %v1682
      %v1699 = vunpack.c.h.b16 %v1682
      %v1700 = vunpack.c.l.b16 %v1683
      %v1701 = vunpack.c.l.b16 %v1684
      %v1702 = vunpack.c.h.b16 %v1684
      %v1703 = vunpack.c.l.b16 %v1685
      %v1704 = vunpack.c.l.b16 %v1686
      %v1705 = vunpack.c.h.b16 %v1686
      %v1706 = vunpack.c.l.b16 %v1687
      %v1707 = vunpack.c.l.b16 %v1688
      %v1708 = vunpack.c.h.b16 %v1688
      %v1709 = vunpack.c.l.b16 %v1689
      %v1710 = vpack.c.b16 %v1701, %v1698
      %v1711 = vpack.c.b16 %v1702, %v1699
      %v1712 = vpack.c.b16 %v1703, %v1700
      %v1713 = vpack.c.b16 %v1707, %v1704
      %v1714 = vpack.c.b16 %v1708, %v1705
      %v1715 = vpack.c.b16 %v1709, %v1706
      %vm1720 = vcmask 261120
      %v1722 = vsel %vm1720, %v1712, 0
      %v1725 = vsel %vm1720, %v1715, 0
      %1727 = vmatprep.subr.bf16.mxu0 %v1647
      %1728 = vmatpush1.bf16.msra.mxu0 %v1646
      %1729 = vmatprep.subr.bf16.mxu0 %v1649
      %1730 = vmatpush1.bf16.msra.mxu0 %v1648
      %1731 = vmatprep.subr.bf16.mxu0 %v1651
      %1732 = vmatpush1.bf16.msra.mxu0 %v1650
      %1733 = vmatprep.subr.bf16.mxu0 %v1653
      %1734 = vmatpush1.bf16.msra.mxu0 %v1652
      %1735 = vmatprep.subr.bf16.mxu0 %v1655
      %1736 = vmatpush1.bf16.msra.mxu0 %v1654
      %1737 = vmatprep.subr.bf16.mxu0 %v1657
      %1738 = vmatpush1.bf16.msra.mxu0 %v1656
      %1739 = vmatprep.subr.bf16.mxu0 %v1659
      %1740 = vmatpush1.bf16.msra.mxu0 %v1658
      %1741 = vmatprep.subr.bf16.mxu0 %v1661
      %1742 = vmatpush1.bf16.msra.mxu0 %v1660
      %1743 = vmatprep.subr.bf16.mxu0 %v1663
      %1744 = vmatpush1.bf16.msra.mxu0 %v1662
      %1745 = vmatprep.subr.bf16.mxu0 %v1665
      %1746 = vmatpush1.bf16.msra.mxu0 %v1664
      %1747 = vmatprep.subr.bf16.mxu0 %v1667
      %1748 = vmatpush1.bf16.msra.mxu0 %v1666
      %1749 = vmatprep.subr.bf16.mxu0 %v1669
      %1750 = vmatpush1.bf16.msra.mxu0 %v1668
      %1751 = vmatprep.subr.bf16.mxu0 %v1671
      %1752 = vmatpush1.bf16.msra.mxu0 %v1670
      %1753 = vmatprep.subr.bf16.mxu0 %v1673
      %1754 = vmatpush1.bf16.msra.mxu0 %v1672
      %1755 = vmatprep.subr.bf16.mxu0 %v1675
      %1756 = vmatpush1.bf16.msra.mxu0 %v1674
      %1757 = vmatprep.subr.bf16.mxu0 %v1677
      %1758 = vmatpush1.bf16.msra.mxu0 %v1676
      %1759 = vmatprep.mubr.bf16.mxu0 %v1711
      %1760 = vmatmul.mubr.bf16.gmra.mrb[0].mxu0 %v1710
      %v1761 = vpop.f32.mrb[0].mxu0
      %v1762 = vadd.f32 0.0, %v1761
      %v1763 = vpop.f32.mrb[0].mxu0
      %v1764 = vadd.f32 0.0, %v1763
      %v1765 = vpop.f32.mrb[0].mxu0
      %v1766 = vadd.f32 0.0, %v1765
      %v1767 = vpop.f32.mrb[0].mxu0
      %v1768 = vadd.f32 0.0, %v1767
      %1769 = vmatprep.mubr.bf16.mxu0 %v1714
      %1770 = vmatmul.mubr.bf16.gmra.mrb[0].mxu0 %v1713
      %v1771 = vpop.f32.mrb[0].mxu0
      %v1772 = vadd.f32 0.0, %v1771
      %v1773 = vpop.f32.mrb[0].mxu0
      %v1774 = vadd.f32 0.0, %v1773
      %v1775 = vpop.f32.mrb[0].mxu0
      %v1776 = vadd.f32 0.0, %v1775
      %v1777 = vpop.f32.mrb[0].mxu0
      %v1778 = vadd.f32 0.0, %v1777
      %1779 = vdwg.mxu0
      %1780 = vmatprep.subr.bf16.mxu0 %v1679
      %1781 = vmatpush1.bf16.msra.mxu0 %v1678
      %1782 = vmatprep.subr.bf16.mxu0 %v1681
      %1783 = vmatpush1.bf16.msra.mxu0 %v1680
      %1784 = vmatprep.subr.bf16.mxu0 0
      %1785 = vmatpush1.bf16.msra.mxu0 0
      %1786 = vmatprep.subr.bf16.mxu0 0
      %1787 = vmatpush1.bf16.msra.mxu0 0
      %1788 = vmatprep.subr.bf16.mxu0 0
      %1789 = vmatpush1.bf16.msra.mxu0 0
      %1790 = vmatprep.subr.bf16.mxu0 0
      %1791 = vmatpush1.bf16.msra.mxu0 0
      %1792 = vmatprep.subr.bf16.mxu0 0
      %1793 = vmatpush1.bf16.msra.mxu0 0
      %1794 = vmatprep.subr.bf16.mxu0 0
      %1795 = vmatpush1.bf16.msra.mxu0 0
      %1796 = vmatprep.subr.bf16.mxu0 0
      %1797 = vmatpush1.bf16.msra.mxu0 0
      %1798 = vmatprep.subr.bf16.mxu0 0
      %1799 = vmatpush1.bf16.msra.mxu0 0
      %1800 = vmatprep.subr.bf16.mxu0 0
      %1801 = vmatpush1.bf16.msra.mxu0 0
      %1802 = vmatprep.subr.bf16.mxu0 0
      %1803 = vmatpush1.bf16.msra.mxu0 0
      %1804 = vmatprep.subr.bf16.mxu0 0
      %1805 = vmatpush1.bf16.msra.mxu0 0
      %1806 = vmatprep.subr.bf16.mxu0 0
      %1807 = vmatpush1.bf16.msra.mxu0 0
      %1808 = vmatprep.subr.bf16.mxu0 0
      %1809 = vmatpush1.bf16.msra.mxu0 0
      %1810 = vmatprep.subr.bf16.mxu0 0
      %1811 = vmatpush1.bf16.msra.mxu0 0
      %1812 = vmatprep.mubr.bf16.mxu0 0
      %1813 = vmatmul.mubr.bf16.gmra.mrb[0].mxu0 %v1722
      %v1814 = vpop.f32.mrb[0].mxu0
      %v1815 = vadd.f32 %v1762, %v1814
      %v1816 = vpop.f32.mrb[0].mxu0
      %v1817 = vadd.f32 %v1764, %v1816
      %v1818 = vpop.f32.mrb[0].mxu0
      %v1819 = vadd.f32 %v1766, %v1818
      %v1820 = vpop.f32.mrb[0].mxu0
      %v1821 = vadd.f32 %v1768, %v1820
      %1822 = vmatprep.mubr.bf16.mxu0 0
      %1823 = vmatmul.mubr.bf16.gmra.mrb[0].mxu0 %v1725
      %v1824 = vpop.f32.mrb[0].mxu0
      %v1825 = vadd.f32 %v1772, %v1824
      %v1826 = vpop.f32.mrb[0].mxu0
      %v1827 = vadd.f32 %v1774, %v1826
      %v1828 = vpop.f32.mrb[0].mxu0
      %v1829 = vadd.f32 %v1776, %v1828
      %v1830 = vpop.f32.mrb[0].mxu0
      %v1831 = vadd.f32 %v1778, %v1830
      %1832 = vdwg.mxu0
      %v1841 = vunpack.c.l.b16 %v1638
      %v1842 = vunpack.c.h.b16 %v1638
      %v1843 = vunpack.c.l.b16 %v1639
      %v1844 = vunpack.c.l.b16 %v1640
      %v1845 = vunpack.c.h.b16 %v1640
      %v1846 = vunpack.c.l.b16 %v1641
      %v1847 = vunpack.c.l.b16 %v1642
      %v1848 = vunpack.c.h.b16 %v1642
      %v1849 = vunpack.c.l.b16 %v1643
      %v1850 = vunpack.c.l.b16 %v1644
      %v1851 = vunpack.c.h.b16 %v1644
      %v1852 = vunpack.c.l.b16 %v1645
      %v1853 = vpack.c.b16 %v1844, %v1841
      %v1854 = vpack.c.b16 %v1845, %v1842
      %v1855 = vpack.c.b16 %v1846, %v1843
      %v1856 = vpack.c.b16 %v1850, %v1847
      %v1857 = vpack.c.b16 %v1851, %v1848
      %v1858 = vpack.c.b16 %v1852, %v1849
      %v1864 = vsel %vm1720, %v1855, 0
      %v1867 = vsel %vm1720, %v1858, 0
      %1869 = vmatprep.subr.bf16.mxu0 %v1603
      %1870 = vmatpush1.bf16.msra.mxu0 %v1602
      %1871 = vmatprep.subr.bf16.mxu0 %v1605
      %1872 = vmatpush1.bf16.msra.mxu0 %v1604
      %1873 = vmatprep.subr.bf16.mxu0 %v1607
      %1874 = vmatpush1.bf16.msra.mxu0 %v1606
      %1875 = vmatprep.subr.bf16.mxu0 %v1609
      %1876 = vmatpush1.bf16.msra.mxu0 %v1608
      %1877 = vmatprep.subr.bf16.mxu0 %v1611
      %1878 = vmatpush1.bf16.msra.mxu0 %v1610
      %1879 = vmatprep.subr.bf16.mxu0 %v1613
      %1880 = vmatpush1.bf16.msra.mxu0 %v1612
      %1881 = vmatprep.subr.bf16.mxu0 %v1615
      %1882 = vmatpush1.bf16.msra.mxu0 %v1614
      %1883 = vmatprep.subr.bf16.mxu0 %v1617
      %1884 = vmatpush1.bf16.msra.mxu0 %v1616
      %1885 = vmatprep.subr.bf16.mxu0 %v1619
      %1886 = vmatpush1.bf16.msra.mxu0 %v1618
      %1887 = vmatprep.subr.bf16.mxu0 %v1621
      %1888 = vmatpush1.bf16.msra.mxu0 %v1620
      %1889 = vmatprep.subr.bf16.mxu0 %v1623
      %1890 = vmatpush1.bf16.msra.mxu0 %v1622
      %1891 = vmatprep.subr.bf16.mxu0 %v1625
      %1892 = vmatpush1.bf16.msra.mxu0 %v1624
      %1893 = vmatprep.subr.bf16.mxu0 %v1627
      %1894 = vmatpush1.bf16.msra.mxu0 %v1626
      %1895 = vmatprep.subr.bf16.mxu0 %v1629
      %1896 = vmatpush1.bf16.msra.mxu0 %v1628
      %1897 = vmatprep.subr.bf16.mxu0 %v1631
      %1898 = vmatpush1.bf16.msra.mxu0 %v1630
      %1899 = vmatprep.subr.bf16.mxu0 %v1633
      %1900 = vmatpush1.bf16.msra.mxu0 %v1632
      %1901 = vmatprep.mubr.bf16.mxu0 %v1854
      %1902 = vmatmul.mubr.bf16.gmra.mrb[0].mxu0 %v1853
      %v1903 = vpop.f32.mrb[0].mxu0
      %v1904 = vadd.f32 %v1815, %v1903
      %v1905 = vpop.f32.mrb[0].mxu0
      %v1906 = vadd.f32 %v1817, %v1905
      %v1907 = vpop.f32.mrb[0].mxu0
      %v1908 = vadd.f32 %v1819, %v1907
      %v1909 = vpop.f32.mrb[0].mxu0
      %v1910 = vadd.f32 %v1821, %v1909
      %1911 = vmatprep.mubr.bf16.mxu0 %v1857
      %1912 = vmatmul.mubr.bf16.gmra.mrb[0].mxu0 %v1856
      %v1913 = vpop.f32.mrb[0].mxu0
      %v1914 = vadd.f32 %v1825, %v1913
      %v1915 = vpop.f32.mrb[0].mxu0
      %v1916 = vadd.f32 %v1827, %v1915
      %v1917 = vpop.f32.mrb[0].mxu0
      %v1918 = vadd.f32 %v1829, %v1917
      %v1919 = vpop.f32.mrb[0].mxu0
      %v1920 = vadd.f32 %v1831, %v1919
      %1921 = vdwg.mxu0
      %1922 = vmatprep.subr.bf16.mxu0 %v1635
      %1923 = vmatpush1.bf16.msra.mxu0 %v1634
      %1924 = vmatprep.subr.bf16.mxu0 %v1637
      %1925 = vmatpush1.bf16.msra.mxu0 %v1636
      %1926 = vmatprep.subr.bf16.mxu0 0
      %1927 = vmatpush1.bf16.msra.mxu0 0
      %1928 = vmatprep.subr.bf16.mxu0 0
      %1929 = vmatpush1.bf16.msra.mxu0 0
      %1930 = vmatprep.subr.bf16.mxu0 0
      %1931 = vmatpush1.bf16.msra.mxu0 0
      %1932 = vmatprep.subr.bf16.mxu0 0
      %1933 = vmatpush1.bf16.msra.mxu0 0
      %1934 = vmatprep.subr.bf16.mxu0 0
      %1935 = vmatpush1.bf16.msra.mxu0 0
      %1936 = vmatprep.subr.bf16.mxu0 0
      %1937 = vmatpush1.bf16.msra.mxu0 0
      %1938 = vmatprep.subr.bf16.mxu0 0
      %1939 = vmatpush1.bf16.msra.mxu0 0
      %1940 = vmatprep.subr.bf16.mxu0 0
      %1941 = vmatpush1.bf16.msra.mxu0 0
      %1942 = vmatprep.subr.bf16.mxu0 0
      %1943 = vmatpush1.bf16.msra.mxu0 0
      %1944 = vmatprep.subr.bf16.mxu0 0
      %1945 = vmatpush1.bf16.msra.mxu0 0
      %1946 = vmatprep.subr.bf16.mxu0 0
      %1947 = vmatpush1.bf16.msra.mxu0 0
      %1948 = vmatprep.subr.bf16.mxu0 0
      %1949 = vmatpush1.bf16.msra.mxu0 0
      %1950 = vmatprep.subr.bf16.mxu0 0
      %1951 = vmatpush1.bf16.msra.mxu0 0
      %1952 = vmatprep.subr.bf16.mxu0 0
      %1953 = vmatpush1.bf16.msra.mxu0 0
      %1954 = vmatprep.mubr.bf16.mxu0 0
      %1955 = vmatmul.mubr.bf16.gmra.mrb[0].mxu0 %v1864
      %v1956 = vpop.f32.mrb[0].mxu0
      %v1957 = vadd.f32 %v1904, %v1956
      %v1958 = vpop.f32.mrb[0].mxu0
      %v1959 = vadd.f32 %v1906, %v1958
      %v1960 = vpop.f32.mrb[0].mxu0
      %v1961 = vadd.f32 %v1908, %v1960
      %v1962 = vpop.f32.mrb[0].mxu0
      %v1963 = vadd.f32 %v1910, %v1962
      %1964 = vmatprep.mubr.bf16.mxu0 0
      %1965 = vmatmul.mubr.bf16.gmra.mrb[0].mxu0 %v1867
      %v1966 = vpop.f32.mrb[0].mxu0
      %v1967 = vadd.f32 %v1914, %v1966
      %v1968 = vpop.f32.mrb[0].mxu0
      %v1969 = vadd.f32 %v1916, %v1968
      %v1970 = vpop.f32.mrb[0].mxu0
      %v1971 = vadd.f32 %v1918, %v1970
      %v1972 = vpop.f32.mrb[0].mxu0
      %v1973 = vadd.f32 %v1920, %v1972
      %1974 = vdwg.mxu0
      %v1975 = vld [vmem:[%s6] sm:$0xff]
      %v1976 = vld [vmem:[%s6 + $0x8] sm:$0xff]
      %v1977 = vld [vmem:[%s6 + $0x10] sm:$0xff]
      %v1978 = vld [vmem:[%s6 + $0x18] sm:$0xff]
      %1980 = vset.pattern.permute.xlu0 0
      %1981 = vperm.xlu0 %1980, %v1975
      %v1982 = vpop.permute.xlu0 %1981
      %1985 = vset.pattern.permute.xlu0 0
      %1986 = vperm.xlu0 %1985, %v1976
      %v1987 = vpop.permute.xlu0 %1986
      %1990 = vset.pattern.permute.xlu0 0
      %1991 = vperm.xlu0 %1990, %v1977
      %v1992 = vpop.permute.xlu0 %1991
      %1995 = vset.pattern.permute.xlu0 0
      %1996 = vperm.xlu0 %1995, %v1978
      %v1997 = vpop.permute.xlu0 %1996
      %v1999 = vadd.f32 %v1957, %v1982
      %v2000 = vadd.f32 %v1959, %v1982
      %v2001 = vadd.f32 %v1961, %v1987
      %v2002 = vadd.f32 %v1963, %v1987
      %v2003 = vadd.f32 %v1967, %v1992
      %v2004 = vadd.f32 %v1969, %v1992
      %v2005 = vadd.f32 %v1971, %v1997
      %v2006 = vadd.f32 %v1973, %v1997
      %v2007 = vmax.f32 %v1999, 0.0
      %v2008 = vmax.f32 %v2000, 0.0
      %v2009 = vmax.f32 %v2001, 0.0
      %v2010 = vmax.f32 %v2002, 0.0
      %v2011 = vmax.f32 %v2003, 0.0
      %v2012 = vmax.f32 %v2004, 0.0
      %v2013 = vmax.f32 %v2005, 0.0
      %v2014 = vmax.f32 %v2006, 0.0
      %2015 = vrot.lane.b32.xlu0 %v2007, 17
      %v2016 = vpop.permute.xlu0 %2015
      %2017 = vrot.lane.b32.xlu0 %v2009, 17
      %v2018 = vpop.permute.xlu0 %2017
      %2019 = vrot.lane.b32.xlu0 %v2011, 17
      %v2020 = vpop.permute.xlu0 %2019
      %2021 = vrot.lane.b32.xlu0 %v2013, 17
      %v2022 = vpop.permute.xlu0 %2021
      %2023 = vrot.lane.b32.xlu0 %v2008, 17
      %v2024 = vpop.permute.xlu0 %2023
      %2025 = vrot.lane.b32.xlu0 %v2010, 17
      %v2026 = vpop.permute.xlu0 %2025
      %2027 = vrot.lane.b32.xlu0 %v2012, 17
      %v2028 = vpop.permute.xlu0 %2027
      %2029 = vrot.lane.b32.xlu0 %v2014, 17
      %v2030 = vpop.permute.xlu0 %2029
      %v2031 = vsel %vm611, %v2016, %v2024
      %v2032 = vsel %vm611, %v2018, %v2026
      %v2033 = vsel %vm611, %v2020, %v2028
      %v2034 = vsel %vm611, %v2022, %v2030
      %v2035 = vsel %vm611, %v2024, %v2016
      %v2036 = vsel %vm611, %v2026, %v2018
      %v2037 = vsel %vm611, %v2028, %v2020
      %v2038 = vsel %vm611, %v2030, %v2022
      %v2039 = vmul.f32 %v2035, %v617
      %v2040 = vmul.f32 %v2031, %v621
      %v2041 = vmul.f32 %v2036, %v617
      %v2042 = vmul.f32 %v2032, %v621
      %v2043 = vmul.f32 %v2037, %v617
      %v2044 = vmul.f32 %v2033, %v621
      %v2045 = vmul.f32 %v2038, %v617
      %v2046 = vmul.f32 %v2034, %v621
      %v2047 = vpack.c.bf16 %v2041, %v2039
      %v2048 = vpack.c.bf16 %v2042, %v2040
      %v2049 = vpack.c.bf16 %v2045, %v2043
      %v2050 = vpack.c.bf16 %v2046, %v2044
      %2051 = vst [vmem:[#allocation4] sm:$0xff] %v2047
      %2052 = vst [vmem:[#allocation4 + $0x8] sm:$0xff] %v2048
      %2053 = vst [vmem:[#allocation4 + $0x10] sm:$0xff] %v2049
      %2054 = vst [vmem:[#allocation4 + $0x18] sm:$0xff] %v2050
      %2055 = vrot.lane.b32.xlu0 %v2007, 16
      %v2056 = vpop.permute.xlu0 %2055
      %2057 = vrot.lane.b32.xlu0 %v2009, 16
      %v2058 = vpop.permute.xlu0 %2057
      %2059 = vrot.lane.b32.xlu0 %v2011, 16
      %v2060 = vpop.permute.xlu0 %2059
      %2061 = vrot.lane.b32.xlu0 %v2013, 16
      %v2062 = vpop.permute.xlu0 %2061
      %2063 = vrot.lane.b32.xlu0 %v2008, 16
      %v2064 = vpop.permute.xlu0 %2063
      %2065 = vrot.lane.b32.xlu0 %v2010, 16
      %v2066 = vpop.permute.xlu0 %2065
      %2067 = vrot.lane.b32.xlu0 %v2012, 16
      %v2068 = vpop.permute.xlu0 %2067
      %2069 = vrot.lane.b32.xlu0 %v2014, 16
      %v2070 = vpop.permute.xlu0 %2069
      %v2071 = vsel %vm628, %v2056, %v2064
      %v2072 = vsel %vm628, %v2058, %v2066
      %v2073 = vsel %vm628, %v2060, %v2068
      %v2074 = vsel %vm628, %v2062, %v2070
      %v2075 = vsel %vm628, %v2064, %v2056
      %v2076 = vsel %vm628, %v2066, %v2058
      %v2077 = vsel %vm628, %v2068, %v2060
      %v2078 = vsel %vm628, %v2070, %v2062
      %v2079 = vmul.f32 %v2075, %v634
      %v2080 = vmul.f32 %v2071, %v638
      %v2081 = vmul.f32 %v2076, %v634
      %v2082 = vmul.f32 %v2072, %v638
      %v2083 = vmul.f32 %v2077, %v634
      %v2084 = vmul.f32 %v2073, %v638
      %v2085 = vmul.f32 %v2078, %v634
      %v2086 = vmul.f32 %v2074, %v638
      %v2087 = vpack.c.bf16 %v2081, %v2079
      %v2088 = vpack.c.bf16 %v2082, %v2080
      %v2089 = vpack.c.bf16 %v2085, %v2083
      %v2090 = vpack.c.bf16 %v2086, %v2084
      %2091 = vst [vmem:[#allocation4 + $0x20] sm:$0xff] %v2087
      %2092 = vst [vmem:[#allocation4 + $0x28] sm:$0xff] %v2088
      %2093 = vst [vmem:[#allocation4 + $0x30] sm:$0xff] %v2089
      %2094 = vst [vmem:[#allocation4 + $0x38] sm:$0xff] %v2090
      %2095 = vrot.lane.b32.xlu0 %v2007, 15
      %v2096 = vpop.permute.xlu0 %2095
      %2097 = vrot.lane.b32.xlu0 %v2009, 15
      %v2098 = vpop.permute.xlu0 %2097
      %2099 = vrot.lane.b32.xlu0 %v2011, 15
      %v2100 = vpop.permute.xlu0 %2099
      %2101 = vrot.lane.b32.xlu0 %v2013, 15
      %v2102 = vpop.permute.xlu0 %2101
      %2103 = vrot.lane.b32.xlu0 %v2008, 15
      %v2104 = vpop.permute.xlu0 %2103
      %2105 = vrot.lane.b32.xlu0 %v2010, 15
      %v2106 = vpop.permute.xlu0 %2105
      %2107 = vrot.lane.b32.xlu0 %v2012, 15
      %v2108 = vpop.permute.xlu0 %2107
      %2109 = vrot.lane.b32.xlu0 %v2014, 15
      %v2110 = vpop.permute.xlu0 %2109
      %v2111 = vsel %vm645, %v2096, %v2104
      %v2112 = vsel %vm645, %v2098, %v2106
      %v2113 = vsel %vm645, %v2100, %v2108
      %v2114 = vsel %vm645, %v2102, %v2110
      %v2115 = vsel %vm645, %v2104, %v2096
      %v2116 = vsel %vm645, %v2106, %v2098
      %v2117 = vsel %vm645, %v2108, %v2100
      %v2118 = vsel %vm645, %v2110, %v2102
      %v2119 = vmul.f32 %v2115, %v651
      %v2120 = vmul.f32 %v2111, %v655
      %v2121 = vmul.f32 %v2116, %v651
      %v2122 = vmul.f32 %v2112, %v655
      %v2123 = vmul.f32 %v2117, %v651
      %v2124 = vmul.f32 %v2113, %v655
      %v2125 = vmul.f32 %v2118, %v651
      %v2126 = vmul.f32 %v2114, %v655
      %v2127 = vpack.c.bf16 %v2121, %v2119
      %v2128 = vpack.c.bf16 %v2122, %v2120
      %v2129 = vpack.c.bf16 %v2125, %v2123
      %v2130 = vpack.c.bf16 %v2126, %v2124
      %2131 = vst [vmem:[#allocation4 + $0x40] sm:$0xff] %v2127
      %2132 = vst [vmem:[#allocation4 + $0x48] sm:$0xff] %v2128
      %2133 = vst [vmem:[#allocation4 + $0x50] sm:$0xff] %v2129
      %2134 = vst [vmem:[#allocation4 + $0x58] sm:$0xff] %v2130
      %2135 = vrot.lane.b32.xlu0 %v2007, 1
      %v2136 = vpop.permute.xlu0 %2135
      %2137 = vrot.lane.b32.xlu0 %v2009, 1
      %v2138 = vpop.permute.xlu0 %2137
      %2139 = vrot.lane.b32.xlu0 %v2011, 1
      %v2140 = vpop.permute.xlu0 %2139
      %2141 = vrot.lane.b32.xlu0 %v2013, 1
      %v2142 = vpop.permute.xlu0 %2141
      %2143 = vrot.lane.b32.xlu0 %v2008, 1
      %v2144 = vpop.permute.xlu0 %2143
      %2145 = vrot.lane.b32.xlu0 %v2010, 1
      %v2146 = vpop.permute.xlu0 %2145
      %2147 = vrot.lane.b32.xlu0 %v2012, 1
      %v2148 = vpop.permute.xlu0 %2147
      %2149 = vrot.lane.b32.xlu0 %v2014, 1
      %v2150 = vpop.permute.xlu0 %2149
      %v2151 = vsel %vm662, %v2136, %v2144
      %v2152 = vsel %vm662, %v2138, %v2146
      %v2153 = vsel %vm662, %v2140, %v2148
      %v2154 = vsel %vm662, %v2142, %v2150
      %v2155 = vsel %vm662, %v2144, %v2136
      %v2156 = vsel %vm662, %v2146, %v2138
      %v2157 = vsel %vm662, %v2148, %v2140
      %v2158 = vsel %vm662, %v2150, %v2142
      %v2159 = vmul.f32 %v2155, %v668
      %v2160 = vmul.f32 %v2151, %v672
      %v2161 = vmul.f32 %v2156, %v668
      %v2162 = vmul.f32 %v2152, %v672
      %v2163 = vmul.f32 %v2157, %v668
      %v2164 = vmul.f32 %v2153, %v672
      %v2165 = vmul.f32 %v2158, %v668
      %v2166 = vmul.f32 %v2154, %v672
      %v2167 = vpack.c.bf16 %v2161, %v2159
      %v2168 = vpack.c.bf16 %v2162, %v2160
      %v2169 = vpack.c.bf16 %v2165, %v2163
      %v2170 = vpack.c.bf16 %v2166, %v2164
      %2171 = vst [vmem:[#allocation4 + $0x60] sm:$0xff] %v2167
      %2172 = vst [vmem:[#allocation4 + $0x68] sm:$0xff] %v2168
      %2173 = vst [vmem:[#allocation4 + $0x70] sm:$0xff] %v2169
      %2174 = vst [vmem:[#allocation4 + $0x78] sm:$0xff] %v2170
      %v2175 = vpack.c.bf16 %v2009, %v2007
      %v2176 = vpack.c.bf16 %v2010, %v2008
      %v2177 = vpack.c.bf16 %v2013, %v2011
      %v2178 = vpack.c.bf16 %v2014, %v2012
      %2179 = vst [vmem:[#allocation4 + $0x80] sm:$0xff] %v2175
      %2180 = vst [vmem:[#allocation4 + $0x88] sm:$0xff] %v2176
      %2181 = vst [vmem:[#allocation4 + $0x90] sm:$0xff] %v2177
      %2182 = vst [vmem:[#allocation4 + $0x98] sm:$0xff] %v2178
      %2183 = vrot.lane.b32.xlu0 %v2007, 127
      %v2184 = vpop.permute.xlu0 %2183
      %2185 = vrot.lane.b32.xlu0 %v2009, 127
      %v2186 = vpop.permute.xlu0 %2185
      %2187 = vrot.lane.b32.xlu0 %v2011, 127
      %v2188 = vpop.permute.xlu0 %2187
      %2189 = vrot.lane.b32.xlu0 %v2013, 127
      %v2190 = vpop.permute.xlu0 %2189
      %2191 = vrot.lane.b32.xlu0 %v2008, 127
      %v2192 = vpop.permute.xlu0 %2191
      %2193 = vrot.lane.b32.xlu0 %v2010, 127
      %v2194 = vpop.permute.xlu0 %2193
      %2195 = vrot.lane.b32.xlu0 %v2012, 127
      %v2196 = vpop.permute.xlu0 %2195
      %2197 = vrot.lane.b32.xlu0 %v2014, 127
      %v2198 = vpop.permute.xlu0 %2197
      %v2199 = vsel %vm679, %v2184, %v2192
      %v2200 = vsel %vm679, %v2186, %v2194
      %v2201 = vsel %vm679, %v2188, %v2196
      %v2202 = vsel %vm679, %v2190, %v2198
      %v2203 = vsel %vm679, %v2192, %v2184
      %v2204 = vsel %vm679, %v2194, %v2186
      %v2205 = vsel %vm679, %v2196, %v2188
      %v2206 = vsel %vm679, %v2198, %v2190
      %v2207 = vmul.f32 %v2199, %v685
      %v2208 = vmul.f32 %v2203, %v689
      %v2209 = vmul.f32 %v2200, %v685
      %v2210 = vmul.f32 %v2204, %v689
      %v2211 = vmul.f32 %v2201, %v685
      %v2212 = vmul.f32 %v2205, %v689
      %v2213 = vmul.f32 %v2202, %v685
      %v2214 = vmul.f32 %v2206, %v689
      %v2215 = vpack.c.bf16 %v2209, %v2207
      %v2216 = vpack.c.bf16 %v2210, %v2208
      %v2217 = vpack.c.bf16 %v2213, %v2211
      %v2218 = vpack.c.bf16 %v2214, %v2212
      %2219 = vst [vmem:[#allocation4 + $0xa0] sm:$0xff] %v2215
      %2220 = vst [vmem:[#allocation4 + $0xa8] sm:$0xff] %v2216
      %2221 = vst [vmem:[#allocation4 + $0xb0] sm:$0xff] %v2217
      %2222 = vst [vmem:[#allocation4 + $0xb8] sm:$0xff] %v2218
      %2223 = vrot.lane.b32.xlu0 %v2007, 113
      %v2224 = vpop.permute.xlu0 %2223
      %2225 = vrot.lane.b32.xlu0 %v2009, 113
      %v2226 = vpop.permute.xlu0 %2225
      %2227 = vrot.lane.b32.xlu0 %v2011, 113
      %v2228 = vpop.permute.xlu0 %2227
      %2229 = vrot.lane.b32.xlu0 %v2013, 113
      %v2230 = vpop.permute.xlu0 %2229
      %2231 = vrot.lane.b32.xlu0 %v2008, 113
      %v2232 = vpop.permute.xlu0 %2231
      %2233 = vrot.lane.b32.xlu0 %v2010, 113
      %v2234 = vpop.permute.xlu0 %2233
      %2235 = vrot.lane.b32.xlu0 %v2012, 113
      %v2236 = vpop.permute.xlu0 %2235
      %2237 = vrot.lane.b32.xlu0 %v2014, 113
      %v2238 = vpop.permute.xlu0 %2237
      %v2239 = vsel %vm696, %v2224, %v2232
      %v2240 = vsel %vm696, %v2226, %v2234
      %v2241 = vsel %vm696, %v2228, %v2236
      %v2242 = vsel %vm696, %v2230, %v2238
      %v2243 = vsel %vm696, %v2232, %v2224
      %v2244 = vsel %vm696, %v2234, %v2226
      %v2245 = vsel %vm696, %v2236, %v2228
      %v2246 = vsel %vm696, %v2238, %v2230
      %v2247 = vmul.f32 %v2239, %v702
      %v2248 = vmul.f32 %v2243, %v706
      %v2249 = vmul.f32 %v2240, %v702
      %v2250 = vmul.f32 %v2244, %v706
      %v2251 = vmul.f32 %v2241, %v702
      %v2252 = vmul.f32 %v2245, %v706
      %v2253 = vmul.f32 %v2242, %v702
      %v2254 = vmul.f32 %v2246, %v706
      %v2255 = vpack.c.bf16 %v2249, %v2247
      %v2256 = vpack.c.bf16 %v2250, %v2248
      %v2257 = vpack.c.bf16 %v2253, %v2251
      %v2258 = vpack.c.bf16 %v2254, %v2252
      %2259 = vst [vmem:[#allocation4 + $0xc0] sm:$0xff] %v2255
      %2260 = vst [vmem:[#allocation4 + $0xc8] sm:$0xff] %v2256
      %2261 = vst [vmem:[#allocation4 + $0xd0] sm:$0xff] %v2257
      %2262 = vst [vmem:[#allocation4 + $0xd8] sm:$0xff] %v2258
      %2263 = vrot.lane.b32.xlu0 %v2007, 112
      %v2264 = vpop.permute.xlu0 %2263
      %2265 = vrot.lane.b32.xlu0 %v2009, 112
      %v2266 = vpop.permute.xlu0 %2265
      %2267 = vrot.lane.b32.xlu0 %v2011, 112
      %v2268 = vpop.permute.xlu0 %2267
      %2269 = vrot.lane.b32.xlu0 %v2013, 112
      %v2270 = vpop.permute.xlu0 %2269
      %2271 = vrot.lane.b32.xlu0 %v2008, 112
      %v2272 = vpop.permute.xlu0 %2271
      %2273 = vrot.lane.b32.xlu0 %v2010, 112
      %v2274 = vpop.permute.xlu0 %2273
      %2275 = vrot.lane.b32.xlu0 %v2012, 112
      %v2276 = vpop.permute.xlu0 %2275
      %2277 = vrot.lane.b32.xlu0 %v2014, 112
      %v2278 = vpop.permute.xlu0 %2277
      %v2279 = vsel %vm713, %v2264, %v2272
      %v2280 = vsel %vm713, %v2266, %v2274
      %v2281 = vsel %vm713, %v2268, %v2276
      %v2282 = vsel %vm713, %v2270, %v2278
      %v2283 = vsel %vm713, %v2272, %v2264
      %v2284 = vsel %vm713, %v2274, %v2266
      %v2285 = vsel %vm713, %v2276, %v2268
      %v2286 = vsel %vm713, %v2278, %v2270
      %v2287 = vmul.f32 %v2279, %v719
      %v2288 = vmul.f32 %v2283, %v723
      %v2289 = vmul.f32 %v2280, %v719
      %v2290 = vmul.f32 %v2284, %v723
      %v2291 = vmul.f32 %v2281, %v719
      %v2292 = vmul.f32 %v2285, %v723
      %v2293 = vmul.f32 %v2282, %v719
      %v2294 = vmul.f32 %v2286, %v723
      %v2295 = vpack.c.bf16 %v2289, %v2287
      %v2296 = vpack.c.bf16 %v2290, %v2288
      %v2297 = vpack.c.bf16 %v2293, %v2291
      %v2298 = vpack.c.bf16 %v2294, %v2292
      %2299 = vst [vmem:[#allocation4 + $0xe0] sm:$0xff] %v2295
      %2300 = vst [vmem:[#allocation4 + $0xe8] sm:$0xff] %v2296
      %2301 = vst [vmem:[#allocation4 + $0xf0] sm:$0xff] %v2297
      %2302 = vst [vmem:[#allocation4 + $0xf8] sm:$0xff] %v2298
      %2303 = vrot.lane.b32.xlu0 %v2007, 111
      %v2304 = vpop.permute.xlu0 %2303
      %2305 = vrot.lane.b32.xlu0 %v2009, 111
      %v2306 = vpop.permute.xlu0 %2305
      %2307 = vrot.lane.b32.xlu0 %v2011, 111
      %v2308 = vpop.permute.xlu0 %2307
      %2309 = vrot.lane.b32.xlu0 %v2013, 111
      %v2310 = vpop.permute.xlu0 %2309
      %2311 = vrot.lane.b32.xlu0 %v2008, 111
      %v2312 = vpop.permute.xlu0 %2311
      %2313 = vrot.lane.b32.xlu0 %v2010, 111
      %v2314 = vpop.permute.xlu0 %2313
      %2315 = vrot.lane.b32.xlu0 %v2012, 111
      %v2316 = vpop.permute.xlu0 %2315
      %2317 = vrot.lane.b32.xlu0 %v2014, 111
      %v2318 = vpop.permute.xlu0 %2317
      %v2319 = vsel %vm730, %v2304, %v2312
      %v2320 = vsel %vm730, %v2306, %v2314
      %v2321 = vsel %vm730, %v2308, %v2316
      %v2322 = vsel %vm730, %v2310, %v2318
      %v2323 = vsel %vm730, %v2312, %v2304
      %v2324 = vsel %vm730, %v2314, %v2306
      %v2325 = vsel %vm730, %v2316, %v2308
      %v2326 = vsel %vm730, %v2318, %v2310
      %v2327 = vmul.f32 %v2319, %v736
      %v2328 = vmul.f32 %v2323, %v740
      %v2329 = vmul.f32 %v2320, %v736
      %v2330 = vmul.f32 %v2324, %v740
      %v2331 = vmul.f32 %v2321, %v736
      %v2332 = vmul.f32 %v2325, %v740
      %v2333 = vmul.f32 %v2322, %v736
      %v2334 = vmul.f32 %v2326, %v740
      %v2335 = vpack.c.bf16 %v2329, %v2327
      %v2336 = vpack.c.bf16 %v2330, %v2328
      %v2337 = vpack.c.bf16 %v2333, %v2331
      %v2338 = vpack.c.bf16 %v2334, %v2332
      %2339 = vst [vmem:[#allocation4 + $0x100] sm:$0xff] %v2335
      %2340 = vst [vmem:[#allocation4 + $0x108] sm:$0xff] %v2336
      %2341 = vst [vmem:[#allocation4 + $0x110] sm:$0xff] %v2337
      %2342 = vst [vmem:[#allocation4 + $0x118] sm:$0xff] %v2338
      %v2343 = vld [vmem:[#allocation3] sm:$0xff]
      %v2344 = vld [vmem:[#allocation3 + $0x8] sm:$0xff]
      %v2345 = vld [vmem:[#allocation3 + $0x10] sm:$0xff]
      %v2346 = vld [vmem:[#allocation3 + $0x18] sm:$0xff]
      %v2347 = vld [vmem:[#allocation3 + $0x20] sm:$0xff]
      %v2348 = vld [vmem:[#allocation3 + $0x28] sm:$0xff]
      %v2349 = vld [vmem:[#allocation3 + $0x30] sm:$0xff]
      %v2350 = vld [vmem:[#allocation3 + $0x38] sm:$0xff]
      %v2351 = vld [vmem:[#allocation3 + $0x40] sm:$0xff]
      %v2352 = vld [vmem:[#allocation3 + $0x48] sm:$0xff]
      %v2353 = vld [vmem:[#allocation3 + $0x50] sm:$0xff]
      %v2354 = vld [vmem:[#allocation3 + $0x58] sm:$0xff]
      %v2355 = vld [vmem:[#allocation3 + $0x60] sm:$0xff]
      %v2356 = vld [vmem:[#allocation3 + $0x68] sm:$0xff]
      %v2357 = vld [vmem:[#allocation3 + $0x70] sm:$0xff]
      %v2358 = vld [vmem:[#allocation3 + $0x78] sm:$0xff]
      %v2359 = vld [vmem:[#allocation3 + $0x80] sm:$0xff]
      %v2360 = vld [vmem:[#allocation3 + $0x88] sm:$0xff]
      %v2361 = vld [vmem:[#allocation3 + $0x90] sm:$0xff]
      %v2362 = vld [vmem:[#allocation3 + $0x98] sm:$0xff]
      %v2363 = vld [vmem:[#allocation3 + $0xa0] sm:$0xff]
      %v2364 = vld [vmem:[#allocation3 + $0xa8] sm:$0xff]
      %v2365 = vld [vmem:[#allocation3 + $0xb0] sm:$0xff]
      %v2366 = vld [vmem:[#allocation3 + $0xb8] sm:$0xff]
      %v2367 = vld [vmem:[#allocation3 + $0xc0] sm:$0xff]
      %v2368 = vld [vmem:[#allocation3 + $0xc8] sm:$0xff]
      %v2369 = vld [vmem:[#allocation3 + $0xd0] sm:$0xff]
      %v2370 = vld [vmem:[#allocation3 + $0xd8] sm:$0xff]
      %v2371 = vld [vmem:[#allocation3 + $0xe0] sm:$0xff]
      %v2372 = vld [vmem:[#allocation3 + $0xe8] sm:$0xff]
      %v2373 = vld [vmem:[#allocation3 + $0xf0] sm:$0xff]
      %v2374 = vld [vmem:[#allocation3 + $0xf8] sm:$0xff]
      %v2375 = vld [vmem:[#allocation3 + $0x100] sm:$0xff]
      %v2376 = vld [vmem:[#allocation3 + $0x108] sm:$0xff]
      %v2377 = vld [vmem:[#allocation3 + $0x110] sm:$0xff]
      %v2378 = vld [vmem:[#allocation3 + $0x118] sm:$0xff]
      %v2379 = vld [vmem:[%s7] sm:$0xff]
      %v2380 = vld [vmem:[%s7 + $0x8] sm:$0xf]
      %v2381 = vld [vmem:[%s7 + $0xc] sm:$0xff]
      %v2382 = vld [vmem:[%s7 + $0x14] sm:$0xf]
      %v2383 = vld [vmem:[%s7 + $0x18] sm:$0xff]
      %v2384 = vld [vmem:[%s7 + $0x20] sm:$0xf]
      %v2385 = vld [vmem:[%s7 + $0x24] sm:$0xff]
      %v2386 = vld [vmem:[%s7 + $0x2c] sm:$0xf]
      %v2387 = vld [vmem:[#allocation4] sm:$0xff]
      %v2388 = vld [vmem:[#allocation4 + $0x8] sm:$0xff]
      %v2389 = vld [vmem:[#allocation4 + $0x10] sm:$0xff]
      %v2390 = vld [vmem:[#allocation4 + $0x18] sm:$0xff]
      %v2391 = vld [vmem:[#allocation4 + $0x20] sm:$0xff]
      %v2392 = vld [vmem:[#allocation4 + $0x28] sm:$0xff]
      %v2393 = vld [vmem:[#allocation4 + $0x30] sm:$0xff]
      %v2394 = vld [vmem:[#allocation4 + $0x38] sm:$0xff]
      %v2395 = vld [vmem:[#allocation4 + $0x40] sm:$0xff]
      %v2396 = vld [vmem:[#allocation4 + $0x48] sm:$0xff]
      %v2397 = vld [vmem:[#allocation4 + $0x50] sm:$0xff]
      %v2398 = vld [vmem:[#allocation4 + $0x58] sm:$0xff]
      %v2399 = vld [vmem:[#allocation4 + $0x60] sm:$0xff]
      %v2400 = vld [vmem:[#allocation4 + $0x68] sm:$0xff]
      %v2401 = vld [vmem:[#allocation4 + $0x70] sm:$0xff]
      %v2402 = vld [vmem:[#allocation4 + $0x78] sm:$0xff]
      %v2403 = vld [vmem:[#allocation4 + $0x80] sm:$0xff]
      %v2404 = vld [vmem:[#allocation4 + $0x88] sm:$0xff]
      %v2405 = vld [vmem:[#allocation4 + $0x90] sm:$0xff]
      %v2406 = vld [vmem:[#allocation4 + $0x98] sm:$0xff]
      %v2407 = vld [vmem:[#allocation4 + $0xa0] sm:$0xff]
      %v2408 = vld [vmem:[#allocation4 + $0xa8] sm:$0xff]
      %v2409 = vld [vmem:[#allocation4 + $0xb0] sm:$0xff]
      %v2410 = vld [vmem:[#allocation4 + $0xb8] sm:$0xff]
      %v2411 = vld [vmem:[#allocation4 + $0xc0] sm:$0xff]
      %v2412 = vld [vmem:[#allocation4 + $0xc8] sm:$0xff]
      %v2413 = vld [vmem:[#allocation4 + $0xd0] sm:$0xff]
      %v2414 = vld [vmem:[#allocation4 + $0xd8] sm:$0xff]
      %v2415 = vld [vmem:[#allocation4 + $0xe0] sm:$0xff]
      %v2416 = vld [vmem:[#allocation4 + $0xe8] sm:$0xff]
      %v2417 = vld [vmem:[#allocation4 + $0xf0] sm:$0xff]
      %v2418 = vld [vmem:[#allocation4 + $0xf8] sm:$0xff]
      %v2419 = vld [vmem:[#allocation4 + $0x100] sm:$0xff]
      %v2420 = vld [vmem:[#allocation4 + $0x108] sm:$0xff]
      %v2421 = vld [vmem:[#allocation4 + $0x110] sm:$0xff]
      %v2422 = vld [vmem:[#allocation4 + $0x118] sm:$0xff]
      %v2423 = vld [vmem:[%s8] sm:$0xff]
      %v2424 = vld [vmem:[%s8 + $0x8] sm:$0xf]
      %v2425 = vld [vmem:[%s8 + $0xc] sm:$0xff]
      %v2426 = vld [vmem:[%s8 + $0x14] sm:$0xf]
      %v2427 = vld [vmem:[%s8 + $0x18] sm:$0xff]
      %v2428 = vld [vmem:[%s8 + $0x20] sm:$0xf]
      %v2429 = vld [vmem:[%s8 + $0x24] sm:$0xff]
      %v2430 = vld [vmem:[%s8 + $0x2c] sm:$0xf]
      %v2439 = vunpack.c.l.b16 %v2423
      %v2440 = vunpack.c.h.b16 %v2423
      %v2441 = vunpack.c.l.b16 %v2424
      %v2442 = vunpack.c.l.b16 %v2425
      %v2443 = vunpack.c.h.b16 %v2425
      %v2444 = vunpack.c.l.b16 %v2426
      %v2445 = vunpack.c.l.b16 %v2427
      %v2446 = vunpack.c.h.b16 %v2427
      %v2447 = vunpack.c.l.b16 %v2428
      %v2448 = vunpack.c.l.b16 %v2429
      %v2449 = vunpack.c.h.b16 %v2429
      %v2450 = vunpack.c.l.b16 %v2430
      %v2451 = vpack.c.b16 %v2442, %v2439
      %v2452 = vpack.c.b16 %v2443, %v2440
      %v2453 = vpack.c.b16 %v2444, %v2441
      %v2454 = vpack.c.b16 %v2448, %v2445
      %v2455 = vpack.c.b16 %v2449, %v2446
      %v2456 = vpack.c.b16 %v2450, %v2447
      %v2462 = vsel %vm1720, %v2453, 0
      %v2465 = vsel %vm1720, %v2456, 0
      %2467 = vmatprep.subr.bf16.mxu0 %v2388
      %2468 = vmatpush1.bf16.msra.mxu0 %v2387
      %2469 = vmatprep.subr.bf16.mxu0 %v2390
      %2470 = vmatpush1.bf16.msra.mxu0 %v2389
      %2471 = vmatprep.subr.bf16.mxu0 %v2392
      %2472 = vmatpush1.bf16.msra.mxu0 %v2391
      %2473 = vmatprep.subr.bf16.mxu0 %v2394
      %2474 = vmatpush1.bf16.msra.mxu0 %v2393
      %2475 = vmatprep.subr.bf16.mxu0 %v2396
      %2476 = vmatpush1.bf16.msra.mxu0 %v2395
      %2477 = vmatprep.subr.bf16.mxu0 %v2398
      %2478 = vmatpush1.bf16.msra.mxu0 %v2397
      %2479 = vmatprep.subr.bf16.mxu0 %v2400
      %2480 = vmatpush1.bf16.msra.mxu0 %v2399
      %2481 = vmatprep.subr.bf16.mxu0 %v2402
      %2482 = vmatpush1.bf16.msra.mxu0 %v2401
      %2483 = vmatprep.subr.bf16.mxu0 %v2404
      %2484 = vmatpush1.bf16.msra.mxu0 %v2403
      %2485 = vmatprep.subr.bf16.mxu0 %v2406
      %2486 = vmatpush1.bf16.msra.mxu0 %v2405
      %2487 = vmatprep.subr.bf16.mxu0 %v2408
      %2488 = vmatpush1.bf16.msra.mxu0 %v2407
      %2489 = vmatprep.subr.bf16.mxu0 %v2410
      %2490 = vmatpush1.bf16.msra.mxu0 %v2409
      %2491 = vmatprep.subr.bf16.mxu0 %v2412
      %2492 = vmatpush1.bf16.msra.mxu0 %v2411
      %2493 = vmatprep.subr.bf16.mxu0 %v2414
      %2494 = vmatpush1.bf16.msra.mxu0 %v2413
      %2495 = vmatprep.subr.bf16.mxu0 %v2416
      %2496 = vmatpush1.bf16.msra.mxu0 %v2415
      %2497 = vmatprep.subr.bf16.mxu0 %v2418
      %2498 = vmatpush1.bf16.msra.mxu0 %v2417
      %2499 = vmatprep.mubr.bf16.mxu0 %v2452
      %2500 = vmatmul.mubr.bf16.gmra.mrb[0].mxu0 %v2451
      %v2501 = vpop.f32.mrb[0].mxu0
      %v2502 = vadd.f32 0.0, %v2501
      %v2503 = vpop.f32.mrb[0].mxu0
      %v2504 = vadd.f32 0.0, %v2503
      %v2505 = vpop.f32.mrb[0].mxu0
      %v2506 = vadd.f32 0.0, %v2505
      %v2507 = vpop.f32.mrb[0].mxu0
      %v2508 = vadd.f32 0.0, %v2507
      %2509 = vmatprep.mubr.bf16.mxu0 %v2455
      %2510 = vmatmul.mubr.bf16.gmra.mrb[0].mxu0 %v2454
      %v2511 = vpop.f32.mrb[0].mxu0
      %v2512 = vadd.f32 0.0, %v2511
      %v2513 = vpop.f32.mrb[0].mxu0
      %v2514 = vadd.f32 0.0, %v2513
      %v2515 = vpop.f32.mrb[0].mxu0
      %v2516 = vadd.f32 0.0, %v2515
      %v2517 = vpop.f32.mrb[0].mxu0
      %v2518 = vadd.f32 0.0, %v2517
      %2519 = vdwg.mxu0
      %2520 = vmatprep.subr.bf16.mxu0 %v2420
      %2521 = vmatpush1.bf16.msra.mxu0 %v2419
      %2522 = vmatprep.subr.bf16.mxu0 %v2422
      %2523 = vmatpush1.bf16.msra.mxu0 %v2421
      %2524 = vmatprep.subr.bf16.mxu0 0
      %2525 = vmatpush1.bf16.msra.mxu0 0
      %2526 = vmatprep.subr.bf16.mxu0 0
      %2527 = vmatpush1.bf16.msra.mxu0 0
      %2528 = vmatprep.subr.bf16.mxu0 0
      %2529 = vmatpush1.bf16.msra.mxu0 0
      %2530 = vmatprep.subr.bf16.mxu0 0
      %2531 = vmatpush1.bf16.msra.mxu0 0
      %2532 = vmatprep.subr.bf16.mxu0 0
      %2533 = vmatpush1.bf16.msra.mxu0 0
      %2534 = vmatprep.subr.bf16.mxu0 0
      %2535 = vmatpush1.bf16.msra.mxu0 0
      %2536 = vmatprep.subr.bf16.mxu0 0
      %2537 = vmatpush1.bf16.msra.mxu0 0
      %2538 = vmatprep.subr.bf16.mxu0 0
      %2539 = vmatpush1.bf16.msra.mxu0 0
      %2540 = vmatprep.subr.bf16.mxu0 0
      %2541 = vmatpush1.bf16.msra.mxu0 0
      %2542 = vmatprep.subr.bf16.mxu0 0
      %2543 = vmatpush1.bf16.msra.mxu0 0
      %2544 = vmatprep.subr.bf16.mxu0 0
      %2545 = vmatpush1.bf16.msra.mxu0 0
      %2546 = vmatprep.subr.bf16.mxu0 0
      %2547 = vmatpush1.bf16.msra.mxu0 0
      %2548 = vmatprep.subr.bf16.mxu0 0
      %2549 = vmatpush1.bf16.msra.mxu0 0
      %2550 = vmatprep.subr.bf16.mxu0 0
      %2551 = vmatpush1.bf16.msra.mxu0 0
      %2552 = vmatprep.mubr.bf16.mxu0 0
      %2553 = vmatmul.mubr.bf16.gmra.mrb[0].mxu0 %v2462
      %v2554 = vpop.f32.mrb[0].mxu0
      %v2555 = vadd.f32 %v2502, %v2554
      %v2556 = vpop.f32.mrb[0].mxu0
      %v2557 = vadd.f32 %v2504, %v2556
      %v2558 = vpop.f32.mrb[0].mxu0
      %v2559 = vadd.f32 %v2506, %v2558
      %v2560 = vpop.f32.mrb[0].mxu0
      %v2561 = vadd.f32 %v2508, %v2560
      %2562 = vmatprep.mubr.bf16.mxu0 0
      %2563 = vmatmul.mubr.bf16.gmra.mrb[0].mxu0 %v2465
      %v2564 = vpop.f32.mrb[0].mxu0
      %v2565 = vadd.f32 %v2512, %v2564
      %v2566 = vpop.f32.mrb[0].mxu0
      %v2567 = vadd.f32 %v2514, %v2566
      %v2568 = vpop.f32.mrb[0].mxu0
      %v2569 = vadd.f32 %v2516, %v2568
      %v2570 = vpop.f32.mrb[0].mxu0
      %v2571 = vadd.f32 %v2518, %v2570
      %2572 = vdwg.mxu0
      %v2581 = vunpack.c.l.b16 %v2379
      %v2582 = vunpack.c.h.b16 %v2379
      %v2583 = vunpack.c.l.b16 %v2380
      %v2584 = vunpack.c.l.b16 %v2381
      %v2585 = vunpack.c.h.b16 %v2381
      %v2586 = vunpack.c.l.b16 %v2382
      %v2587 = vunpack.c.l.b16 %v2383
      %v2588 = vunpack.c.h.b16 %v2383
      %v2589 = vunpack.c.l.b16 %v2384
      %v2590 = vunpack.c.l.b16 %v2385
      %v2591 = vunpack.c.h.b16 %v2385
      %v2592 = vunpack.c.l.b16 %v2386
      %v2593 = vpack.c.b16 %v2584, %v2581
      %v2594 = vpack.c.b16 %v2585, %v2582
      %v2595 = vpack.c.b16 %v2586, %v2583
      %v2596 = vpack.c.b16 %v2590, %v2587
      %v2597 = vpack.c.b16 %v2591, %v2588
      %v2598 = vpack.c.b16 %v2592, %v2589
      %v2604 = vsel %vm1720, %v2595, 0
      %v2607 = vsel %vm1720, %v2598, 0
      %2609 = vmatprep.subr.bf16.mxu0 %v2344
      %2610 = vmatpush1.bf16.msra.mxu0 %v2343
      %2611 = vmatprep.subr.bf16.mxu0 %v2346
      %2612 = vmatpush1.bf16.msra.mxu0 %v2345
      %2613 = vmatprep.subr.bf16.mxu0 %v2348
      %2614 = vmatpush1.bf16.msra.mxu0 %v2347
      %2615 = vmatprep.subr.bf16.mxu0 %v2350
      %2616 = vmatpush1.bf16.msra.mxu0 %v2349
      %2617 = vmatprep.subr.bf16.mxu0 %v2352
      %2618 = vmatpush1.bf16.msra.mxu0 %v2351
      %2619 = vmatprep.subr.bf16.mxu0 %v2354
      %2620 = vmatpush1.bf16.msra.mxu0 %v2353
      %2621 = vmatprep.subr.bf16.mxu0 %v2356
      %2622 = vmatpush1.bf16.msra.mxu0 %v2355
      %2623 = vmatprep.subr.bf16.mxu0 %v2358
      %2624 = vmatpush1.bf16.msra.mxu0 %v2357
      %2625 = vmatprep.subr.bf16.mxu0 %v2360
      %2626 = vmatpush1.bf16.msra.mxu0 %v2359
      %2627 = vmatprep.subr.bf16.mxu0 %v2362
      %2628 = vmatpush1.bf16.msra.mxu0 %v2361
      %2629 = vmatprep.subr.bf16.mxu0 %v2364
      %2630 = vmatpush1.bf16.msra.mxu0 %v2363
      %2631 = vmatprep.subr.bf16.mxu0 %v2366
      %2632 = vmatpush1.bf16.msra.mxu0 %v2365
      %2633 = vmatprep.subr.bf16.mxu0 %v2368
      %2634 = vmatpush1.bf16.msra.mxu0 %v2367
      %2635 = vmatprep.subr.bf16.mxu0 %v2370
      %2636 = vmatpush1.bf16.msra.mxu0 %v2369
      %2637 = vmatprep.subr.bf16.mxu0 %v2372
      %2638 = vmatpush1.bf16.msra.mxu0 %v2371
      %2639 = vmatprep.subr.bf16.mxu0 %v2374
      %2640 = vmatpush1.bf16.msra.mxu0 %v2373
      %2641 = vmatprep.mubr.bf16.mxu0 %v2594
      %2642 = vmatmul.mubr.bf16.gmra.mrb[0].mxu0 %v2593
      %v2643 = vpop.f32.mrb[0].mxu0
      %v2644 = vadd.f32 %v2555, %v2643
      %v2645 = vpop.f32.mrb[0].mxu0
      %v2646 = vadd.f32 %v2557, %v2645
      %v2647 = vpop.f32.mrb[0].mxu0
      %v2648 = vadd.f32 %v2559, %v2647
      %v2649 = vpop.f32.mrb[0].mxu0
      %v2650 = vadd.f32 %v2561, %v2649
      %2651 = vmatprep.mubr.bf16.mxu0 %v2597
      %2652 = vmatmul.mubr.bf16.gmra.mrb[0].mxu0 %v2596
      %v2653 = vpop.f32.mrb[0].mxu0
      %v2654 = vadd.f32 %v2565, %v2653
      %v2655 = vpop.f32.mrb[0].mxu0
      %v2656 = vadd.f32 %v2567, %v2655
      %v2657 = vpop.f32.mrb[0].mxu0
      %v2658 = vadd.f32 %v2569, %v2657
      %v2659 = vpop.f32.mrb[0].mxu0
      %v2660 = vadd.f32 %v2571, %v2659
      %2661 = vdwg.mxu0
      %2662 = vmatprep.subr.bf16.mxu0 %v2376
      %2663 = vmatpush1.bf16.msra.mxu0 %v2375
      %2664 = vmatprep.subr.bf16.mxu0 %v2378
      %2665 = vmatpush1.bf16.msra.mxu0 %v2377
      %2666 = vmatprep.subr.bf16.mxu0 0
      %2667 = vmatpush1.bf16.msra.mxu0 0
      %2668 = vmatprep.subr.bf16.mxu0 0
      %2669 = vmatpush1.bf16.msra.mxu0 0
      %2670 = vmatprep.subr.bf16.mxu0 0
      %2671 = vmatpush1.bf16.msra.mxu0 0
      %2672 = vmatprep.subr.bf16.mxu0 0
      %2673 = vmatpush1.bf16.msra.mxu0 0
      %2674 = vmatprep.subr.bf16.mxu0 0
      %2675 = vmatpush1.bf16.msra.mxu0 0
      %2676 = vmatprep.subr.bf16.mxu0 0
      %2677 = vmatpush1.bf16.msra.mxu0 0
      %2678 = vmatprep.subr.bf16.mxu0 0
      %2679 = vmatpush1.bf16.msra.mxu0 0
      %2680 = vmatprep.subr.bf16.mxu0 0
      %2681 = vmatpush1.bf16.msra.mxu0 0
      %2682 = vmatprep.subr.bf16.mxu0 0
      %2683 = vmatpush1.bf16.msra.mxu0 0
      %2684 = vmatprep.subr.bf16.mxu0 0
      %2685 = vmatpush1.bf16.msra.mxu0 0
      %2686 = vmatprep.subr.bf16.mxu0 0
      %2687 = vmatpush1.bf16.msra.mxu0 0
      %2688 = vmatprep.subr.bf16.mxu0 0
      %2689 = vmatpush1.bf16.msra.mxu0 0
      %2690 = vmatprep.subr.bf16.mxu0 0
      %2691 = vmatpush1.bf16.msra.mxu0 0
      %2692 = vmatprep.subr.bf16.mxu0 0
      %2693 = vmatpush1.bf16.msra.mxu0 0
      %2694 = vmatprep.mubr.bf16.mxu0 0
      %2695 = vmatmul.mubr.bf16.gmra.mrb[0].mxu0 %v2604
      %v2696 = vpop.f32.mrb[0].mxu0
      %v2697 = vadd.f32 %v2644, %v2696
      %v2698 = vpop.f32.mrb[0].mxu0
      %v2699 = vadd.f32 %v2646, %v2698
      %v2700 = vpop.f32.mrb[0].mxu0
      %v2701 = vadd.f32 %v2648, %v2700
      %v2702 = vpop.f32.mrb[0].mxu0
      %v2703 = vadd.f32 %v2650, %v2702
      %2704 = vmatprep.mubr.bf16.mxu0 0
      %2705 = vmatmul.mubr.bf16.gmra.mrb[0].mxu0 %v2607
      %v2706 = vpop.f32.mrb[0].mxu0
      %v2707 = vadd.f32 %v2654, %v2706
      %v2708 = vpop.f32.mrb[0].mxu0
      %v2709 = vadd.f32 %v2656, %v2708
      %v2710 = vpop.f32.mrb[0].mxu0
      %v2711 = vadd.f32 %v2658, %v2710
      %v2712 = vpop.f32.mrb[0].mxu0
      %v2713 = vadd.f32 %v2660, %v2712
      %2714 = vdwg.mxu0
      %v2715 = vld [vmem:[%s9] sm:$0xff]
      %v2716 = vld [vmem:[%s9 + $0x8] sm:$0xff]
      %v2717 = vld [vmem:[%s9 + $0x10] sm:$0xff]
      %v2718 = vld [vmem:[%s9 + $0x18] sm:$0xff]
      %2720 = vset.pattern.permute.xlu0 0
      %2721 = vperm.xlu0 %2720, %v2715
      %v2722 = vpop.permute.xlu0 %2721
      %2725 = vset.pattern.permute.xlu0 0
      %2726 = vperm.xlu0 %2725, %v2716
      %v2727 = vpop.permute.xlu0 %2726
      %2730 = vset.pattern.permute.xlu0 0
      %2731 = vperm.xlu0 %2730, %v2717
      %v2732 = vpop.permute.xlu0 %2731
      %2735 = vset.pattern.permute.xlu0 0
      %2736 = vperm.xlu0 %2735, %v2718
      %v2737 = vpop.permute.xlu0 %2736
      %v2739 = vadd.f32 %v2697, %v2722
      %v2740 = vadd.f32 %v2699, %v2722
      %v2741 = vadd.f32 %v2701, %v2727
      %v2742 = vadd.f32 %v2703, %v2727
      %v2743 = vadd.f32 %v2707, %v2732
      %v2744 = vadd.f32 %v2709, %v2732
      %v2745 = vadd.f32 %v2711, %v2737
      %v2746 = vadd.f32 %v2713, %v2737
      %v2747 = vmax.f32 %v2739, 0.0
      %v2748 = vmax.f32 %v2740, 0.0
      %v2749 = vmax.f32 %v2741, 0.0
      %v2750 = vmax.f32 %v2742, 0.0
      %v2751 = vmax.f32 %v2743, 0.0
      %v2752 = vmax.f32 %v2744, 0.0
      %v2753 = vmax.f32 %v2745, 0.0
      %v2754 = vmax.f32 %v2746, 0.0
      %2755 = vrot.lane.b32.xlu0 %v2747, 17
      %v2756 = vpop.permute.xlu0 %2755
      %2757 = vrot.lane.b32.xlu0 %v2749, 17
      %v2758 = vpop.permute.xlu0 %2757
      %2759 = vrot.lane.b32.xlu0 %v2751, 17
      %v2760 = vpop.permute.xlu0 %2759
      %2761 = vrot.lane.b32.xlu0 %v2753, 17
      %v2762 = vpop.permute.xlu0 %2761
      %2763 = vrot.lane.b32.xlu0 %v2748, 17
      %v2764 = vpop.permute.xlu0 %2763
      %2765 = vrot.lane.b32.xlu0 %v2750, 17
      %v2766 = vpop.permute.xlu0 %2765
      %2767 = vrot.lane.b32.xlu0 %v2752, 17
      %v2768 = vpop.permute.xlu0 %2767
      %2769 = vrot.lane.b32.xlu0 %v2754, 17
      %v2770 = vpop.permute.xlu0 %2769
      %v2771 = vsel %vm611, %v2756, %v2764
      %v2772 = vsel %vm611, %v2758, %v2766
      %v2773 = vsel %vm611, %v2760, %v2768
      %v2774 = vsel %vm611, %v2762, %v2770
      %v2775 = vsel %vm611, %v2764, %v2756
      %v2776 = vsel %vm611, %v2766, %v2758
      %v2777 = vsel %vm611, %v2768, %v2760
      %v2778 = vsel %vm611, %v2770, %v2762
      %v2779 = vmul.f32 %v2775, %v617
      %v2780 = vmul.f32 %v2771, %v621
      %v2781 = vmul.f32 %v2776, %v617
      %v2782 = vmul.f32 %v2772, %v621
      %v2783 = vmul.f32 %v2777, %v617
      %v2784 = vmul.f32 %v2773, %v621
      %v2785 = vmul.f32 %v2778, %v617
      %v2786 = vmul.f32 %v2774, %v621
      %v2787 = vpack.c.bf16 %v2781, %v2779
      %v2788 = vpack.c.bf16 %v2782, %v2780
      %v2789 = vpack.c.bf16 %v2785, %v2783
      %v2790 = vpack.c.bf16 %v2786, %v2784
      %2791 = vst [vmem:[#allocation5] sm:$0xff] %v2787
      %2792 = vst [vmem:[#allocation5 + $0x8] sm:$0xff] %v2788
      %2793 = vst [vmem:[#allocation5 + $0x10] sm:$0xff] %v2789
      %2794 = vst [vmem:[#allocation5 + $0x18] sm:$0xff] %v2790
      %2795 = vrot.lane.b32.xlu0 %v2747, 16
      %v2796 = vpop.permute.xlu0 %2795
      %2797 = vrot.lane.b32.xlu0 %v2749, 16
      %v2798 = vpop.permute.xlu0 %2797
      %2799 = vrot.lane.b32.xlu0 %v2751, 16
      %v2800 = vpop.permute.xlu0 %2799
      %2801 = vrot.lane.b32.xlu0 %v2753, 16
      %v2802 = vpop.permute.xlu0 %2801
      %2803 = vrot.lane.b32.xlu0 %v2748, 16
      %v2804 = vpop.permute.xlu0 %2803
      %2805 = vrot.lane.b32.xlu0 %v2750, 16
      %v2806 = vpop.permute.xlu0 %2805
      %2807 = vrot.lane.b32.xlu0 %v2752, 16
      %v2808 = vpop.permute.xlu0 %2807
      %2809 = vrot.lane.b32.xlu0 %v2754, 16
      %v2810 = vpop.permute.xlu0 %2809
      %v2811 = vsel %vm628, %v2796, %v2804
      %v2812 = vsel %vm628, %v2798, %v2806
      %v2813 = vsel %vm628, %v2800, %v2808
      %v2814 = vsel %vm628, %v2802, %v2810
      %v2815 = vsel %vm628, %v2804, %v2796
      %v2816 = vsel %vm628, %v2806, %v2798
      %v2817 = vsel %vm628, %v2808, %v2800
      %v2818 = vsel %vm628, %v2810, %v2802
      %v2819 = vmul.f32 %v2815, %v634
      %v2820 = vmul.f32 %v2811, %v638
      %v2821 = vmul.f32 %v2816, %v634
      %v2822 = vmul.f32 %v2812, %v638
      %v2823 = vmul.f32 %v2817, %v634
      %v2824 = vmul.f32 %v2813, %v638
      %v2825 = vmul.f32 %v2818, %v634
      %v2826 = vmul.f32 %v2814, %v638
      %v2827 = vpack.c.bf16 %v2821, %v2819
      %v2828 = vpack.c.bf16 %v2822, %v2820
      %v2829 = vpack.c.bf16 %v2825, %v2823
      %v2830 = vpack.c.bf16 %v2826, %v2824
      %2831 = vst [vmem:[#allocation5 + $0x20] sm:$0xff] %v2827
      %2832 = vst [vmem:[#allocation5 + $0x28] sm:$0xff] %v2828
      %2833 = vst [vmem:[#allocation5 + $0x30] sm:$0xff] %v2829
      %2834 = vst [vmem:[#allocation5 + $0x38] sm:$0xff] %v2830
      %2835 = vrot.lane.b32.xlu0 %v2747, 15
      %v2836 = vpop.permute.xlu0 %2835
      %2837 = vrot.lane.b32.xlu0 %v2749, 15
      %v2838 = vpop.permute.xlu0 %2837
      %2839 = vrot.lane.b32.xlu0 %v2751, 15
      %v2840 = vpop.permute.xlu0 %2839
      %2841 = vrot.lane.b32.xlu0 %v2753, 15
      %v2842 = vpop.permute.xlu0 %2841
      %2843 = vrot.lane.b32.xlu0 %v2748, 15
      %v2844 = vpop.permute.xlu0 %2843
      %2845 = vrot.lane.b32.xlu0 %v2750, 15
      %v2846 = vpop.permute.xlu0 %2845
      %2847 = vrot.lane.b32.xlu0 %v2752, 15
      %v2848 = vpop.permute.xlu0 %2847
      %2849 = vrot.lane.b32.xlu0 %v2754, 15
      %v2850 = vpop.permute.xlu0 %2849
      %v2851 = vsel %vm645, %v2836, %v2844
      %v2852 = vsel %vm645, %v2838, %v2846
      %v2853 = vsel %vm645, %v2840, %v2848
      %v2854 = vsel %vm645, %v2842, %v2850
      %v2855 = vsel %vm645, %v2844, %v2836
      %v2856 = vsel %vm645, %v2846, %v2838
      %v2857 = vsel %vm645, %v2848, %v2840
      %v2858 = vsel %vm645, %v2850, %v2842
      %v2859 = vmul.f32 %v2855, %v651
      %v2860 = vmul.f32 %v2851, %v655
      %v2861 = vmul.f32 %v2856, %v651
      %v2862 = vmul.f32 %v2852, %v655
      %v2863 = vmul.f32 %v2857, %v651
      %v2864 = vmul.f32 %v2853, %v655
      %v2865 = vmul.f32 %v2858, %v651
      %v2866 = vmul.f32 %v2854, %v655
      %v2867 = vpack.c.bf16 %v2861, %v2859
      %v2868 = vpack.c.bf16 %v2862, %v2860
      %v2869 = vpack.c.bf16 %v2865, %v2863
      %v2870 = vpack.c.bf16 %v2866, %v2864
      %2871 = vst [vmem:[#allocation5 + $0x40] sm:$0xff] %v2867
      %2872 = vst [vmem:[#allocation5 + $0x48] sm:$0xff] %v2868
      %2873 = vst [vmem:[#allocation5 + $0x50] sm:$0xff] %v2869
      %2874 = vst [vmem:[#allocation5 + $0x58] sm:$0xff] %v2870
      %2875 = vrot.lane.b32.xlu0 %v2747, 1
      %v2876 = vpop.permute.xlu0 %2875
      %2877 = vrot.lane.b32.xlu0 %v2749, 1
      %v2878 = vpop.permute.xlu0 %2877
      %2879 = vrot.lane.b32.xlu0 %v2751, 1
      %v2880 = vpop.permute.xlu0 %2879
      %2881 = vrot.lane.b32.xlu0 %v2753, 1
      %v2882 = vpop.permute.xlu0 %2881
      %2883 = vrot.lane.b32.xlu0 %v2748, 1
      %v2884 = vpop.permute.xlu0 %2883
      %2885 = vrot.lane.b32.xlu0 %v2750, 1
      %v2886 = vpop.permute.xlu0 %2885
      %2887 = vrot.lane.b32.xlu0 %v2752, 1
      %v2888 = vpop.permute.xlu0 %2887
      %2889 = vrot.lane.b32.xlu0 %v2754, 1
      %v2890 = vpop.permute.xlu0 %2889
      %v2891 = vsel %vm662, %v2876, %v2884
      %v2892 = vsel %vm662, %v2878, %v2886
      %v2893 = vsel %vm662, %v2880, %v2888
      %v2894 = vsel %vm662, %v2882, %v2890
      %v2895 = vsel %vm662, %v2884, %v2876
      %v2896 = vsel %vm662, %v2886, %v2878
      %v2897 = vsel %vm662, %v2888, %v2880
      %v2898 = vsel %vm662, %v2890, %v2882
      %v2899 = vmul.f32 %v2895, %v668
      %v2900 = vmul.f32 %v2891, %v672
      %v2901 = vmul.f32 %v2896, %v668
      %v2902 = vmul.f32 %v2892, %v672
      %v2903 = vmul.f32 %v2897, %v668
      %v2904 = vmul.f32 %v2893, %v672
      %v2905 = vmul.f32 %v2898, %v668
      %v2906 = vmul.f32 %v2894, %v672
      %v2907 = vpack.c.bf16 %v2901, %v2899
      %v2908 = vpack.c.bf16 %v2902, %v2900
      %v2909 = vpack.c.bf16 %v2905, %v2903
      %v2910 = vpack.c.bf16 %v2906, %v2904
      %2911 = vst [vmem:[#allocation5 + $0x60] sm:$0xff] %v2907
      %2912 = vst [vmem:[#allocation5 + $0x68] sm:$0xff] %v2908
      %2913 = vst [vmem:[#allocation5 + $0x70] sm:$0xff] %v2909
      %2914 = vst [vmem:[#allocation5 + $0x78] sm:$0xff] %v2910
      %v2915 = vpack.c.bf16 %v2749, %v2747
      %v2916 = vpack.c.bf16 %v2750, %v2748
      %v2917 = vpack.c.bf16 %v2753, %v2751
      %v2918 = vpack.c.bf16 %v2754, %v2752
      %2919 = vst [vmem:[#allocation5 + $0x80] sm:$0xff] %v2915
      %2920 = vst [vmem:[#allocation5 + $0x88] sm:$0xff] %v2916
      %2921 = vst [vmem:[#allocation5 + $0x90] sm:$0xff] %v2917
      %2922 = vst [vmem:[#allocation5 + $0x98] sm:$0xff] %v2918
      %2923 = vrot.lane.b32.xlu0 %v2747, 127
      %v2924 = vpop.permute.xlu0 %2923
      %2925 = vrot.lane.b32.xlu0 %v2749, 127
      %v2926 = vpop.permute.xlu0 %2925
      %2927 = vrot.lane.b32.xlu0 %v2751, 127
      %v2928 = vpop.permute.xlu0 %2927
      %2929 = vrot.lane.b32.xlu0 %v2753, 127
      %v2930 = vpop.permute.xlu0 %2929
      %2931 = vrot.lane.b32.xlu0 %v2748, 127
      %v2932 = vpop.permute.xlu0 %2931
      %2933 = vrot.lane.b32.xlu0 %v2750, 127
      %v2934 = vpop.permute.xlu0 %2933
      %2935 = vrot.lane.b32.xlu0 %v2752, 127
      %v2936 = vpop.permute.xlu0 %2935
      %2937 = vrot.lane.b32.xlu0 %v2754, 127
      %v2938 = vpop.permute.xlu0 %2937
      %v2939 = vsel %vm679, %v2924, %v2932
      %v2940 = vsel %vm679, %v2926, %v2934
      %v2941 = vsel %vm679, %v2928, %v2936
      %v2942 = vsel %vm679, %v2930, %v2938
      %v2943 = vsel %vm679, %v2932, %v2924
      %v2944 = vsel %vm679, %v2934, %v2926
      %v2945 = vsel %vm679, %v2936, %v2928
      %v2946 = vsel %vm679, %v2938, %v2930
      %v2947 = vmul.f32 %v2939, %v685
      %v2948 = vmul.f32 %v2943, %v689
      %v2949 = vmul.f32 %v2940, %v685
      %v2950 = vmul.f32 %v2944, %v689
      %v2951 = vmul.f32 %v2941, %v685
      %v2952 = vmul.f32 %v2945, %v689
      %v2953 = vmul.f32 %v2942, %v685
      %v2954 = vmul.f32 %v2946, %v689
      %v2955 = vpack.c.bf16 %v2949, %v2947
      %v2956 = vpack.c.bf16 %v2950, %v2948
      %v2957 = vpack.c.bf16 %v2953, %v2951
      %v2958 = vpack.c.bf16 %v2954, %v2952
      %2959 = vst [vmem:[#allocation5 + $0xa0] sm:$0xff] %v2955
      %2960 = vst [vmem:[#allocation5 + $0xa8] sm:$0xff] %v2956
      %2961 = vst [vmem:[#allocation5 + $0xb0] sm:$0xff] %v2957
      %2962 = vst [vmem:[#allocation5 + $0xb8] sm:$0xff] %v2958
      %2963 = vrot.lane.b32.xlu0 %v2747, 113
      %v2964 = vpop.permute.xlu0 %2963
      %2965 = vrot.lane.b32.xlu0 %v2749, 113
      %v2966 = vpop.permute.xlu0 %2965
      %2967 = vrot.lane.b32.xlu0 %v2751, 113
      %v2968 = vpop.permute.xlu0 %2967
      %2969 = vrot.lane.b32.xlu0 %v2753, 113
      %v2970 = vpop.permute.xlu0 %2969
      %2971 = vrot.lane.b32.xlu0 %v2748, 113
      %v2972 = vpop.permute.xlu0 %2971
      %2973 = vrot.lane.b32.xlu0 %v2750, 113
      %v2974 = vpop.permute.xlu0 %2973
      %2975 = vrot.lane.b32.xlu0 %v2752, 113
      %v2976 = vpop.permute.xlu0 %2975
      %2977 = vrot.lane.b32.xlu0 %v2754, 113
      %v2978 = vpop.permute.xlu0 %2977
      %v2979 = vsel %vm696, %v2964, %v2972
      %v2980 = vsel %vm696, %v2966, %v2974
      %v2981 = vsel %vm696, %v2968, %v2976
      %v2982 = vsel %vm696, %v2970, %v2978
      %v2983 = vsel %vm696, %v2972, %v2964
      %v2984 = vsel %vm696, %v2974, %v2966
      %v2985 = vsel %vm696, %v2976, %v2968
      %v2986 = vsel %vm696, %v2978, %v2970
      %v2987 = vmul.f32 %v2979, %v702
      %v2988 = vmul.f32 %v2983, %v706
      %v2989 = vmul.f32 %v2980, %v702
      %v2990 = vmul.f32 %v2984, %v706
      %v2991 = vmul.f32 %v2981, %v702
      %v2992 = vmul.f32 %v2985, %v706
      %v2993 = vmul.f32 %v2982, %v702
      %v2994 = vmul.f32 %v2986, %v706
      %v2995 = vpack.c.bf16 %v2989, %v2987
      %v2996 = vpack.c.bf16 %v2990, %v2988
      %v2997 = vpack.c.bf16 %v2993, %v2991
      %v2998 = vpack.c.bf16 %v2994, %v2992
      %2999 = vst [vmem:[#allocation5 + $0xc0] sm:$0xff] %v2995
      %3000 = vst [vmem:[#allocation5 + $0xc8] sm:$0xff] %v2996
      %3001 = vst [vmem:[#allocation5 + $0xd0] sm:$0xff] %v2997
      %3002 = vst [vmem:[#allocation5 + $0xd8] sm:$0xff] %v2998
      %3003 = vrot.lane.b32.xlu0 %v2747, 112
      %v3004 = vpop.permute.xlu0 %3003
      %3005 = vrot.lane.b32.xlu0 %v2749, 112
      %v3006 = vpop.permute.xlu0 %3005
      %3007 = vrot.lane.b32.xlu0 %v2751, 112
      %v3008 = vpop.permute.xlu0 %3007
      %3009 = vrot.lane.b32.xlu0 %v2753, 112
      %v3010 = vpop.permute.xlu0 %3009
      %3011 = vrot.lane.b32.xlu0 %v2748, 112
      %v3012 = vpop.permute.xlu0 %3011
      %3013 = vrot.lane.b32.xlu0 %v2750, 112
      %v3014 = vpop.permute.xlu0 %3013
      %3015 = vrot.lane.b32.xlu0 %v2752, 112
      %v3016 = vpop.permute.xlu0 %3015
      %3017 = vrot.lane.b32.xlu0 %v2754, 112
      %v3018 = vpop.permute.xlu0 %3017
      %v3019 = vsel %vm713, %v3004, %v3012
      %v3020 = vsel %vm713, %v3006, %v3014
      %v3021 = vsel %vm713, %v3008, %v3016
      %v3022 = vsel %vm713, %v3010, %v3018
      %v3023 = vsel %vm713, %v3012, %v3004
      %v3024 = vsel %vm713, %v3014, %v3006
      %v3025 = vsel %vm713, %v3016, %v3008
      %v3026 = vsel %vm713, %v3018, %v3010
      %v3027 = vmul.f32 %v3019, %v719
      %v3028 = vmul.f32 %v3023, %v723
      %v3029 = vmul.f32 %v3020, %v719
      %v3030 = vmul.f32 %v3024, %v723
      %v3031 = vmul.f32 %v3021, %v719
      %v3032 = vmul.f32 %v3025, %v723
      %v3033 = vmul.f32 %v3022, %v719
      %v3034 = vmul.f32 %v3026, %v723
      %v3035 = vpack.c.bf16 %v3029, %v3027
      %v3036 = vpack.c.bf16 %v3030, %v3028
      %v3037 = vpack.c.bf16 %v3033, %v3031
      %v3038 = vpack.c.bf16 %v3034, %v3032
      %3039 = vst [vmem:[#allocation5 + $0xe0] sm:$0xff] %v3035
      %3040 = vst [vmem:[#allocation5 + $0xe8] sm:$0xff] %v3036
      %3041 = vst [vmem:[#allocation5 + $0xf0] sm:$0xff] %v3037
      %3042 = vst [vmem:[#allocation5 + $0xf8] sm:$0xff] %v3038
      %3043 = vrot.lane.b32.xlu0 %v2747, 111
      %v3044 = vpop.permute.xlu0 %3043
      %3045 = vrot.lane.b32.xlu0 %v2749, 111
      %v3046 = vpop.permute.xlu0 %3045
      %3047 = vrot.lane.b32.xlu0 %v2751, 111
      %v3048 = vpop.permute.xlu0 %3047
      %3049 = vrot.lane.b32.xlu0 %v2753, 111
      %v3050 = vpop.permute.xlu0 %3049
      %3051 = vrot.lane.b32.xlu0 %v2748, 111
      %v3052 = vpop.permute.xlu0 %3051
      %3053 = vrot.lane.b32.xlu0 %v2750, 111
      %v3054 = vpop.permute.xlu0 %3053
      %3055 = vrot.lane.b32.xlu0 %v2752, 111
      %v3056 = vpop.permute.xlu0 %3055
      %3057 = vrot.lane.b32.xlu0 %v2754, 111
      %v3058 = vpop.permute.xlu0 %3057
      %v3059 = vsel %vm730, %v3044, %v3052
      %v3060 = vsel %vm730, %v3046, %v3054
      %v3061 = vsel %vm730, %v3048, %v3056
      %v3062 = vsel %vm730, %v3050, %v3058
      %v3063 = vsel %vm730, %v3052, %v3044
      %v3064 = vsel %vm730, %v3054, %v3046
      %v3065 = vsel %vm730, %v3056, %v3048
      %v3066 = vsel %vm730, %v3058, %v3050
      %v3067 = vmul.f32 %v3059, %v736
      %v3068 = vmul.f32 %v3063, %v740
      %v3069 = vmul.f32 %v3060, %v736
      %v3070 = vmul.f32 %v3064, %v740
      %v3071 = vmul.f32 %v3061, %v736
      %v3072 = vmul.f32 %v3065, %v740
      %v3073 = vmul.f32 %v3062, %v736
      %v3074 = vmul.f32 %v3066, %v740
      %v3075 = vpack.c.bf16 %v3069, %v3067
      %v3076 = vpack.c.bf16 %v3070, %v3068
      %v3077 = vpack.c.bf16 %v3073, %v3071
      %v3078 = vpack.c.bf16 %v3074, %v3072
      %3079 = vst [vmem:[#allocation5 + $0x100] sm:$0xff] %v3075
      %3080 = vst [vmem:[#allocation5 + $0x108] sm:$0xff] %v3076
      %3081 = vst [vmem:[#allocation5 + $0x110] sm:$0xff] %v3077
      %3082 = vst [vmem:[#allocation5 + $0x118] sm:$0xff] %v3078
      %v3083 = vld [vmem:[#allocation4] sm:$0xff]
      %v3084 = vld [vmem:[#allocation4 + $0x8] sm:$0xff]
      %v3085 = vld [vmem:[#allocation4 + $0x10] sm:$0xff]
      %v3086 = vld [vmem:[#allocation4 + $0x18] sm:$0xff]
      %v3087 = vld [vmem:[#allocation4 + $0x20] sm:$0xff]
      %v3088 = vld [vmem:[#allocation4 + $0x28] sm:$0xff]
      %v3089 = vld [vmem:[#allocation4 + $0x30] sm:$0xff]
      %v3090 = vld [vmem:[#allocation4 + $0x38] sm:$0xff]
      %v3091 = vld [vmem:[#allocation4 + $0x40] sm:$0xff]
      %v3092 = vld [vmem:[#allocation4 + $0x48] sm:$0xff]
      %v3093 = vld [vmem:[#allocation4 + $0x50] sm:$0xff]
      %v3094 = vld [vmem:[#allocation4 + $0x58] sm:$0xff]
      %v3095 = vld [vmem:[#allocation4 + $0x60] sm:$0xff]
      %v3096 = vld [vmem:[#allocation4 + $0x68] sm:$0xff]
      %v3097 = vld [vmem:[#allocation4 + $0x70] sm:$0xff]
      %v3098 = vld [vmem:[#allocation4 + $0x78] sm:$0xff]
      %v3099 = vld [vmem:[#allocation4 + $0x80] sm:$0xff]
      %v3100 = vld [vmem:[#allocation4 + $0x88] sm:$0xff]
      %v3101 = vld [vmem:[#allocation4 + $0x90] sm:$0xff]
      %v3102 = vld [vmem:[#allocation4 + $0x98] sm:$0xff]
      %v3103 = vld [vmem:[#allocation4 + $0xa0] sm:$0xff]
      %v3104 = vld [vmem:[#allocation4 + $0xa8] sm:$0xff]
      %v3105 = vld [vmem:[#allocation4 + $0xb0] sm:$0xff]
      %v3106 = vld [vmem:[#allocation4 + $0xb8] sm:$0xff]
      %v3107 = vld [vmem:[#allocation4 + $0xc0] sm:$0xff]
      %v3108 = vld [vmem:[#allocation4 + $0xc8] sm:$0xff]
      %v3109 = vld [vmem:[#allocation4 + $0xd0] sm:$0xff]
      %v3110 = vld [vmem:[#allocation4 + $0xd8] sm:$0xff]
      %v3111 = vld [vmem:[#allocation4 + $0xe0] sm:$0xff]
      %v3112 = vld [vmem:[#allocation4 + $0xe8] sm:$0xff]
      %v3113 = vld [vmem:[#allocation4 + $0xf0] sm:$0xff]
      %v3114 = vld [vmem:[#allocation4 + $0xf8] sm:$0xff]
      %v3115 = vld [vmem:[#allocation4 + $0x100] sm:$0xff]
      %v3116 = vld [vmem:[#allocation4 + $0x108] sm:$0xff]
      %v3117 = vld [vmem:[#allocation4 + $0x110] sm:$0xff]
      %v3118 = vld [vmem:[#allocation4 + $0x118] sm:$0xff]
      %v3119 = vld [vmem:[%s10] sm:$0xff]
      %v3120 = vld [vmem:[%s10 + $0x8] sm:$0xf]
      %v3121 = vld [vmem:[%s10 + $0xc] sm:$0xff]
      %v3122 = vld [vmem:[%s10 + $0x14] sm:$0xf]
      %v3123 = vld [vmem:[#allocation5] sm:$0xff]
      %v3124 = vld [vmem:[#allocation5 + $0x8] sm:$0xff]
      %v3125 = vld [vmem:[#allocation5 + $0x10] sm:$0xff]
      %v3126 = vld [vmem:[#allocation5 + $0x18] sm:$0xff]
      %v3127 = vld [vmem:[#allocation5 + $0x20] sm:$0xff]
      %v3128 = vld [vmem:[#allocation5 + $0x28] sm:$0xff]
      %v3129 = vld [vmem:[#allocation5 + $0x30] sm:$0xff]
      %v3130 = vld [vmem:[#allocation5 + $0x38] sm:$0xff]
      %v3131 = vld [vmem:[#allocation5 + $0x40] sm:$0xff]
      %v3132 = vld [vmem:[#allocation5 + $0x48] sm:$0xff]
      %v3133 = vld [vmem:[#allocation5 + $0x50] sm:$0xff]
      %v3134 = vld [vmem:[#allocation5 + $0x58] sm:$0xff]
      %v3135 = vld [vmem:[#allocation5 + $0x60] sm:$0xff]
      %v3136 = vld [vmem:[#allocation5 + $0x68] sm:$0xff]
      %v3137 = vld [vmem:[#allocation5 + $0x70] sm:$0xff]
      %v3138 = vld [vmem:[#allocation5 + $0x78] sm:$0xff]
      %v3139 = vld [vmem:[#allocation5 + $0x80] sm:$0xff]
      %v3140 = vld [vmem:[#allocation5 + $0x88] sm:$0xff]
      %v3141 = vld [vmem:[#allocation5 + $0x90] sm:$0xff]
      %v3142 = vld [vmem:[#allocation5 + $0x98] sm:$0xff]
      %v3143 = vld [vmem:[#allocation5 + $0xa0] sm:$0xff]
      %v3144 = vld [vmem:[#allocation5 + $0xa8] sm:$0xff]
      %v3145 = vld [vmem:[#allocation5 + $0xb0] sm:$0xff]
      %v3146 = vld [vmem:[#allocation5 + $0xb8] sm:$0xff]
      %v3147 = vld [vmem:[#allocation5 + $0xc0] sm:$0xff]
      %v3148 = vld [vmem:[#allocation5 + $0xc8] sm:$0xff]
      %v3149 = vld [vmem:[#allocation5 + $0xd0] sm:$0xff]
      %v3150 = vld [vmem:[#allocation5 + $0xd8] sm:$0xff]
      %v3151 = vld [vmem:[#allocation5 + $0xe0] sm:$0xff]
      %v3152 = vld [vmem:[#allocation5 + $0xe8] sm:$0xff]
      %v3153 = vld [vmem:[#allocation5 + $0xf0] sm:$0xff]
      %v3154 = vld [vmem:[#allocation5 + $0xf8] sm:$0xff]
      %v3155 = vld [vmem:[#allocation5 + $0x100] sm:$0xff]
      %v3156 = vld [vmem:[#allocation5 + $0x108] sm:$0xff]
      %v3157 = vld [vmem:[#allocation5 + $0x110] sm:$0xff]
      %v3158 = vld [vmem:[#allocation5 + $0x118] sm:$0xff]
      %v3159 = vld [vmem:[%s11] sm:$0xff]
      %v3160 = vld [vmem:[%s11 + $0x8] sm:$0xf]
      %v3161 = vld [vmem:[%s11 + $0xc] sm:$0xff]
      %v3162 = vld [vmem:[%s11 + $0x14] sm:$0xf]
      %v3167 = vunpack.c.l.b16 %v3159
      %v3168 = vunpack.c.h.b16 %v3159
      %v3169 = vunpack.c.l.b16 %v3160
      %v3170 = vunpack.c.l.b16 %v3161
      %v3171 = vunpack.c.h.b16 %v3161
      %v3172 = vunpack.c.l.b16 %v3162
      %v3173 = vpack.c.b16 %v3170, %v3167
      %v3174 = vpack.c.b16 %v3171, %v3168
      %v3175 = vpack.c.b16 %v3172, %v3169
      %v3179 = vsel %vm1720, %v3175, 0
      %3181 = vmatprep.subr.bf16.mxu0 %v3124
      %3182 = vmatpush1.bf16.msra.mxu0 %v3123
      %3183 = vmatprep.subr.bf16.mxu0 %v3126
      %3184 = vmatpush1.bf16.msra.mxu0 %v3125
      %3185 = vmatprep.subr.bf16.mxu0 %v3128
      %3186 = vmatpush1.bf16.msra.mxu0 %v3127
      %3187 = vmatprep.subr.bf16.mxu0 %v3130
      %3188 = vmatpush1.bf16.msra.mxu0 %v3129
      %3189 = vmatprep.subr.bf16.mxu0 %v3132
      %3190 = vmatpush1.bf16.msra.mxu0 %v3131
      %3191 = vmatprep.subr.bf16.mxu0 %v3134
      %3192 = vmatpush1.bf16.msra.mxu0 %v3133
      %3193 = vmatprep.subr.bf16.mxu0 %v3136
      %3194 = vmatpush1.bf16.msra.mxu0 %v3135
      %3195 = vmatprep.subr.bf16.mxu0 %v3138
      %3196 = vmatpush1.bf16.msra.mxu0 %v3137
      %3197 = vmatprep.subr.bf16.mxu0 %v3140
      %3198 = vmatpush1.bf16.msra.mxu0 %v3139
      %3199 = vmatprep.subr.bf16.mxu0 %v3142
      %3200 = vmatpush1.bf16.msra.mxu0 %v3141
      %3201 = vmatprep.subr.bf16.mxu0 %v3144
      %3202 = vmatpush1.bf16.msra.mxu0 %v3143
      %3203 = vmatprep.subr.bf16.mxu0 %v3146
      %3204 = vmatpush1.bf16.msra.mxu0 %v3145
      %3205 = vmatprep.subr.bf16.mxu0 %v3148
      %3206 = vmatpush1.bf16.msra.mxu0 %v3147
      %3207 = vmatprep.subr.bf16.mxu0 %v3150
      %3208 = vmatpush1.bf16.msra.mxu0 %v3149
      %3209 = vmatprep.subr.bf16.mxu0 %v3152
      %3210 = vmatpush1.bf16.msra.mxu0 %v3151
      %3211 = vmatprep.subr.bf16.mxu0 %v3154
      %3212 = vmatpush1.bf16.msra.mxu0 %v3153
      %3213 = vmatprep.mubr.bf16.mxu0 %v3174
      %3214 = vmatmul.mubr.bf16.gmra.mrb[0].mxu0 %v3173
      %v3215 = vpop.f32.mrb[0].mxu0
      %v3216 = vadd.f32 0.0, %v3215
      %v3217 = vpop.f32.mrb[0].mxu0
      %v3218 = vadd.f32 0.0, %v3217
      %v3219 = vpop.f32.mrb[0].mxu0
      %v3220 = vadd.f32 0.0, %v3219
      %v3221 = vpop.f32.mrb[0].mxu0
      %v3222 = vadd.f32 0.0, %v3221
      %3223 = vdwg.mxu0
      %3224 = vmatprep.subr.bf16.mxu0 %v3156
      %3225 = vmatpush1.bf16.msra.mxu0 %v3155
      %3226 = vmatprep.subr.bf16.mxu0 %v3158
      %3227 = vmatpush1.bf16.msra.mxu0 %v3157
      %3228 = vmatprep.subr.bf16.mxu0 0
      %3229 = vmatpush1.bf16.msra.mxu0 0
      %3230 = vmatprep.subr.bf16.mxu0 0
      %3231 = vmatpush1.bf16.msra.mxu0 0
      %3232 = vmatprep.subr.bf16.mxu0 0
      %3233 = vmatpush1.bf16.msra.mxu0 0
      %3234 = vmatprep.subr.bf16.mxu0 0
      %3235 = vmatpush1.bf16.msra.mxu0 0
      %3236 = vmatprep.subr.bf16.mxu0 0
      %3237 = vmatpush1.bf16.msra.mxu0 0
      %3238 = vmatprep.subr.bf16.mxu0 0
      %3239 = vmatpush1.bf16.msra.mxu0 0
      %3240 = vmatprep.subr.bf16.mxu0 0
      %3241 = vmatpush1.bf16.msra.mxu0 0
      %3242 = vmatprep.subr.bf16.mxu0 0
      %3243 = vmatpush1.bf16.msra.mxu0 0
      %3244 = vmatprep.subr.bf16.mxu0 0
      %3245 = vmatpush1.bf16.msra.mxu0 0
      %3246 = vmatprep.subr.bf16.mxu0 0
      %3247 = vmatpush1.bf16.msra.mxu0 0
      %3248 = vmatprep.subr.bf16.mxu0 0
      %3249 = vmatpush1.bf16.msra.mxu0 0
      %3250 = vmatprep.subr.bf16.mxu0 0
      %3251 = vmatpush1.bf16.msra.mxu0 0
      %3252 = vmatprep.subr.bf16.mxu0 0
      %3253 = vmatpush1.bf16.msra.mxu0 0
      %3254 = vmatprep.subr.bf16.mxu0 0
      %3255 = vmatpush1.bf16.msra.mxu0 0
      %3256 = vmatprep.mubr.bf16.mxu0 0
      %3257 = vmatmul.mubr.bf16.gmra.mrb[0].mxu0 %v3179
      %v3258 = vpop.f32.mrb[0].mxu0
      %v3259 = vadd.f32 %v3216, %v3258
      %v3260 = vpop.f32.mrb[0].mxu0
      %v3261 = vadd.f32 %v3218, %v3260
      %v3262 = vpop.f32.mrb[0].mxu0
      %v3263 = vadd.f32 %v3220, %v3262
      %v3264 = vpop.f32.mrb[0].mxu0
      %v3265 = vadd.f32 %v3222, %v3264
      %3266 = vdwg.mxu0
      %v3271 = vunpack.c.l.b16 %v3119
      %v3272 = vunpack.c.h.b16 %v3119
      %v3273 = vunpack.c.l.b16 %v3120
      %v3274 = vunpack.c.l.b16 %v3121
      %v3275 = vunpack.c.h.b16 %v3121
      %v3276 = vunpack.c.l.b16 %v3122
      %v3277 = vpack.c.b16 %v3274, %v3271
      %v3278 = vpack.c.b16 %v3275, %v3272
      %v3279 = vpack.c.b16 %v3276, %v3273
      %v3283 = vsel %vm1720, %v3279, 0
      %3285 = vmatprep.subr.bf16.mxu0 %v3084
      %3286 = vmatpush1.bf16.msra.mxu0 %v3083
      %3287 = vmatprep.subr.bf16.mxu0 %v3086
      %3288 = vmatpush1.bf16.msra.mxu0 %v3085
      %3289 = vmatprep.subr.bf16.mxu0 %v3088
      %3290 = vmatpush1.bf16.msra.mxu0 %v3087
      %3291 = vmatprep.subr.bf16.mxu0 %v3090
      %3292 = vmatpush1.bf16.msra.mxu0 %v3089
      %3293 = vmatprep.subr.bf16.mxu0 %v3092
      %3294 = vmatpush1.bf16.msra.mxu0 %v3091
      %3295 = vmatprep.subr.bf16.mxu0 %v3094
      %3296 = vmatpush1.bf16.msra.mxu0 %v3093
      %3297 = vmatprep.subr.bf16.mxu0 %v3096
      %3298 = vmatpush1.bf16.msra.mxu0 %v3095
      %3299 = vmatprep.subr.bf16.mxu0 %v3098
      %3300 = vmatpush1.bf16.msra.mxu0 %v3097
      %3301 = vmatprep.subr.bf16.mxu0 %v3100
      %3302 = vmatpush1.bf16.msra.mxu0 %v3099
      %3303 = vmatprep.subr.bf16.mxu0 %v3102
      %3304 = vmatpush1.bf16.msra.mxu0 %v3101
      %3305 = vmatprep.subr.bf16.mxu0 %v3104
      %3306 = vmatpush1.bf16.msra.mxu0 %v3103
      %3307 = vmatprep.subr.bf16.mxu0 %v3106
      %3308 = vmatpush1.bf16.msra.mxu0 %v3105
      %3309 = vmatprep.subr.bf16.mxu0 %v3108
      %3310 = vmatpush1.bf16.msra.mxu0 %v3107
      %3311 = vmatprep.subr.bf16.mxu0 %v3110
      %3312 = vmatpush1.bf16.msra.mxu0 %v3109
      %3313 = vmatprep.subr.bf16.mxu0 %v3112
      %3314 = vmatpush1.bf16.msra.mxu0 %v3111
      %3315 = vmatprep.subr.bf16.mxu0 %v3114
      %3316 = vmatpush1.bf16.msra.mxu0 %v3113
      %3317 = vmatprep.mubr.bf16.mxu0 %v3278
      %3318 = vmatmul.mubr.bf16.gmra.mrb[0].mxu0 %v3277
      %v3319 = vpop.f32.mrb[0].mxu0
      %v3320 = vadd.f32 %v3259, %v3319
      %v3321 = vpop.f32.mrb[0].mxu0
      %v3322 = vadd.f32 %v3261, %v3321
      %v3323 = vpop.f32.mrb[0].mxu0
      %v3324 = vadd.f32 %v3263, %v3323
      %v3325 = vpop.f32.mrb[0].mxu0
      %v3326 = vadd.f32 %v3265, %v3325
      %3327 = vdwg.mxu0
      %3328 = vmatprep.subr.bf16.mxu0 %v3116
      %3329 = vmatpush1.bf16.msra.mxu0 %v3115
      %3330 = vmatprep.subr.bf16.mxu0 %v3118
      %3331 = vmatpush1.bf16.msra.mxu0 %v3117
      %3332 = vmatprep.subr.bf16.mxu0 0
      %3333 = vmatpush1.bf16.msra.mxu0 0
      %3334 = vmatprep.subr.bf16.mxu0 0
      %3335 = vmatpush1.bf16.msra.mxu0 0
      %3336 = vmatprep.subr.bf16.mxu0 0
      %3337 = vmatpush1.bf16.msra.mxu0 0
      %3338 = vmatprep.subr.bf16.mxu0 0
      %3339 = vmatpush1.bf16.msra.mxu0 0
      %3340 = vmatprep.subr.bf16.mxu0 0
      %3341 = vmatpush1.bf16.msra.mxu0 0
      %3342 = vmatprep.subr.bf16.mxu0 0
      %3343 = vmatpush1.bf16.msra.mxu0 0
      %3344 = vmatprep.subr.bf16.mxu0 0
      %3345 = vmatpush1.bf16.msra.mxu0 0
      %3346 = vmatprep.subr.bf16.mxu0 0
      %3347 = vmatpush1.bf16.msra.mxu0 0
      %3348 = vmatprep.subr.bf16.mxu0 0
      %3349 = vmatpush1.bf16.msra.mxu0 0
      %3350 = vmatprep.subr.bf16.mxu0 0
      %3351 = vmatpush1.bf16.msra.mxu0 0
      %3352 = vmatprep.subr.bf16.mxu0 0
      %3353 = vmatpush1.bf16.msra.mxu0 0
      %3354 = vmatprep.subr.bf16.mxu0 0
      %3355 = vmatpush1.bf16.msra.mxu0 0
      %3356 = vmatprep.subr.bf16.mxu0 0
      %3357 = vmatpush1.bf16.msra.mxu0 0
      %3358 = vmatprep.subr.bf16.mxu0 0
      %3359 = vmatpush1.bf16.msra.mxu0 0
      %3360 = vmatprep.mubr.bf16.mxu0 0
      %3361 = vmatmul.mubr.bf16.gmra.mrb[0].mxu0 %v3283
      %v3362 = vpop.f32.mrb[0].mxu0
      %v3363 = vadd.f32 %v3320, %v3362
      %v3364 = vpop.f32.mrb[0].mxu0
      %v3365 = vadd.f32 %v3322, %v3364
      %v3366 = vpop.f32.mrb[0].mxu0
      %v3367 = vadd.f32 %v3324, %v3366
      %v3368 = vpop.f32.mrb[0].mxu0
      %v3369 = vadd.f32 %v3326, %v3368
      %3370 = vdwg.mxu0
      %v3371 = vld [vmem:[%s12] sm:$0xff]
      %v3372 = vld [vmem:[%s12 + $0x8] sm:$0xff]
      %3374 = vset.pattern.permute.xlu0 0
      %3375 = vperm.xlu0 %3374, %v3371
      %v3376 = vpop.permute.xlu0 %3375
      %3379 = vset.pattern.permute.xlu0 0
      %3380 = vperm.xlu0 %3379, %v3372
      %v3381 = vpop.permute.xlu0 %3380
      %v3383 = vadd.f32 %v3363, %v3376
      %v3384 = vadd.f32 %v3365, %v3376
      %v3385 = vadd.f32 %v3367, %v3381
      %v3386 = vadd.f32 %v3369, %v3381
      %v3387 = vtanh.pop %v3383
      %v3388 = vtanh.pop %v3384
      %v3389 = vtanh.pop %v3385
      %v3390 = vtanh.pop %v3386
      %v3391 = vadd.f32 %v3387, 1.0
      %v3392 = vadd.f32 %v3388, 1.0
      %v3393 = vsub.f32 0.0, %v3389
      %v3394 = vsub.f32 0.0, %v3390
      %v3395 = vmul.f32 %v3393, %v3391
      %v3396 = vmul.f32 %v3394, %v3392
      %v3399 = vrot.slane %v3391, 1
      %v3400 = vrot.slane %v3392, 1
      %v3403 = vmul.f32 %v3391, %v3399
      %v3404 = vmul.f32 %v3392, %v3400
      %v3407 = vrot.slane %v3389, 1
      %v3408 = vrot.slane %v3390, 1
      %v3411 = vsub.f32 %v3395, %v3407
      %v3412 = vsub.f32 %v3396, %v3408
      %v3413 = vmul.f32 %v3411, %v3399
      %v3414 = vmul.f32 %v3412, %v3400
      %v3415 = vrot.slane %v3391, 2
      %v3416 = vrot.slane %v3392, 2
      %v3419 = vmul.f32 %v3403, %v3415
      %v3420 = vmul.f32 %v3404, %v3416
      %v3421 = vrot.slane %v3389, 2
      %v3422 = vrot.slane %v3390, 2
      %v3425 = vsub.f32 %v3413, %v3421
      %v3426 = vsub.f32 %v3414, %v3422
      %v3427 = vmul.f32 %v3425, %v3415
      %v3428 = vmul.f32 %v3426, %v3416
      %v3429 = vrot.slane %v3391, 3
      %v3430 = vrot.slane %v3392, 3
      %v3433 = vmul.f32 %v3419, %v3429
      %v3434 = vmul.f32 %v3420, %v3430
      %v3435 = vrot.slane %v3389, 3
      %v3436 = vrot.slane %v3390, 3
      %v3439 = vsub.f32 %v3427, %v3435
      %v3440 = vsub.f32 %v3428, %v3436
      %v3441 = vmul.f32 %v3439, %v3429
      %v3442 = vmul.f32 %v3440, %v3430
      %v3443 = vrot.slane %v3391, 4
      %v3444 = vrot.slane %v3392, 4
      %v3447 = vmul.f32 %v3433, %v3443
      %v3448 = vmul.f32 %v3434, %v3444
      %v3449 = vrot.slane %v3389, 4
      %v3450 = vrot.slane %v3390, 4
      %v3453 = vsub.f32 %v3441, %v3449
      %v3454 = vsub.f32 %v3442, %v3450
      %v3455 = vmul.f32 %v3453, %v3443
      %v3456 = vmul.f32 %v3454, %v3444
      %v3457 = vrot.slane %v3391, 5
      %v3458 = vrot.slane %v3392, 5
      %v3461 = vmul.f32 %v3447, %v3457
      %v3462 = vmul.f32 %v3448, %v3458
      %v3463 = vrot.slane %v3389, 5
      %v3464 = vrot.slane %v3390, 5
      %v3467 = vsub.f32 %v3455, %v3463
      %v3468 = vsub.f32 %v3456, %v3464
      %v3469 = vmul.f32 %v3467, %v3457
      %v3470 = vmul.f32 %v3468, %v3458
      %v3471 = vrot.slane %v3391, 6
      %v3472 = vrot.slane %v3392, 6
      %v3475 = vmul.f32 %v3461, %v3471
      %v3476 = vmul.f32 %v3462, %v3472
      %v3477 = vrot.slane %v3389, 6
      %v3478 = vrot.slane %v3390, 6
      %v3481 = vsub.f32 %v3469, %v3477
      %v3482 = vsub.f32 %v3470, %v3478
      %v3483 = vmul.f32 %v3481, %v3471
      %v3484 = vmul.f32 %v3482, %v3472
      %v3485 = vrot.slane %v3391, 7
      %v3486 = vrot.slane %v3392, 7
      %v3489 = vmul.f32 %v3475, %v3485
      %v3490 = vmul.f32 %v3476, %v3486
      %v3491 = vrot.slane %v3389, 7
      %v3492 = vrot.slane %v3390, 7
      %v3495 = vsub.f32 %v3483, %v3491
      %v3496 = vsub.f32 %v3484, %v3492
      %v3497 = vmul.f32 %v3495, %v3485
      %v3498 = vmul.f32 %v3496, %v3486
      %v3499 = vlaneseq
      %v3500 = vshrl.u32 %v3499, 7
      %v3501 = vsub.s32 0, %v3500
      %v3502 = vrot.slane %v3489, %v3501
      %v3503 = vlaneseq
      %v3504 = vshrl.u32 %v3503, 7
      %v3505 = vsub.s32 0, %v3504
      %v3506 = vrot.slane %v3490, %v3505
      %v3507 = vmul.f32 %v603, %v3502
      %v3508 = vmul.f32 %v604, %v3506
      %v3509 = vlaneseq
      %v3510 = vshrl.u32 %v3509, 7
      %v3511 = vsub.s32 0, %v3510
      %v3512 = vrot.slane %v3497, %v3511
      %v3513 = vlaneseq
      %v3514 = vshrl.u32 %v3513, 7
      %v3515 = vsub.s32 0, %v3514
      %v3516 = vrot.slane %v3498, %v3515
      %v3517 = vadd.f32 %v3507, %v3512
      %v3518 = vadd.f32 %v3508, %v3516
      %v3521 = vcombine.low %v3517, %v3518
      %3523 = vst [vmem:[%s577] sm:$0x77] %v3521
      %3524 = vst [vmem:[%s582] sm:$0xff] %v3391
      %3525 = vst [vmem:[%s582 + $0x8] sm:$0xff] %v3392
      %3526 = vst [vmem:[%s587] sm:$0xff] %v3389
      %3527 = vst [vmem:[%s587 + $0x8] sm:$0xff] %v3390
      %3528 = vst [vmem:[%s592] sm:$0xff] %v922
      %3529 = vst [vmem:[%s592 + $0x8] sm:$0xff] %v923
      %3530 = vst [vmem:[%s592 + $0x10] sm:$0xff] %v924
      %3531 = vst [vmem:[%s592 + $0x18] sm:$0xff] %v925
      %3532 = vst [vmem:[%s592 + $0x20] sm:$0xff] %v926
      %3533 = vst [vmem:[%s592 + $0x28] sm:$0xff] %v927
      %3534 = vst [vmem:[%s592 + $0x30] sm:$0xff] %v928
      %3535 = vst [vmem:[%s592 + $0x38] sm:$0xff] %v929
      %3536 = vst [vmem:[%s597] sm:$0xff] %v930
      %3537 = vst [vmem:[%s597 + $0x8] sm:$0xff] %v931
      %3538 = vst [vmem:[%s597 + $0x10] sm:$0xff] %v932
      %3539 = vst [vmem:[%s597 + $0x18] sm:$0xff] %v933
      %3540 = vst [vmem:[%s597 + $0x20] sm:$0xff] %v934
      %3541 = vst [vmem:[%s597 + $0x28] sm:$0xff] %v935
      %3542 = vst [vmem:[%s597 + $0x30] sm:$0xff] %v936
      %3543 = vst [vmem:[%s597 + $0x38] sm:$0xff] %v937
      %p3544 = scmp.lt.s32.totalorder %s29, 1
      %s3545 = scalar_select %p3544, %s29, 1
      %s3546 = smul.addr %s3545, 2
      %s3547 = smul.addr %s3546, 4
      %s3548 = scalar_lea.vmem %s13, %s3547
      %p3549 = scmp.lt.s32.totalorder %s29, 1
      %s3550 = scalar_select %p3549, %s29, 1
      %s3551 = smul.addr %s3550, 2
      %s3552 = smul.addr %s3551, 8
      %s3553 = scalar_lea.vmem %s14, %s3552
      %p3554 = scmp.lt.s32.totalorder %s29, 1
      %s3555 = scalar_select %p3554, %s29, 1
      %s3556 = smul.addr %s3555, 2
      %s3557 = smul.addr %s3556, 8
      %s3558 = scalar_lea.vmem %s15, %s3557
      %p3559 = scmp.lt.s32.totalorder %s29, 1
      %s3560 = scalar_select %p3559, %s29, 1
      %s3561 = smul.addr %s3560, 8
      %s3562 = smul.addr %s3561, 8
      %s3563 = scalar_lea.vmem %s16, %s3562
      %p3564 = scmp.lt.s32.totalorder %s29, 1
      %s3565 = scalar_select %p3564, %s29, 1
      %s3566 = smul.addr %s3565, 8
      %s3567 = smul.addr %s3566, 8
      %s3568 = scalar_lea.vmem %s17, %s3567
      // Predicated region
      $region73: #{enhancer_forward.1} parent=71 // pred_check
        %p3569 = pneg %p325
      $region74: #{enhancer_forward.1} parent=71 // pred_check_branch
        %3571 = sbr.rel (%p3569) target = $region76
      $region75: #{enhancer_forward.1} parent=71 // pred_region
        _
      $region76: #{enhancer_forward.1} parent=71 // pred_fallthru
        _
      // Predicated region
      $region77: #{enhancer_forward.1} parent=71 // pred_check
        %p3572 = pneg %p351
      $region78: #{enhancer_forward.1} parent=71 // pred_check_branch
        %3574 = sbr.rel (%p3572) target = $region80
      $region79: #{enhancer_forward.1} parent=71 // pred_region
        _
      $region80: #{enhancer_forward.1} parent=71 // pred_fallthru
        _
      // Predicated region
      $region81: #{enhancer_forward.1} parent=71 // pred_check
        %p3575 = pneg %p377
      $region82: #{enhancer_forward.1} parent=71 // pred_check_branch
        %3577 = sbr.rel (%p3575) target = $region84
      $region83: #{enhancer_forward.1} parent=71 // pred_region
        _
      $region84: #{enhancer_forward.1} parent=71 // pred_fallthru
        _
      // Predicated region
      $region85: #{enhancer_forward.1} parent=71 // pred_check
        %p3578 = pneg %p403
      $region86: #{enhancer_forward.1} parent=71 // pred_check_branch
        %3580 = sbr.rel (%p3578) target = $region88
      $region87: #{enhancer_forward.1} parent=71 // pred_region
        _
      $region88: #{enhancer_forward.1} parent=71 // pred_fallthru
        _
      // Predicated region
      $region89: #{enhancer_forward.1} parent=71 // pred_check
        %p3581 = pneg %p429
      $region90: #{enhancer_forward.1} parent=71 // pred_check_branch
        %3583 = sbr.rel (%p3581) target = $region92
      $region91: #{enhancer_forward.1} parent=71 // pred_region
        _
      $region92: #{enhancer_forward.1} parent=71 // pred_fallthru
        _
    $region72: #{enhancer_forward.1} parent=5 // pred_fallthru
      _
    %p3584 = scmp.le.s32.totalorder 2, %s24
    // Predicated region
    $region93: #{enhancer_forward.1} parent=5 // pred_check
      %p3585 = pneg %p3584
    $region94: #{enhancer_forward.1} parent=5 // pred_check_branch
      %3587 = sbr.rel (%p3585) target = $region96
    $region95: #{enhancer_forward.1} parent=5 // pred_region
      %s3588 = ssub.s32 %s24, 2
      // Predicated region
      $region97: #{enhancer_forward.1} parent=95 // pred_check
        %p3589 = pneg %p331
      $region98: #{enhancer_forward.1} parent=95 // pred_check_branch
        %3591 = sbr.rel (%p3589) target = $region100
      $region99: #{enhancer_forward.1} parent=95 // pred_region
        %p3592 = scmp.lt.s32.totalorder %s30, 1
        %s3593 = scalar_select %p3592, %s30, 1
        %s3594 = smul.addr %s3593, 2
        %s3595 = smul.addr %s3594, 4
        %s3596 = scalar_lea.vmem %s13, %s3595
      $region100: #{enhancer_forward.1} parent=95 // pred_fallthru
        _
      // Predicated region
      $region101: #{enhancer_forward.1} parent=95 // pred_check
        %p3597 = pneg %p357
      $region102: #{enhancer_forward.1} parent=95 // pred_check_branch
        %3599 = sbr.rel (%p3597) target = $region104
      $region103: #{enhancer_forward.1} parent=95 // pred_region
        %p3600 = scmp.lt.s32.totalorder %s30, 1
        %s3601 = scalar_select %p3600, %s30, 1
        %s3602 = smul.addr %s3601, 2
        %s3603 = smul.addr %s3602, 8
        %s3604 = scalar_lea.vmem %s14, %s3603
      $region104: #{enhancer_forward.1} parent=95 // pred_fallthru
        _
      // Predicated region
      $region105: #{enhancer_forward.1} parent=95 // pred_check
        %p3605 = pneg %p383
      $region106: #{enhancer_forward.1} parent=95 // pred_check_branch
        %3607 = sbr.rel (%p3605) target = $region108
      $region107: #{enhancer_forward.1} parent=95 // pred_region
        %p3608 = scmp.lt.s32.totalorder %s30, 1
        %s3609 = scalar_select %p3608, %s30, 1
        %s3610 = smul.addr %s3609, 2
        %s3611 = smul.addr %s3610, 8
        %s3612 = scalar_lea.vmem %s15, %s3611
      $region108: #{enhancer_forward.1} parent=95 // pred_fallthru
        _
      // Predicated region
      $region109: #{enhancer_forward.1} parent=95 // pred_check
        %p3613 = pneg %p409
      $region110: #{enhancer_forward.1} parent=95 // pred_check_branch
        %3615 = sbr.rel (%p3613) target = $region112
      $region111: #{enhancer_forward.1} parent=95 // pred_region
        %p3616 = scmp.lt.s32.totalorder %s30, 1
        %s3617 = scalar_select %p3616, %s30, 1
        %s3618 = smul.addr %s3617, 8
        %s3619 = smul.addr %s3618, 8
        %s3620 = scalar_lea.vmem %s16, %s3619
      $region112: #{enhancer_forward.1} parent=95 // pred_fallthru
        _
      // Predicated region
      $region113: #{enhancer_forward.1} parent=95 // pred_check
        %p3621 = pneg %p435
      $region114: #{enhancer_forward.1} parent=95 // pred_check_branch
        %3623 = sbr.rel (%p3621) target = $region116
      $region115: #{enhancer_forward.1} parent=95 // pred_region
        %p3624 = scmp.lt.s32.totalorder %s30, 1
        %s3625 = scalar_select %p3624, %s30, 1
        %s3626 = smul.addr %s3625, 8
        %s3627 = smul.addr %s3626, 8
        %s3628 = scalar_lea.vmem %s17, %s3627
      $region116: #{enhancer_forward.1} parent=95 // pred_fallthru
        _
    $region96: #{enhancer_forward.1} parent=5 // pred_fallthru
      _
  $region6: #{enhancer_forward.1} parent=0 // loop_footer
    %s28 = sadd.s32 1, %s24
  $region7: #{enhancer_forward.1} parent=0 // loop_footer_branch
    %23 = sbr.rel target = $region3
  $region8: #{enhancer_forward.1} parent=0 // loop_exit
    _

</llo_original>
